<compile_context>
chip_gen: v6e
topology: v6e:2x2x1
jax: 0.10.0
libtpu: 0.0.40
codegen_flags: <defaults>
</compile_context>

<pallas_src>
import functools

import jax
import jax.numpy as jnp
from jax.experimental import pallas as pl
from jax.experimental.pallas import tpu as pltpu


# Spatial bookkeeping (16x16 input):
#   conv1: 16x16 valid grid, pool1 -> 8x8
#   conv2: 10x10 padded grid (8x8 valid), pool2 -> 4x4
#   conv3:  6x6 padded grid (4x4 valid)
_S2, _WP2 = 122, 10   # per-image extended-flat length / padded row width (conv2)
_S3, _WP3 = 50, 6     # same for conv3


# ----------------------------------------------------------------------------
# Fused Pallas kernel (one batch block per grid step)
# ----------------------------------------------------------------------------
def _fused_cnn_kernel(p1_ref, w1_ref, b1_ref, w2_ref, b2_ref, w3_ref, b3_ref,
                      fc1_ref, fc1b_ref, fc2_ref, fc2b_ref, fc3_ref, fc3b_ref,
                      o_ref,
                      y1_ref, ph1_ref, xe2_ref, y2_ref, ph2_ref, xe3_ref,
                      y3_ref, xcat_ref, *, bb):
    f32 = jnp.float32
    n1 = bb * 256          # conv1 output rows (16x16 valid grid per image)
    n2 = bb * _S2          # conv2 output rows (incl. per-image lead/tail junk)
    n3 = bb * _S3          # conv3 output rows
    m1 = n1 - 17           # rows of the pool1 2x2-max intermediate
    m2 = n2 - 11           # rows of the pool2 2x2-max intermediate

    # ---------------------------------------------------------------- conv1
    # im2col patches from the wrapper: (bb, 256, 9) -> (bb*256, 9); a single
    # MXU matmul with the whole batch block folded into M.
    p1 = p1_ref[...].reshape(n1, 9)
    y1_ref[...] = jnp.maximum(
        jnp.dot(p1, w1_ref[...], preferred_element_type=f32) + b1_ref[...], 0.0)

    # ---------------------------------------------------------------- pool1
    # 2x2/2 maxpool on the VPU: 4 sublane-shifted loads + elementwise max,
    # then a stride-2 compaction that scatters straight into conv2's
    # zero-padded extended-flat layout (conv2 taps stay contiguous slices).
    ph1_ref[...] = jnp.maximum(
        jnp.maximum(y1_ref[pl.ds(0, m1), :], y1_ref[pl.ds(1, m1), :]),
        jnp.maximum(y1_ref[pl.ds(16, m1), :], y1_ref[pl.ds(17, m1), :]))
    xe2_ref[...] = jnp.zeros(xe2_ref.shape, f32)
    for b in range(bb):
        for i in range(8):                      # 8 pooled rows per image
            src = b * 256 + 32 * i
            dst = b * _S2 + 33 + 10 * i
            xe2_ref[pl.ds(dst, 8), :] = ph1_ref[pl.ds(src, 8, stride=2), :]

    # ---------------------------------------------------------------- conv2
    # 9 shifted MXU matmuls over contiguous sublane slices, batch folded into
    # M.  Junk rows (per-image lead/tail/ring) are computed but never read.
    acc2 = jnp.zeros((n2, 64), f32)
    for k in range(9):
        dh, dw = divmod(k, 3)
        xs = xe2_ref[pl.ds(dh * _WP2 + dw, n2), :]
        wk = w2_ref[pl.ds(k * 16, 16), :]
        acc2 = acc2 + jnp.dot(xs, wk, preferred_element_type=f32)
    y2_ref[...] = jnp.maximum(acc2 + b2_ref[...], 0.0)

    # ---------------------------------------------------------------- pool2
    ph2_ref[...] = jnp.maximum(
        jnp.maximum(y2_ref[pl.ds(0, m2), :], y2_ref[pl.ds(1, m2), :]),
        jnp.maximum(y2_ref[pl.ds(_WP2, m2), :], y2_ref[pl.ds(_WP2 + 1, m2), :]))
    xe3_ref[...] = jnp.zeros(xe3_ref.shape, f32)
    for b in range(bb):
        for i in range(4):                      # 4 pooled rows per image
            src = b * _S2 + 22 + 20 * i
            dst = b * _S3 + 21 + 6 * i
            xe3_ref[pl.ds(dst, 4), :] = ph2_ref[pl.ds(src, 4, stride=2), :]

    # ---------------------------------------------------------------- conv3
    acc3 = jnp.zeros((n3, 256), f32)
    for k in range(9):
        dh, dw = divmod(k, 3)
        xs = xe3_ref[pl.ds(dh * _WP3 + dw, n3), :]
        wk = w3_ref[pl.ds(k * 64, 64), :]
        acc3 = acc3 + jnp.dot(xs, wk, preferred_element_type=f32)
    y3_ref[...] = jnp.maximum(acc3 + b3_ref[...], 0.0)

    # ------------------------------------------------------------- MLP head
    # Pack every image's 6x6 padded conv3 grid side by side on the lane axis
    # (lane-tile-aligned 256-wide copies) so fc1/fc2/fc3 are 3 matmuls with
    # N = bb*256.  fc1's Flatten is folded into its weight (zero columns at
    # padding positions, so junk ring values never contribute).
    for b in range(bb):
        xcat_ref[:, b * 256:(b + 1) * 256] = y3_ref[pl.ds(b * _S3 + 7, 36), :]
    x = xcat_ref[...]                                          # (36, bb*256)
    h1 = jnp.maximum(
        jnp.dot(fc1_ref[...], x, preferred_element_type=f32) + fc1b_ref[...],
        0.0)                                                   # (64, bb*256)
    h2 = jnp.maximum(
        jnp.dot(fc2_ref[...], h1, preferred_element_type=f32) + fc2b_ref[...],
        0.0)                                                   # (256, bb*256)
    logits = (jnp.dot(fc3_ref[...], h2, preferred_element_type=f32)
              + fc3b_ref[...])                                 # (26, bb*256)

    # exact softmax over the 26-class (sublane) axis
    mx = jnp.max(logits, axis=0, keepdims=True)
    e = jnp.exp(logits - mx)
    s = jnp.sum(e, axis=0, keepdims=True)
    probs = e / s                                              # lane-dense
    for b in range(bb):
        o_ref[b] = probs[:, b * 256:(b + 1) * 256]


# ----------------------------------------------------------------------------
# Parameters (deterministic init matching the module's declared shapes)
# ----------------------------------------------------------------------------
def init_params(key):
    ks = jax.random.split(key, 12)

    def conv_w(k, cin, cout):   # stored as (kh, kw, cin, cout)
        return jax.random.normal(k, (3, 3, cin, cout), jnp.float32) / jnp.sqrt(9.0 * cin)

    def lin_w(k, fin, fout):
        return jax.random.normal(k, (fin, fout), jnp.float32) / jnp.sqrt(float(fin))

    def bias(k, n):
        return 0.01 * jax.random.normal(k, (n,), jnp.float32)

    return {
        "conv1_w": conv_w(ks[0], 1, 16),    "conv1_b": bias(ks[1], 16),
        "conv2_w": conv_w(ks[2], 16, 64),   "conv2_b": bias(ks[3], 64),
        "conv3_w": conv_w(ks[4], 64, 256),  "conv3_b": bias(ks[5], 256),
        "fc1_w":   lin_w(ks[6], 16, 64),    "fc1_b":  bias(ks[7], 64),
        "fc2_w":   lin_w(ks[8], 64, 256),   "fc2_b":  bias(ks[9], 256),
        "fc3_w":   lin_w(ks[10], 256, 26),  "fc3_b":  bias(ks[11], 26),
    }


def _pick_batch_block(batch):
    """Largest divisor of `batch` that is <= 8 while keeping >= 2 grid steps
    (so v7x's two TensorCores both get work from the 'parallel' grid axis)."""
    target = max(1, min(8, batch // 2))
    for bb in range(target, 0, -1):
        if batch % bb == 0:
            return bb
    return 1


# ----------------------------------------------------------------------------
# Forward pass: one fused Pallas kernel, gridded over batch blocks
# ----------------------------------------------------------------------------
@jax.jit
def cnn_forward(params, x_nchw):
    """Returns class probabilities of shape (B, 26, 256): out[b, :, c] is the
    softmax over the 26 classes for (image b, channel c).  Kept in this
    lane-dense layout end-to-end (no trailing transpose, per review)."""
    B = x_nchw.shape[0]
    bb = _pick_batch_block(B)

    # conv1 im2col patches, built by XLA (pure data movement on the 1-channel
    # input): p1[b, r*16+c, dh*3+dw] = x_pad[b, r+dh, c+dw].
    x = x_nchw.astype(jnp.float32).reshape(B, 16, 16)
    xp = jnp.pad(x, ((0, 0), (1, 1), (1, 1)))
    p1 = jnp.stack([xp[:, dh:dh + 16, dw:dw + 16]
                    for dh in range(3) for dw in range(3)], axis=-1)
    p1 = p1.reshape(B, 256, 9)

    w1 = params["conv1_w"].reshape(9, 16)
    w2 = params["conv2_w"].reshape(144, 64)
    w3 = params["conv3_w"].reshape(576, 256)
    b1 = params["conv1_b"].reshape(1, 16)
    b2 = params["conv2_b"].reshape(1, 64)
    b3 = params["conv3_b"].reshape(1, 256)

    # Head weights transposed so the bb*256-channel axis stays on lanes; fc1's
    # flatten folded in by scattering its 16 columns onto conv3's 6x6 padded
    # grid (zero columns at padding positions).
    cols = jnp.asarray([(h + 1) * 6 + (w + 1) for h in range(4) for w in range(4)],
                       jnp.int32)
    fc1e = jnp.zeros((64, 36), jnp.float32).at[:, cols].set(params["fc1_w"].T)
    fc1b = params["fc1_b"].reshape(64, 1)
    fc2t = params["fc2_w"].T                    # (256, 64)
    fc2b = params["fc2_b"].reshape(256, 1)
    fc3t = params["fc3_w"].T                    # (26, 256)
    fc3b = params["fc3_b"].reshape(26, 1)

    flops = 2 * B * (256 * 9 * 16 + 122 * 144 * 64 + 50 * 576 * 256
                     + 64 * 36 * 256 + 256 * 64 * 256 + 26 * 256 * 256)
    bytes_accessed = 4 * (B * 256 * 9 + 9 * 16 + 16 + 144 * 64 + 64
                          + 576 * 256 + 256 + 64 * 36 + 64 + 256 * 64 + 256
                          + 26 * 256 + 26 + B * 26 * 256)

    kernel = functools.partial(_fused_cnn_kernel, bb=bb)
    return pl.pallas_call(
        kernel,
        out_shape=jax.ShapeDtypeStruct((B, 26, 256), jnp.float32),
        grid=(B // bb,),
        in_specs=[
            pl.BlockSpec((bb, 256, 9), lambda i: (i, 0, 0)),   # im2col patches
            pl.BlockSpec((9, 16), lambda i: (0, 0)),           # conv1 w
            pl.BlockSpec((1, 16), lambda i: (0, 0)),           # conv1 b
            pl.BlockSpec((144, 64), lambda i: (0, 0)),         # conv2 w
            pl.BlockSpec((1, 64), lambda i: (0, 0)),           # conv2 b
            pl.BlockSpec((576, 256), lambda i: (0, 0)),        # conv3 w
            pl.BlockSpec((1, 256), lambda i: (0, 0)),          # conv3 b
            pl.BlockSpec((64, 36), lambda i: (0, 0)),          # fc1 (flatten folded)
            pl.BlockSpec((64, 1), lambda i: (0, 0)),           # fc1 b
            pl.BlockSpec((256, 64), lambda i: (0, 0)),         # fc2^T
            pl.BlockSpec((256, 1), lambda i: (0, 0)),          # fc2 b
            pl.BlockSpec((26, 256), lambda i: (0, 0)),         # fc3^T
            pl.BlockSpec((26, 1), lambda i: (0, 0)),           # fc3 b
        ],
        out_specs=pl.BlockSpec((bb, 26, 256), lambda i: (i, 0, 0)),
        scratch_shapes=[
            pltpu.VMEM((bb * 256, 16), jnp.float32),        # y1  (conv1 out)
            pltpu.VMEM((bb * 256 - 17, 16), jnp.float32),   # ph1 (pool1 2x2 max)
            pltpu.VMEM((bb * _S2 + 22, 16), jnp.float32),   # xe2 (conv2 ext-flat in)
            pltpu.VMEM((bb * _S2, 64), jnp.float32),        # y2  (conv2 out)
            pltpu.VMEM((bb * _S2 - 11, 64), jnp.float32),   # ph2 (pool2 2x2 max)
            pltpu.VMEM((bb * _S3 + 14, 64), jnp.float32),   # xe3 (conv3 ext-flat in)
            pltpu.VMEM((bb * _S3, 256), jnp.float32),       # y3  (conv3 out)
            pltpu.VMEM((36, bb * 256), jnp.float32),        # head input (grids on lanes)
        ],
        compiler_params=pltpu.CompilerParams(
            dimension_semantics=("parallel",),
            vmem_limit_bytes=32 * 1024 * 1024),
        cost_estimate=pl.CostEstimate(flops=flops,
                                      transcendentals=B * 26 * 256,
                                      bytes_accessed=bytes_accessed),
    )(p1, w1, b1, w2, b2, w3, b3, fc1e, fc1b, fc2t, fc2b, fc3t, fc3b)


# ----------------------------------------------------------------------------
# Pure-JAX reference (standard XLA ops) for a correctness cross-check
# ----------------------------------------------------------------------------
def _reference_forward(params, x_nchw):
    B = x_nchw.shape[0]
    x = jnp.transpose(x_nchw, (0, 2, 3, 1)).astype(jnp.float32)

    def conv3x3_relu(x, w, b):
        bb_, h, ww, c = x.shape
        xp = jnp.pad(x, ((0, 0), (1, 1), (1, 1), (0, 0)))
        out = jnp.zeros((bb_, h, ww, w.shape[-1]), jnp.float32) + b
        for dh in range(3):
            for dw in range(3):
                out = out + jnp.einsum("bhwc,cf->bhwf",
                                       xp[:, dh:dh + h, dw:dw + ww, :], w[dh, dw])
        return jnp.maximum(out, 0.0)

    def pool(x):
        bb_, h, ww, c = x.shape
        return jnp.max(x.reshape(bb_, h // 2, 2, ww // 2, 2, c), axis=(2, 4))

    x = pool(conv3x3_relu(x, params["conv1_w"], params["conv1_b"]))
    x = pool(conv3x3_relu(x, params["conv2_w"], params["conv2_b"]))
    x = conv3x3_relu(x, params["conv3_w"], params["conv3_b"])          # (B,4,4,256)
    x = jnp.transpose(x, (0, 3, 1, 2)).reshape(B * 256, 16)
    x = jnp.maximum(x @ params["fc1_w"] + params["fc1_b"], 0.0)
    x = jnp.maximum(x @ params["fc2_w"] + params["fc2_b"], 0.0)
    x = jax.nn.softmax(x @ params["fc3_w"] + params["fc3_b"], axis=-1)
    return x.reshape(B, 256, 26)


# ----------------------------------------------------------------------------
if __name__ == "__main__":
    key = jax.random.PRNGKey(0)
    pkey, xkey = jax.random.split(key)
    params = init_params(pkey)

    # Small input consistent with the module: batch=2, 1 channel, 16x16 spatial.
    x = jax.random.normal(xkey, (2, 1, 16, 16), jnp.float32)

    out = jax.block_until_ready(cnn_forward(params, x))

    assert out.shape == (2, 26, 256), out.shape
    # exact softmax -> rows (over the 26-class axis) must sum to ~1
    row_sums = jnp.sum(out, axis=1)
    assert bool(jnp.all(jnp.abs(row_sums - 1.0) < 1e-3)), "softmax rows do not sum to 1"
    assert bool(jnp.all(jnp.isfinite(out))), "non-finite values in output"

    # cross-check against a pure-JAX reference of the same interpretation
    ref = _reference_forward(params, x)                       # (B, 256, 26)
    got = jnp.transpose(out, (0, 2, 1))                       # test-side relayout only
    assert bool(jnp.allclose(got, ref, rtol=3e-3, atol=3e-3)), \
        float(jnp.max(jnp.abs(got - ref)))

    print("KERNEL_OK")
</pallas_src>

<mosaic_0001>
module attributes {stable_mosaic.version = 11 : i64} {
  func.func @_fused_cnn_kernel(%arg0: i32, %arg1: memref<1x256x9xf32, #tpu.memory_space<vmem>>, %arg2: memref<9x16xf32, #tpu.memory_space<vmem>>, %arg3: memref<1x16xf32, #tpu.memory_space<vmem>>, %arg4: memref<144x64xf32, #tpu.memory_space<vmem>>, %arg5: memref<1x64xf32, #tpu.memory_space<vmem>>, %arg6: memref<576x256xf32, #tpu.memory_space<vmem>>, %arg7: memref<1x256xf32, #tpu.memory_space<vmem>>, %arg8: memref<64x36xf32, #tpu.memory_space<vmem>>, %arg9: memref<64x1xf32, #tpu.memory_space<vmem>>, %arg10: memref<256x64xf32, #tpu.memory_space<vmem>>, %arg11: memref<256x1xf32, #tpu.memory_space<vmem>>, %arg12: memref<26x256xf32, #tpu.memory_space<vmem>>, %arg13: memref<26x1xf32, #tpu.memory_space<vmem>>, %arg14: memref<1x26x256xf32, #tpu.memory_space<vmem>>, %arg15: memref<256x16xf32, #tpu.memory_space<vmem>>, %arg16: memref<239x16xf32, #tpu.memory_space<vmem>>, %arg17: memref<144x16xf32, #tpu.memory_space<vmem>>, %arg18: memref<122x64xf32, #tpu.memory_space<vmem>>, %arg19: memref<111x64xf32, #tpu.memory_space<vmem>>, %arg20: memref<64x64xf32, #tpu.memory_space<vmem>>, %arg21: memref<50x256xf32, #tpu.memory_space<vmem>>, %arg22: memref<36x256xf32, #tpu.memory_space<vmem>>) attributes {dimension_semantics = [#tpu.dimension_semantics<parallel>], iteration_bounds = array<i64: 2>, scalar_prefetch = 0 : i64, scratch_operands = 8 : i64, tpu.core_type = #tpu.core_type<tc>, window_params = [{transform_indices = @transform_0, window_bounds = array<i64: 1, 256, 9>}, {pipeline_mode = #tpu.pipeline_mode<synchronous>, transform_indices = @transform_1, window_bounds = array<i64: 9, 16>}, {pipeline_mode = #tpu.pipeline_mode<synchronous>, transform_indices = @transform_2, window_bounds = array<i64: 1, 16>}, {pipeline_mode = #tpu.pipeline_mode<synchronous>, transform_indices = @transform_3, window_bounds = array<i64: 144, 64>}, {pipeline_mode = #tpu.pipeline_mode<synchronous>, transform_indices = @transform_4, window_bounds = array<i64: 1, 64>}, {pipeline_mode = #tpu.pipeline_mode<synchronous>, transform_indices = @transform_5, window_bounds = array<i64: 576, 256>}, {pipeline_mode = #tpu.pipeline_mode<synchronous>, transform_indices = @transform_6, window_bounds = array<i64: 1, 256>}, {pipeline_mode = #tpu.pipeline_mode<synchronous>, transform_indices = @transform_7, window_bounds = array<i64: 64, 36>}, {pipeline_mode = #tpu.pipeline_mode<synchronous>, transform_indices = @transform_8, window_bounds = array<i64: 64, 1>}, {pipeline_mode = #tpu.pipeline_mode<synchronous>, transform_indices = @transform_9, window_bounds = array<i64: 256, 64>}, {pipeline_mode = #tpu.pipeline_mode<synchronous>, transform_indices = @transform_10, window_bounds = array<i64: 256, 1>}, {pipeline_mode = #tpu.pipeline_mode<synchronous>, transform_indices = @transform_11, window_bounds = array<i64: 26, 256>}, {pipeline_mode = #tpu.pipeline_mode<synchronous>, transform_indices = @transform_12, window_bounds = array<i64: 26, 1>}, {transform_indices = @transform_13, window_bounds = array<i64: 1, 26, 256>}]} {
    %c0 = arith.constant 0 : index
    %c0_0 = arith.constant 0 : index
    %c0_1 = arith.constant 0 : index
    %0 = vector.load %arg1[%c0, %c0_0, %c0_1] : memref<1x256x9xf32, #tpu.memory_space<vmem>>, vector<1x256x9xf32>
    %1 = vector.shape_cast %0 : vector<1x256x9xf32> to vector<256x9xf32>
    %c0_2 = arith.constant 0 : index
    %c0_3 = arith.constant 0 : index
    %2 = vector.load %arg2[%c0_2, %c0_3] : memref<9x16xf32, #tpu.memory_space<vmem>>, vector<9x16xf32>
    %cst = arith.constant dense<0.000000e+00> : vector<256x16xf32>
    %3 = tpu.matmul %1, %2, %cst {dimension_numbers = #tpu.dot_dimension_numbers<[1], [0], [0], [1], [0, 0, 1, 1], [], []>} : vector<256x9xf32>, vector<9x16xf32>, vector<256x16xf32> -> vector<256x16xf32>
    %c0_4 = arith.constant 0 : index
    %c0_5 = arith.constant 0 : index
    %4 = vector.load %arg3[%c0_4, %c0_5] : memref<1x16xf32, #tpu.memory_space<vmem>>, vector<1x16xf32>
    %5 = vector.broadcast %4 : vector<1x16xf32> to vector<256x16xf32>
    %6 = arith.addf %3, %5 : vector<256x16xf32>
    %cst_6 = arith.constant 0.000000e+00 : f32
    %7 = vector.broadcast %cst_6 : f32 to vector<256x16xf32>
    %8 = arith.maximumf %6, %7 : vector<256x16xf32>
    %c0_7 = arith.constant 0 : index
    %c0_8 = arith.constant 0 : index
    %9 = vector.load %arg15[%c0_7, %c0_8] : memref<256x16xf32, #tpu.memory_space<vmem>>, vector<256x16xf32>
    tpu.vector_store %arg15[%c0_7, %c0_8], %8 {strides = array<i32>} : memref<256x16xf32, #tpu.memory_space<vmem>>, vector<256x16xf32>,
    %c0_9 = arith.constant 0 : index
    %c0_10 = arith.constant 0 : index
    %10 = vector.load %arg15[%c0_9, %c0_10] : memref<256x16xf32, #tpu.memory_space<vmem>>, vector<239x16xf32>
    %c1 = arith.constant 1 : index
    %c0_11 = arith.constant 0 : index
    %11 = vector.load %arg15[%c1, %c0_11] : memref<256x16xf32, #tpu.memory_space<vmem>>, vector<239x16xf32>
    %12 = arith.maximumf %10, %11 : vector<239x16xf32>
    %c16 = arith.constant 16 : index
    %c0_12 = arith.constant 0 : index
    %13 = vector.load %arg15[%c16, %c0_12] : memref<256x16xf32, #tpu.memory_space<vmem>>, vector<239x16xf32>
    %c17 = arith.constant 17 : index
    %c0_13 = arith.constant 0 : index
    %14 = vector.load %arg15[%c17, %c0_13] : memref<256x16xf32, #tpu.memory_space<vmem>>, vector<239x16xf32>
    %15 = arith.maximumf %13, %14 : vector<239x16xf32>
    %16 = arith.maximumf %12, %15 : vector<239x16xf32>
    %c0_14 = arith.constant 0 : index
    %c0_15 = arith.constant 0 : index
    %17 = vector.load %arg16[%c0_14, %c0_15] : memref<239x16xf32, #tpu.memory_space<vmem>>, vector<239x16xf32>
    tpu.vector_store %arg16[%c0_14, %c0_15], %16 {strides = array<i32>} : memref<239x16xf32, #tpu.memory_space<vmem>>, vector<239x16xf32>,
    %cst_16 = arith.constant 0.000000e+00 : f32
    %18 = vector.broadcast %cst_16 : f32 to vector<144x16xf32>
    %c0_17 = arith.constant 0 : index
    %c0_18 = arith.constant 0 : index
    %19 = vector.load %arg17[%c0_17, %c0_18] : memref<144x16xf32, #tpu.memory_space<vmem>>, vector<144x16xf32>
    tpu.vector_store %arg17[%c0_17, %c0_18], %18 {strides = array<i32>} : memref<144x16xf32, #tpu.memory_space<vmem>>, vector<144x16xf32>,
    %c0_19 = arith.constant 0 : index
    %c0_20 = arith.constant 0 : index
    %20 = tpu.strided_load %arg16[%c0_19, %c0_20] {strides = array<i32: 2, 1>} : memref<239x16xf32, #tpu.memory_space<vmem>>, vector<8x16xf32>
    %c33 = arith.constant 33 : index
    %c0_21 = arith.constant 0 : index
    %21 = vector.load %arg17[%c33, %c0_21] : memref<144x16xf32, #tpu.memory_space<vmem>>, vector<8x16xf32>
    tpu.vector_store %arg17[%c33, %c0_21], %20 {strides = array<i32>} : memref<144x16xf32, #tpu.memory_space<vmem>>, vector<8x16xf32>,
    %c32 = arith.constant 32 : index
    %c0_22 = arith.constant 0 : index
    %22 = tpu.strided_load %arg16[%c32, %c0_22] {strides = array<i32: 2, 1>} : memref<239x16xf32, #tpu.memory_space<vmem>>, vector<8x16xf32>
    %c43 = arith.constant 43 : index
    %c0_23 = arith.constant 0 : index
    %23 = vector.load %arg17[%c43, %c0_23] : memref<144x16xf32, #tpu.memory_space<vmem>>, vector<8x16xf32>
    tpu.vector_store %arg17[%c43, %c0_23], %22 {strides = array<i32>} : memref<144x16xf32, #tpu.memory_space<vmem>>, vector<8x16xf32>,
    %c64 = arith.constant 64 : index
    %c0_24 = arith.constant 0 : index
    %24 = tpu.strided_load %arg16[%c64, %c0_24] {strides = array<i32: 2, 1>} : memref<239x16xf32, #tpu.memory_space<vmem>>, vector<8x16xf32>
    %c53 = arith.constant 53 : index
    %c0_25 = arith.constant 0 : index
    %25 = vector.load %arg17[%c53, %c0_25] : memref<144x16xf32, #tpu.memory_space<vmem>>, vector<8x16xf32>
    tpu.vector_store %arg17[%c53, %c0_25], %24 {strides = array<i32>} : memref<144x16xf32, #tpu.memory_space<vmem>>, vector<8x16xf32>,
    %c96 = arith.constant 96 : index
    %c0_26 = arith.constant 0 : index
    %26 = tpu.strided_load %arg16[%c96, %c0_26] {strides = array<i32: 2, 1>} : memref<239x16xf32, #tpu.memory_space<vmem>>, vector<8x16xf32>
    %c63 = arith.constant 63 : index
    %c0_27 = arith.constant 0 : index
    %27 = vector.load %arg17[%c63, %c0_27] : memref<144x16xf32, #tpu.memory_space<vmem>>, vector<8x16xf32>
    tpu.vector_store %arg17[%c63, %c0_27], %26 {strides = array<i32>} : memref<144x16xf32, #tpu.memory_space<vmem>>, vector<8x16xf32>,
    %c128 = arith.constant 128 : index
    %c0_28 = arith.constant 0 : index
    %28 = tpu.strided_load %arg16[%c128, %c0_28] {strides = array<i32: 2, 1>} : memref<239x16xf32, #tpu.memory_space<vmem>>, vector<8x16xf32>
    %c73 = arith.constant 73 : index
    %c0_29 = arith.constant 0 : index
    %29 = vector.load %arg17[%c73, %c0_29] : memref<144x16xf32, #tpu.memory_space<vmem>>, vector<8x16xf32>
    tpu.vector_store %arg17[%c73, %c0_29], %28 {strides = array<i32>} : memref<144x16xf32, #tpu.memory_space<vmem>>, vector<8x16xf32>,
    %c160 = arith.constant 160 : index
    %c0_30 = arith.constant 0 : index
    %30 = tpu.strided_load %arg16[%c160, %c0_30] {strides = array<i32: 2, 1>} : memref<239x16xf32, #tpu.memory_space<vmem>>, vector<8x16xf32>
    %c83 = arith.constant 83 : index
    %c0_31 = arith.constant 0 : index
    %31 = vector.load %arg17[%c83, %c0_31] : memref<144x16xf32, #tpu.memory_space<vmem>>, vector<8x16xf32>
    tpu.vector_store %arg17[%c83, %c0_31], %30 {strides = array<i32>} : memref<144x16xf32, #tpu.memory_space<vmem>>, vector<8x16xf32>,
    %c192 = arith.constant 192 : index
    %c0_32 = arith.constant 0 : index
    %32 = tpu.strided_load %arg16[%c192, %c0_32] {strides = array<i32: 2, 1>} : memref<239x16xf32, #tpu.memory_space<vmem>>, vector<8x16xf32>
    %c93 = arith.constant 93 : index
    %c0_33 = arith.constant 0 : index
    %33 = vector.load %arg17[%c93, %c0_33] : memref<144x16xf32, #tpu.memory_space<vmem>>, vector<8x16xf32>
    tpu.vector_store %arg17[%c93, %c0_33], %32 {strides = array<i32>} : memref<144x16xf32, #tpu.memory_space<vmem>>, vector<8x16xf32>,
    %c224 = arith.constant 224 : index
    %c0_34 = arith.constant 0 : index
    %34 = tpu.strided_load %arg16[%c224, %c0_34] {strides = array<i32: 2, 1>} : memref<239x16xf32, #tpu.memory_space<vmem>>, vector<8x16xf32>
    %c103 = arith.constant 103 : index
    %c0_35 = arith.constant 0 : index
    %35 = vector.load %arg17[%c103, %c0_35] : memref<144x16xf32, #tpu.memory_space<vmem>>, vector<8x16xf32>
    tpu.vector_store %arg17[%c103, %c0_35], %34 {strides = array<i32>} : memref<144x16xf32, #tpu.memory_space<vmem>>, vector<8x16xf32>,
    %cst_36 = arith.constant 0.000000e+00 : f32
    %36 = vector.broadcast %cst_36 : f32 to vector<122x64xf32>
    %c0_37 = arith.constant 0 : index
    %c0_38 = arith.constant 0 : index
    %37 = vector.load %arg17[%c0_37, %c0_38] : memref<144x16xf32, #tpu.memory_space<vmem>>, vector<122x16xf32>
    %c0_39 = arith.constant 0 : index
    %c0_40 = arith.constant 0 : index
    %38 = vector.load %arg4[%c0_39, %c0_40] : memref<144x64xf32, #tpu.memory_space<vmem>>, vector<16x64xf32>
    %cst_41 = arith.constant dense<0.000000e+00> : vector<122x64xf32>
    %39 = tpu.matmul %37, %38, %cst_41 {dimension_numbers = #tpu.dot_dimension_numbers<[1], [0], [0], [1], [0, 0, 1, 1], [], []>} : vector<122x16xf32>, vector<16x64xf32>, vector<122x64xf32> -> vector<122x64xf32>
    %40 = arith.addf %36, %39 : vector<122x64xf32>
    %c1_42 = arith.constant 1 : index
    %c0_43 = arith.constant 0 : index
    %41 = vector.load %arg17[%c1_42, %c0_43] : memref<144x16xf32, #tpu.memory_space<vmem>>, vector<122x16xf32>
    %c16_44 = arith.constant 16 : index
    %c0_45 = arith.constant 0 : index
    %42 = vector.load %arg4[%c16_44, %c0_45] : memref<144x64xf32, #tpu.memory_space<vmem>>, vector<16x64xf32>
    %cst_46 = arith.constant dense<0.000000e+00> : vector<122x64xf32>
    %43 = tpu.matmul %41, %42, %cst_46 {dimension_numbers = #tpu.dot_dimension_numbers<[1], [0], [0], [1], [0, 0, 1, 1], [], []>} : vector<122x16xf32>, vector<16x64xf32>, vector<122x64xf32> -> vector<122x64xf32>
    %44 = arith.addf %40, %43 : vector<122x64xf32>
    %c2 = arith.constant 2 : index
    %c0_47 = arith.constant 0 : index
    %45 = vector.load %arg17[%c2, %c0_47] : memref<144x16xf32, #tpu.memory_space<vmem>>, vector<122x16xf32>
    %c32_48 = arith.constant 32 : index
    %c0_49 = arith.constant 0 : index
    %46 = vector.load %arg4[%c32_48, %c0_49] : memref<144x64xf32, #tpu.memory_space<vmem>>, vector<16x64xf32>
    %cst_50 = arith.constant dense<0.000000e+00> : vector<122x64xf32>
    %47 = tpu.matmul %45, %46, %cst_50 {dimension_numbers = #tpu.dot_dimension_numbers<[1], [0], [0], [1], [0, 0, 1, 1], [], []>} : vector<122x16xf32>, vector<16x64xf32>, vector<122x64xf32> -> vector<122x64xf32>
    %48 = arith.addf %44, %47 : vector<122x64xf32>
    %c10 = arith.constant 10 : index
    %c0_51 = arith.constant 0 : index
    %49 = vector.load %arg17[%c10, %c0_51] : memref<144x16xf32, #tpu.memory_space<vmem>>, vector<122x16xf32>
    %c48 = arith.constant 48 : index
    %c0_52 = arith.constant 0 : index
    %50 = vector.load %arg4[%c48, %c0_52] : memref<144x64xf32, #tpu.memory_space<vmem>>, vector<16x64xf32>
    %cst_53 = arith.constant dense<0.000000e+00> : vector<122x64xf32>
    %51 = tpu.matmul %49, %50, %cst_53 {dimension_numbers = #tpu.dot_dimension_numbers<[1], [0], [0], [1], [0, 0, 1, 1], [], []>} : vector<122x16xf32>, vector<16x64xf32>, vector<122x64xf32> -> vector<122x64xf32>
    %52 = arith.addf %48, %51 : vector<122x64xf32>
    %c11 = arith.constant 11 : index
    %c0_54 = arith.constant 0 : index
    %53 = vector.load %arg17[%c11, %c0_54] : memref<144x16xf32, #tpu.memory_space<vmem>>, vector<122x16xf32>
    %c64_55 = arith.constant 64 : index
    %c0_56 = arith.constant 0 : index
    %54 = vector.load %arg4[%c64_55, %c0_56] : memref<144x64xf32, #tpu.memory_space<vmem>>, vector<16x64xf32>
    %cst_57 = arith.constant dense<0.000000e+00> : vector<122x64xf32>
    %55 = tpu.matmul %53, %54, %cst_57 {dimension_numbers = #tpu.dot_dimension_numbers<[1], [0], [0], [1], [0, 0, 1, 1], [], []>} : vector<122x16xf32>, vector<16x64xf32>, vector<122x64xf32> -> vector<122x64xf32>
    %56 = arith.addf %52, %55 : vector<122x64xf32>
    %c12 = arith.constant 12 : index
    %c0_58 = arith.constant 0 : index
    %57 = vector.load %arg17[%c12, %c0_58] : memref<144x16xf32, #tpu.memory_space<vmem>>, vector<122x16xf32>
    %c80 = arith.constant 80 : index
    %c0_59 = arith.constant 0 : index
    %58 = vector.load %arg4[%c80, %c0_59] : memref<144x64xf32, #tpu.memory_space<vmem>>, vector<16x64xf32>
    %cst_60 = arith.constant dense<0.000000e+00> : vector<122x64xf32>
    %59 = tpu.matmul %57, %58, %cst_60 {dimension_numbers = #tpu.dot_dimension_numbers<[1], [0], [0], [1], [0, 0, 1, 1], [], []>} : vector<122x16xf32>, vector<16x64xf32>, vector<122x64xf32> -> vector<122x64xf32>
    %60 = arith.addf %56, %59 : vector<122x64xf32>
    %c20 = arith.constant 20 : index
    %c0_61 = arith.constant 0 : index
    %61 = vector.load %arg17[%c20, %c0_61] : memref<144x16xf32, #tpu.memory_space<vmem>>, vector<122x16xf32>
    %c96_62 = arith.constant 96 : index
    %c0_63 = arith.constant 0 : index
    %62 = vector.load %arg4[%c96_62, %c0_63] : memref<144x64xf32, #tpu.memory_space<vmem>>, vector<16x64xf32>
    %cst_64 = arith.constant dense<0.000000e+00> : vector<122x64xf32>
    %63 = tpu.matmul %61, %62, %cst_64 {dimension_numbers = #tpu.dot_dimension_numbers<[1], [0], [0], [1], [0, 0, 1, 1], [], []>} : vector<122x16xf32>, vector<16x64xf32>, vector<122x64xf32> -> vector<122x64xf32>
    %64 = arith.addf %60, %63 : vector<122x64xf32>
    %c21 = arith.constant 21 : index
    %c0_65 = arith.constant 0 : index
    %65 = vector.load %arg17[%c21, %c0_65] : memref<144x16xf32, #tpu.memory_space<vmem>>, vector<122x16xf32>
    %c112 = arith.constant 112 : index
    %c0_66 = arith.constant 0 : index
    %66 = vector.load %arg4[%c112, %c0_66] : memref<144x64xf32, #tpu.memory_space<vmem>>, vector<16x64xf32>
    %cst_67 = arith.constant dense<0.000000e+00> : vector<122x64xf32>
    %67 = tpu.matmul %65, %66, %cst_67 {dimension_numbers = #tpu.dot_dimension_numbers<[1], [0], [0], [1], [0, 0, 1, 1], [], []>} : vector<122x16xf32>, vector<16x64xf32>, vector<122x64xf32> -> vector<122x64xf32>
    %68 = arith.addf %64, %67 : vector<122x64xf32>
    %c22 = arith.constant 22 : index
    %c0_68 = arith.constant 0 : index
    %69 = vector.load %arg17[%c22, %c0_68] : memref<144x16xf32, #tpu.memory_space<vmem>>, vector<122x16xf32>
    %c128_69 = arith.constant 128 : index
    %c0_70 = arith.constant 0 : index
    %70 = vector.load %arg4[%c128_69, %c0_70] : memref<144x64xf32, #tpu.memory_space<vmem>>, vector<16x64xf32>
    %cst_71 = arith.constant dense<0.000000e+00> : vector<122x64xf32>
    %71 = tpu.matmul %69, %70, %cst_71 {dimension_numbers = #tpu.dot_dimension_numbers<[1], [0], [0], [1], [0, 0, 1, 1], [], []>} : vector<122x16xf32>, vector<16x64xf32>, vector<122x64xf32> -> vector<122x64xf32>
    %72 = arith.addf %68, %71 : vector<122x64xf32>
    %c0_72 = arith.constant 0 : index
    %c0_73 = arith.constant 0 : index
    %73 = vector.load %arg5[%c0_72, %c0_73] : memref<1x64xf32, #tpu.memory_space<vmem>>, vector<1x64xf32>
    %74 = vector.broadcast %73 : vector<1x64xf32> to vector<122x64xf32>
    %75 = arith.addf %72, %74 : vector<122x64xf32>
    %cst_74 = arith.constant 0.000000e+00 : f32
    %76 = vector.broadcast %cst_74 : f32 to vector<122x64xf32>
    %77 = arith.maximumf %75, %76 : vector<122x64xf32>
    %c0_75 = arith.constant 0 : index
    %c0_76 = arith.constant 0 : index
    %78 = vector.load %arg18[%c0_75, %c0_76] : memref<122x64xf32, #tpu.memory_space<vmem>>, vector<122x64xf32>
    tpu.vector_store %arg18[%c0_75, %c0_76], %77 {strides = array<i32>} : memref<122x64xf32, #tpu.memory_space<vmem>>, vector<122x64xf32>,
    %c0_77 = arith.constant 0 : index
    %c0_78 = arith.constant 0 : index
    %79 = vector.load %arg18[%c0_77, %c0_78] : memref<122x64xf32, #tpu.memory_space<vmem>>, vector<111x64xf32>
    %c1_79 = arith.constant 1 : index
    %c0_80 = arith.constant 0 : index
    %80 = vector.load %arg18[%c1_79, %c0_80] : memref<122x64xf32, #tpu.memory_space<vmem>>, vector<111x64xf32>
    %81 = arith.maximumf %79, %80 : vector<111x64xf32>
    %c10_81 = arith.constant 10 : index
    %c0_82 = arith.constant 0 : index
    %82 = vector.load %arg18[%c10_81, %c0_82] : memref<122x64xf32, #tpu.memory_space<vmem>>, vector<111x64xf32>
    %c11_83 = arith.constant 11 : index
    %c0_84 = arith.constant 0 : index
    %83 = vector.load %arg18[%c11_83, %c0_84] : memref<122x64xf32, #tpu.memory_space<vmem>>, vector<111x64xf32>
    %84 = arith.maximumf %82, %83 : vector<111x64xf32>
    %85 = arith.maximumf %81, %84 : vector<111x64xf32>
    %c0_85 = arith.constant 0 : index
    %c0_86 = arith.constant 0 : index
    %86 = vector.load %arg19[%c0_85, %c0_86] : memref<111x64xf32, #tpu.memory_space<vmem>>, vector<111x64xf32>
    tpu.vector_store %arg19[%c0_85, %c0_86], %85 {strides = array<i32>} : memref<111x64xf32, #tpu.memory_space<vmem>>, vector<111x64xf32>,
    %cst_87 = arith.constant 0.000000e+00 : f32
    %87 = vector.broadcast %cst_87 : f32 to vector<64x64xf32>
    %c0_88 = arith.constant 0 : index
    %c0_89 = arith.constant 0 : index
    %88 = vector.load %arg20[%c0_88, %c0_89] : memref<64x64xf32, #tpu.memory_space<vmem>>, vector<64x64xf32>
    tpu.vector_store %arg20[%c0_88, %c0_89], %87 {strides = array<i32>} : memref<64x64xf32, #tpu.memory_space<vmem>>, vector<64x64xf32>,
    %c22_90 = arith.constant 22 : index
    %c0_91 = arith.constant 0 : index
    %89 = tpu.strided_load %arg19[%c22_90, %c0_91] {strides = array<i32: 2, 1>} : memref<111x64xf32, #tpu.memory_space<vmem>>, vector<4x64xf32>
    %c21_92 = arith.constant 21 : index
    %c0_93 = arith.constant 0 : index
    %90 = vector.load %arg20[%c21_92, %c0_93] : memref<64x64xf32, #tpu.memory_space<vmem>>, vector<4x64xf32>
    tpu.vector_store %arg20[%c21_92, %c0_93], %89 {strides = array<i32>} : memref<64x64xf32, #tpu.memory_space<vmem>>, vector<4x64xf32>,
    %c42 = arith.constant 42 : index
    %c0_94 = arith.constant 0 : index
    %91 = tpu.strided_load %arg19[%c42, %c0_94] {strides = array<i32: 2, 1>} : memref<111x64xf32, #tpu.memory_space<vmem>>, vector<4x64xf32>
    %c27 = arith.constant 27 : index
    %c0_95 = arith.constant 0 : index
    %92 = vector.load %arg20[%c27, %c0_95] : memref<64x64xf32, #tpu.memory_space<vmem>>, vector<4x64xf32>
    tpu.vector_store %arg20[%c27, %c0_95], %91 {strides = array<i32>} : memref<64x64xf32, #tpu.memory_space<vmem>>, vector<4x64xf32>,
    %c62 = arith.constant 62 : index
    %c0_96 = arith.constant 0 : index
    %93 = tpu.strided_load %arg19[%c62, %c0_96] {strides = array<i32: 2, 1>} : memref<111x64xf32, #tpu.memory_space<vmem>>, vector<4x64xf32>
    %c33_97 = arith.constant 33 : index
    %c0_98 = arith.constant 0 : index
    %94 = vector.load %arg20[%c33_97, %c0_98] : memref<64x64xf32, #tpu.memory_space<vmem>>, vector<4x64xf32>
    tpu.vector_store %arg20[%c33_97, %c0_98], %93 {strides = array<i32>} : memref<64x64xf32, #tpu.memory_space<vmem>>, vector<4x64xf32>,
    %c82 = arith.constant 82 : index
    %c0_99 = arith.constant 0 : index
    %95 = tpu.strided_load %arg19[%c82, %c0_99] {strides = array<i32: 2, 1>} : memref<111x64xf32, #tpu.memory_space<vmem>>, vector<4x64xf32>
    %c39 = arith.constant 39 : index
    %c0_100 = arith.constant 0 : index
    %96 = vector.load %arg20[%c39, %c0_100] : memref<64x64xf32, #tpu.memory_space<vmem>>, vector<4x64xf32>
    tpu.vector_store %arg20[%c39, %c0_100], %95 {strides = array<i32>} : memref<64x64xf32, #tpu.memory_space<vmem>>, vector<4x64xf32>,
    %cst_101 = arith.constant 0.000000e+00 : f32
    %97 = vector.broadcast %cst_101 : f32 to vector<50x256xf32>
    %c0_102 = arith.constant 0 : index
    %c0_103 = arith.constant 0 : index
    %98 = vector.load %arg20[%c0_102, %c0_103] : memref<64x64xf32, #tpu.memory_space<vmem>>, vector<50x64xf32>
    %c0_104 = arith.constant 0 : index
    %c0_105 = arith.constant 0 : index
    %99 = vector.load %arg6[%c0_104, %c0_105] : memref<576x256xf32, #tpu.memory_space<vmem>>, vector<64x256xf32>
    %cst_106 = arith.constant dense<0.000000e+00> : vector<50x256xf32>
    %100 = tpu.matmul %98, %99, %cst_106 {dimension_numbers = #tpu.dot_dimension_numbers<[1], [0], [0], [1], [0, 0, 1, 1], [], []>} : vector<50x64xf32>, vector<64x256xf32>, vector<50x256xf32> -> vector<50x256xf32>
    %101 = arith.addf %97, %100 : vector<50x256xf32>
    %c1_107 = arith.constant 1 : index
    %c0_108 = arith.constant 0 : index
    %102 = vector.load %arg20[%c1_107, %c0_108] : memref<64x64xf32, #tpu.memory_space<vmem>>, vector<50x64xf32>
    %c64_109 = arith.constant 64 : index
    %c0_110 = arith.constant 0 : index
    %103 = vector.load %arg6[%c64_109, %c0_110] : memref<576x256xf32, #tpu.memory_space<vmem>>, vector<64x256xf32>
    %cst_111 = arith.constant dense<0.000000e+00> : vector<50x256xf32>
    %104 = tpu.matmul %102, %103, %cst_111 {dimension_numbers = #tpu.dot_dimension_numbers<[1], [0], [0], [1], [0, 0, 1, 1], [], []>} : vector<50x64xf32>, vector<64x256xf32>, vector<50x256xf32> -> vector<50x256xf32>
    %105 = arith.addf %101, %104 : vector<50x256xf32>
    %c2_112 = arith.constant 2 : index
    %c0_113 = arith.constant 0 : index
    %106 = vector.load %arg20[%c2_112, %c0_113] : memref<64x64xf32, #tpu.memory_space<vmem>>, vector<50x64xf32>
    %c128_114 = arith.constant 128 : index
    %c0_115 = arith.constant 0 : index
    %107 = vector.load %arg6[%c128_114, %c0_115] : memref<576x256xf32, #tpu.memory_space<vmem>>, vector<64x256xf32>
    %cst_116 = arith.constant dense<0.000000e+00> : vector<50x256xf32>
    %108 = tpu.matmul %106, %107, %cst_116 {dimension_numbers = #tpu.dot_dimension_numbers<[1], [0], [0], [1], [0, 0, 1, 1], [], []>} : vector<50x64xf32>, vector<64x256xf32>, vector<50x256xf32> -> vector<50x256xf32>
    %109 = arith.addf %105, %108 : vector<50x256xf32>
    %c6 = arith.constant 6 : index
    %c0_117 = arith.constant 0 : index
    %110 = vector.load %arg20[%c6, %c0_117] : memref<64x64xf32, #tpu.memory_space<vmem>>, vector<50x64xf32>
    %c192_118 = arith.constant 192 : index
    %c0_119 = arith.constant 0 : index
    %111 = vector.load %arg6[%c192_118, %c0_119] : memref<576x256xf32, #tpu.memory_space<vmem>>, vector<64x256xf32>
    %cst_120 = arith.constant dense<0.000000e+00> : vector<50x256xf32>
    %112 = tpu.matmul %110, %111, %cst_120 {dimension_numbers = #tpu.dot_dimension_numbers<[1], [0], [0], [1], [0, 0, 1, 1], [], []>} : vector<50x64xf32>, vector<64x256xf32>, vector<50x256xf32> -> vector<50x256xf32>
    %113 = arith.addf %109, %112 : vector<50x256xf32>
    %c7 = arith.constant 7 : index
    %c0_121 = arith.constant 0 : index
    %114 = vector.load %arg20[%c7, %c0_121] : memref<64x64xf32, #tpu.memory_space<vmem>>, vector<50x64xf32>
    %c256 = arith.constant 256 : index
    %c0_122 = arith.constant 0 : index
    %115 = vector.load %arg6[%c256, %c0_122] : memref<576x256xf32, #tpu.memory_space<vmem>>, vector<64x256xf32>
    %cst_123 = arith.constant dense<0.000000e+00> : vector<50x256xf32>
    %116 = tpu.matmul %114, %115, %cst_123 {dimension_numbers = #tpu.dot_dimension_numbers<[1], [0], [0], [1], [0, 0, 1, 1], [], []>} : vector<50x64xf32>, vector<64x256xf32>, vector<50x256xf32> -> vector<50x256xf32>
    %117 = arith.addf %113, %116 : vector<50x256xf32>
    %c8 = arith.constant 8 : index
    %c0_124 = arith.constant 0 : index
    %118 = vector.load %arg20[%c8, %c0_124] : memref<64x64xf32, #tpu.memory_space<vmem>>, vector<50x64xf32>
    %c320 = arith.constant 320 : index
    %c0_125 = arith.constant 0 : index
    %119 = vector.load %arg6[%c320, %c0_125] : memref<576x256xf32, #tpu.memory_space<vmem>>, vector<64x256xf32>
    %cst_126 = arith.constant dense<0.000000e+00> : vector<50x256xf32>
    %120 = tpu.matmul %118, %119, %cst_126 {dimension_numbers = #tpu.dot_dimension_numbers<[1], [0], [0], [1], [0, 0, 1, 1], [], []>} : vector<50x64xf32>, vector<64x256xf32>, vector<50x256xf32> -> vector<50x256xf32>
    %121 = arith.addf %117, %120 : vector<50x256xf32>
    %c12_127 = arith.constant 12 : index
    %c0_128 = arith.constant 0 : index
    %122 = vector.load %arg20[%c12_127, %c0_128] : memref<64x64xf32, #tpu.memory_space<vmem>>, vector<50x64xf32>
    %c384 = arith.constant 384 : index
    %c0_129 = arith.constant 0 : index
    %123 = vector.load %arg6[%c384, %c0_129] : memref<576x256xf32, #tpu.memory_space<vmem>>, vector<64x256xf32>
    %cst_130 = arith.constant dense<0.000000e+00> : vector<50x256xf32>
    %124 = tpu.matmul %122, %123, %cst_130 {dimension_numbers = #tpu.dot_dimension_numbers<[1], [0], [0], [1], [0, 0, 1, 1], [], []>} : vector<50x64xf32>, vector<64x256xf32>, vector<50x256xf32> -> vector<50x256xf32>
    %125 = arith.addf %121, %124 : vector<50x256xf32>
    %c13 = arith.constant 13 : index
    %c0_131 = arith.constant 0 : index
    %126 = vector.load %arg20[%c13, %c0_131] : memref<64x64xf32, #tpu.memory_space<vmem>>, vector<50x64xf32>
    %c448 = arith.constant 448 : index
    %c0_132 = arith.constant 0 : index
    %127 = vector.load %arg6[%c448, %c0_132] : memref<576x256xf32, #tpu.memory_space<vmem>>, vector<64x256xf32>
    %cst_133 = arith.constant dense<0.000000e+00> : vector<50x256xf32>
    %128 = tpu.matmul %126, %127, %cst_133 {dimension_numbers = #tpu.dot_dimension_numbers<[1], [0], [0], [1], [0, 0, 1, 1], [], []>} : vector<50x64xf32>, vector<64x256xf32>, vector<50x256xf32> -> vector<50x256xf32>
    %129 = arith.addf %125, %128 : vector<50x256xf32>
    %c14 = arith.constant 14 : index
    %c0_134 = arith.constant 0 : index
    %130 = vector.load %arg20[%c14, %c0_134] : memref<64x64xf32, #tpu.memory_space<vmem>>, vector<50x64xf32>
    %c512 = arith.constant 512 : index
    %c0_135 = arith.constant 0 : index
    %131 = vector.load %arg6[%c512, %c0_135] : memref<576x256xf32, #tpu.memory_space<vmem>>, vector<64x256xf32>
    %cst_136 = arith.constant dense<0.000000e+00> : vector<50x256xf32>
    %132 = tpu.matmul %130, %131, %cst_136 {dimension_numbers = #tpu.dot_dimension_numbers<[1], [0], [0], [1], [0, 0, 1, 1], [], []>} : vector<50x64xf32>, vector<64x256xf32>, vector<50x256xf32> -> vector<50x256xf32>
    %133 = arith.addf %129, %132 : vector<50x256xf32>
    %c0_137 = arith.constant 0 : index
    %c0_138 = arith.constant 0 : index
    %134 = vector.load %arg7[%c0_137, %c0_138] : memref<1x256xf32, #tpu.memory_space<vmem>>, vector<1x256xf32>
    %135 = vector.broadcast %134 : vector<1x256xf32> to vector<50x256xf32>
    %136 = arith.addf %133, %135 : vector<50x256xf32>
    %cst_139 = arith.constant 0.000000e+00 : f32
    %137 = vector.broadcast %cst_139 : f32 to vector<50x256xf32>
    %138 = arith.maximumf %136, %137 : vector<50x256xf32>
    %c0_140 = arith.constant 0 : index
    %c0_141 = arith.constant 0 : index
    %139 = vector.load %arg21[%c0_140, %c0_141] : memref<50x256xf32, #tpu.memory_space<vmem>>, vector<50x256xf32>
    tpu.vector_store %arg21[%c0_140, %c0_141], %138 {strides = array<i32>} : memref<50x256xf32, #tpu.memory_space<vmem>>, vector<50x256xf32>,
    %c7_142 = arith.constant 7 : index
    %c0_143 = arith.constant 0 : index
    %140 = vector.load %arg21[%c7_142, %c0_143] : memref<50x256xf32, #tpu.memory_space<vmem>>, vector<36x256xf32>
    %c0_144 = arith.constant 0 : index
    %c0_145 = arith.constant 0 : index
    %141 = vector.load %arg22[%c0_144, %c0_145] : memref<36x256xf32, #tpu.memory_space<vmem>>, vector<36x256xf32>
    tpu.vector_store %arg22[%c0_144, %c0_145], %140 {strides = array<i32>} : memref<36x256xf32, #tpu.memory_space<vmem>>, vector<36x256xf32>,
    %c0_146 = arith.constant 0 : index
    %c0_147 = arith.constant 0 : index
    %142 = vector.load %arg22[%c0_146, %c0_147] : memref<36x256xf32, #tpu.memory_space<vmem>>, vector<36x256xf32>
    %c0_148 = arith.constant 0 : index
    %c0_149 = arith.constant 0 : index
    %143 = vector.load %arg8[%c0_148, %c0_149] : memref<64x36xf32, #tpu.memory_space<vmem>>, vector<64x36xf32>
    %cst_150 = arith.constant dense<0.000000e+00> : vector<64x256xf32>
    %144 = tpu.matmul %143, %142, %cst_150 {dimension_numbers = #tpu.dot_dimension_numbers<[1], [0], [0], [1], [0, 0, 1, 1], [], []>} : vector<64x36xf32>, vector<36x256xf32>, vector<64x256xf32> -> vector<64x256xf32>
    %c0_151 = arith.constant 0 : index
    %c0_152 = arith.constant 0 : index
    %145 = vector.load %arg9[%c0_151, %c0_152] : memref<64x1xf32, #tpu.memory_space<vmem>>, vector<64x1xf32>
    %146 = vector.broadcast %145 : vector<64x1xf32> to vector<64x256xf32>
    %147 = arith.addf %144, %146 : vector<64x256xf32>
    %cst_153 = arith.constant 0.000000e+00 : f32
    %148 = vector.broadcast %cst_153 : f32 to vector<64x256xf32>
    %149 = arith.maximumf %147, %148 : vector<64x256xf32>
    %c0_154 = arith.constant 0 : index
    %c0_155 = arith.constant 0 : index
    %150 = vector.load %arg10[%c0_154, %c0_155] : memref<256x64xf32, #tpu.memory_space<vmem>>, vector<256x64xf32>
    %cst_156 = arith.constant dense<0.000000e+00> : vector<256x256xf32>
    %151 = tpu.matmul %150, %149, %cst_156 {dimension_numbers = #tpu.dot_dimension_numbers<[1], [0], [0], [1], [0, 0, 1, 1], [], []>} : vector<256x64xf32>, vector<64x256xf32>, vector<256x256xf32> -> vector<256x256xf32>
    %c0_157 = arith.constant 0 : index
    %c0_158 = arith.constant 0 : index
    %152 = vector.load %arg11[%c0_157, %c0_158] : memref<256x1xf32, #tpu.memory_space<vmem>>, vector<256x1xf32>
    %153 = vector.broadcast %152 : vector<256x1xf32> to vector<256x256xf32>
    %154 = arith.addf %151, %153 : vector<256x256xf32>
    %cst_159 = arith.constant 0.000000e+00 : f32
    %155 = vector.broadcast %cst_159 : f32 to vector<256x256xf32>
    %156 = arith.maximumf %154, %155 : vector<256x256xf32>
    %c0_160 = arith.constant 0 : index
    %c0_161 = arith.constant 0 : index
    %157 = vector.load %arg12[%c0_160, %c0_161] : memref<26x256xf32, #tpu.memory_space<vmem>>, vector<26x256xf32>
    %cst_162 = arith.constant dense<0.000000e+00> : vector<26x256xf32>
    %158 = tpu.matmul %157, %156, %cst_162 {dimension_numbers = #tpu.dot_dimension_numbers<[1], [0], [0], [1], [0, 0, 1, 1], [], []>} : vector<26x256xf32>, vector<256x256xf32>, vector<26x256xf32> -> vector<26x256xf32>
    %c0_163 = arith.constant 0 : index
    %c0_164 = arith.constant 0 : index
    %159 = vector.load %arg13[%c0_163, %c0_164] : memref<26x1xf32, #tpu.memory_space<vmem>>, vector<26x1xf32>
    %160 = vector.broadcast %159 : vector<26x1xf32> to vector<26x256xf32>
    %161 = arith.addf %158, %160 : vector<26x256xf32>
    %cst_165 = arith.constant dense<0xFF800000> : vector<256xf32>
    %162 = vector.multi_reduction <maximumf>, %161, %cst_165 [0] : vector<26x256xf32> to vector<256xf32>
    %163 = vector.shape_cast %162 : vector<256xf32> to vector<1x256xf32>
    %164 = vector.broadcast %163 : vector<1x256xf32> to vector<26x256xf32>
    %165 = arith.subf %161, %164 : vector<26x256xf32>
    %166 = math.exp %165 : vector<26x256xf32>
    %cst_166 = arith.constant dense<0.000000e+00> : vector<256xf32>
    %167 = vector.multi_reduction <add>, %166, %cst_166 [0] : vector<26x256xf32> to vector<256xf32>
    %168 = vector.shape_cast %167 : vector<256xf32> to vector<1x256xf32>
    %169 = vector.broadcast %168 : vector<1x256xf32> to vector<26x256xf32>
    %170 = arith.divf %166, %169 : vector<26x256xf32>
    %c0_167 = arith.constant 0 : index
    %c0_168 = arith.constant 0 : index
    %c0_169 = arith.constant 0 : index
    %171 = vector.load %arg14[%c0_167, %c0_168, %c0_169] : memref<1x26x256xf32, #tpu.memory_space<vmem>>, vector<1x26x256xf32>
    %172 = vector.shape_cast %171 : vector<1x26x256xf32> to vector<26x256xf32>
    %173 = vector.shape_cast %170 : vector<26x256xf32> to vector<1x26x256xf32>
    tpu.vector_store %arg14[%c0_167, %c0_168, %c0_169], %173 {strides = array<i32>} : memref<1x26x256xf32, #tpu.memory_space<vmem>>, vector<1x26x256xf32>,
    return
  }
  func.func @transform_0(%arg0: i32) -> (i32, i32, i32) {
    %c0_i32 = arith.constant 0 : i32
    %c0_i32_0 = arith.constant 0 : i32
    %c0_i32_1 = arith.constant 0 : i32
    return %arg0, %c0_i32, %c0_i32_0 : i32, i32, i32
  }
  func.func @transform_1(%arg0: i32) -> (i32, i32) {
    %c0_i32 = arith.constant 0 : i32
    %c0_i32_0 = arith.constant 0 : i32
    %c0_i32_1 = arith.constant 0 : i32
    return %c0_i32, %c0_i32_0 : i32, i32
  }
  func.func @transform_2(%arg0: i32) -> (i32, i32) {
    %c0_i32 = arith.constant 0 : i32
    %c0_i32_0 = arith.constant 0 : i32
    %c0_i32_1 = arith.constant 0 : i32
    return %c0_i32, %c0_i32_0 : i32, i32
  }
  func.func @transform_3(%arg0: i32) -> (i32, i32) {
    %c0_i32 = arith.constant 0 : i32
    %c0_i32_0 = arith.constant 0 : i32
    %c0_i32_1 = arith.constant 0 : i32
    return %c0_i32, %c0_i32_0 : i32, i32
  }
  func.func @transform_4(%arg0: i32) -> (i32, i32) {
    %c0_i32 = arith.constant 0 : i32
    %c0_i32_0 = arith.constant 0 : i32
    %c0_i32_1 = arith.constant 0 : i32
    return %c0_i32, %c0_i32_0 : i32, i32
  }
  func.func @transform_5(%arg0: i32) -> (i32, i32) {
    %c0_i32 = arith.constant 0 : i32
    %c0_i32_0 = arith.constant 0 : i32
    %c0_i32_1 = arith.constant 0 : i32
    return %c0_i32, %c0_i32_0 : i32, i32
  }
  func.func @transform_6(%arg0: i32) -> (i32, i32) {
    %c0_i32 = arith.constant 0 : i32
    %c0_i32_0 = arith.constant 0 : i32
    %c0_i32_1 = arith.constant 0 : i32
    return %c0_i32, %c0_i32_0 : i32, i32
  }
  func.func @transform_7(%arg0: i32) -> (i32, i32) {
    %c0_i32 = arith.constant 0 : i32
    %c0_i32_0 = arith.constant 0 : i32
    %c0_i32_1 = arith.constant 0 : i32
    return %c0_i32, %c0_i32_0 : i32, i32
  }
  func.func @transform_8(%arg0: i32) -> (i32, i32) {
    %c0_i32 = arith.constant 0 : i32
    %c0_i32_0 = arith.constant 0 : i32
    %c0_i32_1 = arith.constant 0 : i32
    return %c0_i32, %c0_i32_0 : i32, i32
  }
  func.func @transform_9(%arg0: i32) -> (i32, i32) {
    %c0_i32 = arith.constant 0 : i32
    %c0_i32_0 = arith.constant 0 : i32
    %c0_i32_1 = arith.constant 0 : i32
    return %c0_i32, %c0_i32_0 : i32, i32
  }
  func.func @transform_10(%arg0: i32) -> (i32, i32) {
    %c0_i32 = arith.constant 0 : i32
    %c0_i32_0 = arith.constant 0 : i32
    %c0_i32_1 = arith.constant 0 : i32
    return %c0_i32, %c0_i32_0 : i32, i32
  }
  func.func @transform_11(%arg0: i32) -> (i32, i32) {
    %c0_i32 = arith.constant 0 : i32
    %c0_i32_0 = arith.constant 0 : i32
    %c0_i32_1 = arith.constant 0 : i32
    return %c0_i32, %c0_i32_0 : i32, i32
  }
  func.func @transform_12(%arg0: i32) -> (i32, i32) {
    %c0_i32 = arith.constant 0 : i32
    %c0_i32_0 = arith.constant 0 : i32
    %c0_i32_1 = arith.constant 0 : i32
    return %c0_i32, %c0_i32_0 : i32, i32
  }
  func.func @transform_13(%arg0: i32) -> (i32, i32, i32) {
    %c0_i32 = arith.constant 0 : i32
    %c0_i32_0 = arith.constant 0 : i32
    %c0_i32_1 = arith.constant 0 : i32
    return %arg0, %c0_i32, %c0_i32_0 : i32, i32, i32
  }
}

</mosaic_0001>

<llo_original>
// kernel: cnn_forward.1
$region0: #{cnn_forward.1}
  #allocation0 [shape = 'u32[]', space=smem, size = 0x4, offset = 0x4, fixed_abs, tag = 'smem constant byte address 0x4 - core index']
  #allocation1 [shape = 'u32[144,128]{1,0:T(1,128)}', space=vmem, size = 0x12000, scoped, tag = 'internal scratch']
  #allocation2 [shape = 'f32[256,16]{1,0:T(8,128)}', space=vmem, size = 0x20000, scoped, tag = 'scratch operand']
  #allocation3 [shape = 'f32[239,16]{1,0:T(8,128)}', space=vmem, size = 0x1e000, scoped, tag = 'scratch operand']
  #allocation4 [shape = 'f32[144,16]{1,0:T(8,128)}', space=vmem, size = 0x12000, scoped, tag = 'scratch operand']
  #allocation5 [shape = 'f32[122,64]{1,0:T(8,128)}', space=vmem, size = 0x10000, scoped, tag = 'scratch operand']
  #allocation6 [shape = 'f32[111,64]{1,0:T(8,128)}', space=vmem, size = 0xe000, scoped, tag = 'scratch operand']
  #allocation7 [shape = 'f32[64,64]{1,0:T(8,128)}', space=vmem, size = 0x8000, scoped, tag = 'scratch operand']
  #allocation8 [shape = 'f32[50,256]{1,0:T(8,128)}', space=vmem, size = 0xe000, scoped, tag = 'scratch operand']
  #allocation9 [shape = 'f32[36,256]{1,0:T(8,128)}', space=vmem, size = 0xa000, scoped, tag = 'scratch operand']
  %s0 = inlined_call_operand.vmem [shape: f32[2,256,9], index: 0, kind: input, shape index: {}]
  %s1 = inlined_call_operand.vmem [shape: f32[9,16], index: 1, kind: input, shape index: {}]
  %s2 = inlined_call_operand.vmem [shape: f32[1,16], index: 2, kind: input, shape index: {}]
  %s3 = inlined_call_operand.vmem [shape: f32[144,64], index: 3, kind: input, shape index: {}]
  %s4 = inlined_call_operand.vmem [shape: f32[1,64], index: 4, kind: input, shape index: {}]
  %s5 = inlined_call_operand.vmem [shape: f32[576,256], index: 5, kind: input, shape index: {}]
  %s6 = inlined_call_operand.vmem [shape: f32[1,256], index: 6, kind: input, shape index: {}]
  %s7 = inlined_call_operand.vmem [shape: f32[64,36], index: 7, kind: input, shape index: {}]
  %s8 = inlined_call_operand.vmem [shape: f32[64,1], index: 8, kind: input, shape index: {}]
  %s9 = inlined_call_operand.vmem [shape: f32[256,64], index: 9, kind: input, shape index: {}]
  %s10 = inlined_call_operand.vmem [shape: f32[256,1], index: 10, kind: input, shape index: {}]
  %s11 = inlined_call_operand.vmem [shape: f32[26,256], index: 11, kind: input, shape index: {}]
  %s12 = inlined_call_operand.vmem [shape: f32[26,1], index: 12, kind: input, shape index: {}]
  %s13 = inlined_call_operand.vmem [shape: f32[2,26,256], index: 13, kind: output, shape index: {}]
  %s14 = sld [smem:[#allocation0]]
  $region85: #{cnn_forward.1} parent=0
    _
  %s16 = ssub.s32 1, %s14
  %s17 = scalar_select 0, %s16, %s14
  loop: start=0, step=1, limit=4
  $region2: #{cnn_forward.1} parent=0 // loop_pre_header
    _
  $region3: #{cnn_forward.1} parent=0 // loop_header
    %s19 = sphi 0, %s23
    %p20 = scmp.ge.s32.totalorder %s19, 4
    %s29 = sphi 0, %s31
    %s32 = sphi 0, %s29
    %s33 = sphi 0, %s32
    %s49 = sphi 0, %s33
    %s53 = sphi 0, %s53
    %s55 = sphi 0, %s53
    %s56 = sphi 0, %s55
    %s70 = sphi 0, %s56
    %s74 = sphi 0, %s74
    %s76 = sphi 0, %s74
    %s77 = sphi 0, %s76
    %s91 = sphi 0, %s77
    %s95 = sphi 0, %s95
    %s97 = sphi 0, %s95
    %s98 = sphi 0, %s97
    %s112 = sphi 0, %s98
    %s116 = sphi 0, %s116
    %s118 = sphi 0, %s116
    %s119 = sphi 0, %s118
    %s133 = sphi 0, %s119
    %s137 = sphi 0, %s137
    %s139 = sphi 0, %s137
    %s140 = sphi 0, %s139
    %s154 = sphi 0, %s140
    %s158 = sphi 0, %s158
    %s160 = sphi 0, %s158
    %s161 = sphi 0, %s160
    %s175 = sphi 0, %s161
    %s179 = sphi 0, %s179
    %s181 = sphi 0, %s179
    %s182 = sphi 0, %s181
    %s196 = sphi 0, %s182
    %s200 = sphi 0, %s200
    %s202 = sphi 0, %s200
    %s203 = sphi 0, %s202
    %s217 = sphi 0, %s203
    %s221 = sphi 0, %s221
    %s223 = sphi 0, %s221
    %s224 = sphi 0, %s223
    %s238 = sphi 0, %s224
    %s242 = sphi 0, %s242
    %s244 = sphi 0, %s242
    %s245 = sphi 0, %s244
    %s259 = sphi 0, %s245
    %s263 = sphi 0, %s263
    %s265 = sphi 0, %s263
    %s266 = sphi 0, %s265
    %s280 = sphi 0, %s266
    %s284 = sphi 0, %s284
    %s286 = sphi 0, %s284
    %s287 = sphi 0, %s286
    %s301 = sphi 0, %s287
    %s307 = sphi 0, %s309
    %s310 = sphi 0, %s307
    %s311 = sphi 0, %s310
    %s327 = sphi 0, %s311
  $region4: #{cnn_forward.1} parent=0 // loop_header_branch
    %22 = sbr.rel (%p20) target = $region8
  $region5: #{cnn_forward.1} parent=0 // loop_body
    %s24 = ssub.s32 %s19, 1
    %s25 = ssub.s32 %s19, 2
    %s26 = sadd.s32 %s19, 1
    %s27 = ssub.s32 %s19, %s26
    %p28 = scmp.eq.s32.totalorder %s27, 0
    %s30 = sadd.s32 %s29, 1
    %s31 = scalar_select %p28, %s29, %s30
    %p34 = pneg %p28
    %p35 = scmp.eq.s32.totalorder %s19, 1
    %p36 = por %p34, %p35
    %p37 = scmp.ne.s32.totalorder %s29, %s32
    %p38 = scmp.eq.s32.totalorder %s19, 0
    %p39 = por %p37, %p38
    %p40 = scmp.ne.s32.totalorder %s29, %s32
    %p41 = scmp.eq.s32.totalorder %s24, 1
    %p42 = por %p40, %p41
    %p43 = scmp.ne.s32.totalorder %s32, %s33
    %p44 = scmp.eq.s32.totalorder %s24, 0
    %p45 = por %p43, %p44
    %p46 = scmp.ne.s32.totalorder %s32, %s33
    %p47 = scmp.eq.s32.totalorder %s25, 1
    %p48 = por %p46, %p47
    %p50 = scmp.ne.s32.totalorder %s33, %s49
    %p51 = scmp.eq.s32.totalorder %s25, 0
    %p52 = por %p50, %p51
    %s54 = sadd.s32 %s53, 1
    %p57 = scmp.eq.s32.totalorder %s19, 1
    %p58 = scmp.ne.s32.totalorder %s53, %s55
    %p59 = scmp.eq.s32.totalorder %s19, 0
    %p60 = por %p58, %p59
    %p61 = scmp.ne.s32.totalorder %s53, %s55
    %p62 = scmp.eq.s32.totalorder %s24, 1
    %p63 = por %p61, %p62
    %p64 = scmp.ne.s32.totalorder %s55, %s56
    %p65 = scmp.eq.s32.totalorder %s24, 0
    %p66 = por %p64, %p65
    %p67 = scmp.ne.s32.totalorder %s55, %s56
    %p68 = scmp.eq.s32.totalorder %s25, 1
    %p69 = por %p67, %p68
    %p71 = scmp.ne.s32.totalorder %s56, %s70
    %p72 = scmp.eq.s32.totalorder %s25, 0
    %p73 = por %p71, %p72
    %s75 = sadd.s32 %s74, 1
    %p78 = scmp.eq.s32.totalorder %s19, 1
    %p79 = scmp.ne.s32.totalorder %s74, %s76
    %p80 = scmp.eq.s32.totalorder %s19, 0
    %p81 = por %p79, %p80
    %p82 = scmp.ne.s32.totalorder %s74, %s76
    %p83 = scmp.eq.s32.totalorder %s24, 1
    %p84 = por %p82, %p83
    %p85 = scmp.ne.s32.totalorder %s76, %s77
    %p86 = scmp.eq.s32.totalorder %s24, 0
    %p87 = por %p85, %p86
    %p88 = scmp.ne.s32.totalorder %s76, %s77
    %p89 = scmp.eq.s32.totalorder %s25, 1
    %p90 = por %p88, %p89
    %p92 = scmp.ne.s32.totalorder %s77, %s91
    %p93 = scmp.eq.s32.totalorder %s25, 0
    %p94 = por %p92, %p93
    %s96 = sadd.s32 %s95, 1
    %p99 = scmp.eq.s32.totalorder %s19, 1
    %p100 = scmp.ne.s32.totalorder %s95, %s97
    %p101 = scmp.eq.s32.totalorder %s19, 0
    %p102 = por %p100, %p101
    %p103 = scmp.ne.s32.totalorder %s95, %s97
    %p104 = scmp.eq.s32.totalorder %s24, 1
    %p105 = por %p103, %p104
    %p106 = scmp.ne.s32.totalorder %s97, %s98
    %p107 = scmp.eq.s32.totalorder %s24, 0
    %p108 = por %p106, %p107
    %p109 = scmp.ne.s32.totalorder %s97, %s98
    %p110 = scmp.eq.s32.totalorder %s25, 1
    %p111 = por %p109, %p110
    %p113 = scmp.ne.s32.totalorder %s98, %s112
    %p114 = scmp.eq.s32.totalorder %s25, 0
    %p115 = por %p113, %p114
    %s117 = sadd.s32 %s116, 1
    %p120 = scmp.eq.s32.totalorder %s19, 1
    %p121 = scmp.ne.s32.totalorder %s116, %s118
    %p122 = scmp.eq.s32.totalorder %s19, 0
    %p123 = por %p121, %p122
    %p124 = scmp.ne.s32.totalorder %s116, %s118
    %p125 = scmp.eq.s32.totalorder %s24, 1
    %p126 = por %p124, %p125
    %p127 = scmp.ne.s32.totalorder %s118, %s119
    %p128 = scmp.eq.s32.totalorder %s24, 0
    %p129 = por %p127, %p128
    %p130 = scmp.ne.s32.totalorder %s118, %s119
    %p131 = scmp.eq.s32.totalorder %s25, 1
    %p132 = por %p130, %p131
    %p134 = scmp.ne.s32.totalorder %s119, %s133
    %p135 = scmp.eq.s32.totalorder %s25, 0
    %p136 = por %p134, %p135
    %s138 = sadd.s32 %s137, 1
    %p141 = scmp.eq.s32.totalorder %s19, 1
    %p142 = scmp.ne.s32.totalorder %s137, %s139
    %p143 = scmp.eq.s32.totalorder %s19, 0
    %p144 = por %p142, %p143
    %p145 = scmp.ne.s32.totalorder %s137, %s139
    %p146 = scmp.eq.s32.totalorder %s24, 1
    %p147 = por %p145, %p146
    %p148 = scmp.ne.s32.totalorder %s139, %s140
    %p149 = scmp.eq.s32.totalorder %s24, 0
    %p150 = por %p148, %p149
    %p151 = scmp.ne.s32.totalorder %s139, %s140
    %p152 = scmp.eq.s32.totalorder %s25, 1
    %p153 = por %p151, %p152
    %p155 = scmp.ne.s32.totalorder %s140, %s154
    %p156 = scmp.eq.s32.totalorder %s25, 0
    %p157 = por %p155, %p156
    %s159 = sadd.s32 %s158, 1
    %p162 = scmp.eq.s32.totalorder %s19, 1
    %p163 = scmp.ne.s32.totalorder %s158, %s160
    %p164 = scmp.eq.s32.totalorder %s19, 0
    %p165 = por %p163, %p164
    %p166 = scmp.ne.s32.totalorder %s158, %s160
    %p167 = scmp.eq.s32.totalorder %s24, 1
    %p168 = por %p166, %p167
    %p169 = scmp.ne.s32.totalorder %s160, %s161
    %p170 = scmp.eq.s32.totalorder %s24, 0
    %p171 = por %p169, %p170
    %p172 = scmp.ne.s32.totalorder %s160, %s161
    %p173 = scmp.eq.s32.totalorder %s25, 1
    %p174 = por %p172, %p173
    %p176 = scmp.ne.s32.totalorder %s161, %s175
    %p177 = scmp.eq.s32.totalorder %s25, 0
    %p178 = por %p176, %p177
    %s180 = sadd.s32 %s179, 1
    %p183 = scmp.eq.s32.totalorder %s19, 1
    %p184 = scmp.ne.s32.totalorder %s179, %s181
    %p185 = scmp.eq.s32.totalorder %s19, 0
    %p186 = por %p184, %p185
    %p187 = scmp.ne.s32.totalorder %s179, %s181
    %p188 = scmp.eq.s32.totalorder %s24, 1
    %p189 = por %p187, %p188
    %p190 = scmp.ne.s32.totalorder %s181, %s182
    %p191 = scmp.eq.s32.totalorder %s24, 0
    %p192 = por %p190, %p191
    %p193 = scmp.ne.s32.totalorder %s181, %s182
    %p194 = scmp.eq.s32.totalorder %s25, 1
    %p195 = por %p193, %p194
    %p197 = scmp.ne.s32.totalorder %s182, %s196
    %p198 = scmp.eq.s32.totalorder %s25, 0
    %p199 = por %p197, %p198
    %s201 = sadd.s32 %s200, 1
    %p204 = scmp.eq.s32.totalorder %s19, 1
    %p205 = scmp.ne.s32.totalorder %s200, %s202
    %p206 = scmp.eq.s32.totalorder %s19, 0
    %p207 = por %p205, %p206
    %p208 = scmp.ne.s32.totalorder %s200, %s202
    %p209 = scmp.eq.s32.totalorder %s24, 1
    %p210 = por %p208, %p209
    %p211 = scmp.ne.s32.totalorder %s202, %s203
    %p212 = scmp.eq.s32.totalorder %s24, 0
    %p213 = por %p211, %p212
    %p214 = scmp.ne.s32.totalorder %s202, %s203
    %p215 = scmp.eq.s32.totalorder %s25, 1
    %p216 = por %p214, %p215
    %p218 = scmp.ne.s32.totalorder %s203, %s217
    %p219 = scmp.eq.s32.totalorder %s25, 0
    %p220 = por %p218, %p219
    %s222 = sadd.s32 %s221, 1
    %p225 = scmp.eq.s32.totalorder %s19, 1
    %p226 = scmp.ne.s32.totalorder %s221, %s223
    %p227 = scmp.eq.s32.totalorder %s19, 0
    %p228 = por %p226, %p227
    %p229 = scmp.ne.s32.totalorder %s221, %s223
    %p230 = scmp.eq.s32.totalorder %s24, 1
    %p231 = por %p229, %p230
    %p232 = scmp.ne.s32.totalorder %s223, %s224
    %p233 = scmp.eq.s32.totalorder %s24, 0
    %p234 = por %p232, %p233
    %p235 = scmp.ne.s32.totalorder %s223, %s224
    %p236 = scmp.eq.s32.totalorder %s25, 1
    %p237 = por %p235, %p236
    %p239 = scmp.ne.s32.totalorder %s224, %s238
    %p240 = scmp.eq.s32.totalorder %s25, 0
    %p241 = por %p239, %p240
    %s243 = sadd.s32 %s242, 1
    %p246 = scmp.eq.s32.totalorder %s19, 1
    %p247 = scmp.ne.s32.totalorder %s242, %s244
    %p248 = scmp.eq.s32.totalorder %s19, 0
    %p249 = por %p247, %p248
    %p250 = scmp.ne.s32.totalorder %s242, %s244
    %p251 = scmp.eq.s32.totalorder %s24, 1
    %p252 = por %p250, %p251
    %p253 = scmp.ne.s32.totalorder %s244, %s245
    %p254 = scmp.eq.s32.totalorder %s24, 0
    %p255 = por %p253, %p254
    %p256 = scmp.ne.s32.totalorder %s244, %s245
    %p257 = scmp.eq.s32.totalorder %s25, 1
    %p258 = por %p256, %p257
    %p260 = scmp.ne.s32.totalorder %s245, %s259
    %p261 = scmp.eq.s32.totalorder %s25, 0
    %p262 = por %p260, %p261
    %s264 = sadd.s32 %s263, 1
    %p267 = scmp.eq.s32.totalorder %s19, 1
    %p268 = scmp.ne.s32.totalorder %s263, %s265
    %p269 = scmp.eq.s32.totalorder %s19, 0
    %p270 = por %p268, %p269
    %p271 = scmp.ne.s32.totalorder %s263, %s265
    %p272 = scmp.eq.s32.totalorder %s24, 1
    %p273 = por %p271, %p272
    %p274 = scmp.ne.s32.totalorder %s265, %s266
    %p275 = scmp.eq.s32.totalorder %s24, 0
    %p276 = por %p274, %p275
    %p277 = scmp.ne.s32.totalorder %s265, %s266
    %p278 = scmp.eq.s32.totalorder %s25, 1
    %p279 = por %p277, %p278
    %p281 = scmp.ne.s32.totalorder %s266, %s280
    %p282 = scmp.eq.s32.totalorder %s25, 0
    %p283 = por %p281, %p282
    %s285 = sadd.s32 %s284, 1
    %p288 = scmp.eq.s32.totalorder %s19, 1
    %p289 = scmp.ne.s32.totalorder %s284, %s286
    %p290 = scmp.eq.s32.totalorder %s19, 0
    %p291 = por %p289, %p290
    %p292 = scmp.ne.s32.totalorder %s284, %s286
    %p293 = scmp.eq.s32.totalorder %s24, 1
    %p294 = por %p292, %p293
    %p295 = scmp.ne.s32.totalorder %s286, %s287
    %p296 = scmp.eq.s32.totalorder %s24, 0
    %p297 = por %p295, %p296
    %p298 = scmp.ne.s32.totalorder %s286, %s287
    %p299 = scmp.eq.s32.totalorder %s25, 1
    %p300 = por %p298, %p299
    %p302 = scmp.ne.s32.totalorder %s287, %s301
    %p303 = scmp.eq.s32.totalorder %s25, 0
    %p304 = por %p302, %p303
    %s305 = ssub.s32 %s19, %s26
    %p306 = scmp.eq.s32.totalorder %s305, 0
    %s308 = sadd.s32 %s307, 1
    %s309 = scalar_select %p306, %s307, %s308
    %p312 = pneg %p306
    %p313 = scmp.eq.s32.totalorder %s19, 1
    %p314 = por %p312, %p313
    %p315 = scmp.ne.s32.totalorder %s307, %s310
    %p316 = scmp.eq.s32.totalorder %s19, 0
    %p317 = por %p315, %p316
    %p318 = scmp.ne.s32.totalorder %s307, %s310
    %p319 = scmp.eq.s32.totalorder %s24, 1
    %p320 = por %p318, %p319
    %p321 = scmp.ne.s32.totalorder %s310, %s311
    %p322 = scmp.eq.s32.totalorder %s24, 0
    %p323 = por %p321, %p322
    %p324 = scmp.ne.s32.totalorder %s310, %s311
    %p325 = scmp.eq.s32.totalorder %s25, 1
    %p326 = por %p324, %p325
    %p328 = scmp.ne.s32.totalorder %s311, %s327
    %p329 = scmp.eq.s32.totalorder %s25, 0
    %p330 = por %p328, %p329
    %p331 = scmp.le.s32.totalorder 1, %s19
    %p332 = scmp.lt.s32.totalorder %s19, 3
    %p333 = pnand %p331, %p332
    %p334 = pneg %p333
    // Predicated region
    $region9: #{cnn_forward.1} parent=5 // pred_check
      _
    $region10: #{cnn_forward.1} parent=5 // pred_check_branch
      %336 = sbr.rel (%p333) target = $region12
    $region11: #{cnn_forward.1} parent=5 // pred_region
      %s337 = ssub.s32 %s19, 1
      // Predicated region
      $region13: #{cnn_forward.1} parent=11 // pred_check
        %p338 = pneg %p66
      $region14: #{cnn_forward.1} parent=11 // pred_check_branch
        %340 = sbr.rel (%p338) target = $region16
      $region15: #{cnn_forward.1} parent=11 // pred_region
        _
      $region16: #{cnn_forward.1} parent=11 // pred_fallthru
        _
      // Predicated region
      $region17: #{cnn_forward.1} parent=11 // pred_check
        %p341 = pneg %p87
      $region18: #{cnn_forward.1} parent=11 // pred_check_branch
        %343 = sbr.rel (%p341) target = $region20
      $region19: #{cnn_forward.1} parent=11 // pred_region
        _
      $region20: #{cnn_forward.1} parent=11 // pred_fallthru
        _
      // Predicated region
      $region21: #{cnn_forward.1} parent=11 // pred_check
        %p344 = pneg %p108
      $region22: #{cnn_forward.1} parent=11 // pred_check_branch
        %346 = sbr.rel (%p344) target = $region24
      $region23: #{cnn_forward.1} parent=11 // pred_region
        _
      $region24: #{cnn_forward.1} parent=11 // pred_fallthru
        _
      // Predicated region
      $region25: #{cnn_forward.1} parent=11 // pred_check
        %p347 = pneg %p129
      $region26: #{cnn_forward.1} parent=11 // pred_check_branch
        %349 = sbr.rel (%p347) target = $region28
      $region27: #{cnn_forward.1} parent=11 // pred_region
        _
      $region28: #{cnn_forward.1} parent=11 // pred_fallthru
        _
      // Predicated region
      $region29: #{cnn_forward.1} parent=11 // pred_check
        %p350 = pneg %p150
      $region30: #{cnn_forward.1} parent=11 // pred_check_branch
        %352 = sbr.rel (%p350) target = $region32
      $region31: #{cnn_forward.1} parent=11 // pred_region
        _
      $region32: #{cnn_forward.1} parent=11 // pred_fallthru
        _
      // Predicated region
      $region33: #{cnn_forward.1} parent=11 // pred_check
        %p353 = pneg %p171
      $region34: #{cnn_forward.1} parent=11 // pred_check_branch
        %355 = sbr.rel (%p353) target = $region36
      $region35: #{cnn_forward.1} parent=11 // pred_region
        _
      $region36: #{cnn_forward.1} parent=11 // pred_fallthru
        _
      // Predicated region
      $region37: #{cnn_forward.1} parent=11 // pred_check
        %p356 = pneg %p192
      $region38: #{cnn_forward.1} parent=11 // pred_check_branch
        %358 = sbr.rel (%p356) target = $region40
      $region39: #{cnn_forward.1} parent=11 // pred_region
        _
      $region40: #{cnn_forward.1} parent=11 // pred_fallthru
        _
      // Predicated region
      $region41: #{cnn_forward.1} parent=11 // pred_check
        %p359 = pneg %p213
      $region42: #{cnn_forward.1} parent=11 // pred_check_branch
        %361 = sbr.rel (%p359) target = $region44
      $region43: #{cnn_forward.1} parent=11 // pred_region
        _
      $region44: #{cnn_forward.1} parent=11 // pred_fallthru
        _
      // Predicated region
      $region45: #{cnn_forward.1} parent=11 // pred_check
        %p362 = pneg %p234
      $region46: #{cnn_forward.1} parent=11 // pred_check_branch
        %364 = sbr.rel (%p362) target = $region48
      $region47: #{cnn_forward.1} parent=11 // pred_region
        _
      $region48: #{cnn_forward.1} parent=11 // pred_fallthru
        _
      // Predicated region
      $region49: #{cnn_forward.1} parent=11 // pred_check
        %p365 = pneg %p255
      $region50: #{cnn_forward.1} parent=11 // pred_check_branch
        %367 = sbr.rel (%p365) target = $region52
      $region51: #{cnn_forward.1} parent=11 // pred_region
        _
      $region52: #{cnn_forward.1} parent=11 // pred_fallthru
        _
      // Predicated region
      $region53: #{cnn_forward.1} parent=11 // pred_check
        %p368 = pneg %p276
      $region54: #{cnn_forward.1} parent=11 // pred_check_branch
        %370 = sbr.rel (%p368) target = $region56
      $region55: #{cnn_forward.1} parent=11 // pred_region
        _
      $region56: #{cnn_forward.1} parent=11 // pred_fallthru
        _
      // Predicated region
      $region57: #{cnn_forward.1} parent=11 // pred_check
        %p371 = pneg %p297
      $region58: #{cnn_forward.1} parent=11 // pred_check_branch
        %373 = sbr.rel (%p371) target = $region60
      $region59: #{cnn_forward.1} parent=11 // pred_region
        _
      $region60: #{cnn_forward.1} parent=11 // pred_fallthru
        _
    $region12: #{cnn_forward.1} parent=5 // pred_fallthru
      _
    %p374 = scmp.lt.s32.totalorder %s19, 2
    // Predicated region
    $region61: #{cnn_forward.1} parent=5 // pred_check
      %p375 = pneg %p374
    $region62: #{cnn_forward.1} parent=5 // pred_check_branch
      %377 = sbr.rel (%p375) target = $region64
    $region63: #{cnn_forward.1} parent=5 // pred_region
      // Predicated region
      $region65: #{cnn_forward.1} parent=63 // pred_check
        %p378 = pneg %p39
      $region66: #{cnn_forward.1} parent=63 // pred_check_branch
        %380 = sbr.rel (%p378) target = $region68
      $region67: #{cnn_forward.1} parent=63 // pred_region
        %p381 = scmp.lt.s32.totalorder %s19, 1
        %s382 = scalar_select %p381, %s19, 1
        %s383 = smul.addr %s382, 32
        %s384 = smul.addr %s383, 8
        %s385 = scalar_lea.vmem %s0, %s384
      $region68: #{cnn_forward.1} parent=63 // pred_fallthru
        _
    $region64: #{cnn_forward.1} parent=5 // pred_fallthru
      _
    %p386 = scmp.le.s32.totalorder 1, %s19
    %p387 = scmp.lt.s32.totalorder %s19, 3
    %p388 = pnand %p386, %p387
    %p389 = pneg %p388
    // Predicated region
    $region69: #{cnn_forward.1} parent=5 // pred_check
      _
    $region70: #{cnn_forward.1} parent=5 // pred_check_branch
      %391 = sbr.rel (%p388) target = $region72
    $region71: #{cnn_forward.1} parent=5 // pred_region
      %s392 = ssub.s32 %s19, 1
      %p393 = scmp.lt.s32.totalorder %s24, 1
      %s394 = scalar_select %p393, %s24, 1
      %s395 = smul.addr %s394, 32
      %s396 = smul.addr %s395, 8
      %s397 = scalar_lea.vmem %s0, %s396
      %p398 = pneg %p45
      %p399 = pneg %p42
      %p400 = pneg %p66
      %p401 = pneg %p63
      %p402 = pneg %p87
      %p403 = pneg %p84
      %p404 = pneg %p108
      %p405 = pneg %p105
      %p406 = pneg %p129
      %p407 = pneg %p126
      %p408 = pneg %p150
      %p409 = pneg %p147
      %p410 = pneg %p171
      %p411 = pneg %p168
      %p412 = pneg %p192
      %p413 = pneg %p189
      %p414 = pneg %p213
      %p415 = pneg %p210
      %p416 = pneg %p234
      %p417 = pneg %p231
      %p418 = pneg %p255
      %p419 = pneg %p252
      %p420 = pneg %p276
      %p421 = pneg %p273
      %p422 = pneg %p297
      %p423 = pneg %p294
      %p424 = pneg %p323
      %p425 = pneg %p320
      %p426 = scmp.lt.s32.totalorder %s24, 1
      %s427 = scalar_select %p426, %s24, 1
      %s428 = smul.addr %s427, 8
      %s429 = smul.addr %s428, 8
      %s430 = scalar_lea.vmem %s13, %s429
      %p431 = scmp.lt.s32.totalorder %s24, 1
      %s432 = scalar_select %p431, %s24, 1
      %s433 = smul.addr %s432, 32
      %s434 = smul.addr %s433, 8
      %s435 = scalar_lea.vmem %s0, %s434
      %p436 = scmp.lt.s32.totalorder %s24, 1
      %s437 = scalar_select %p436, %s24, 1
      %s438 = smul.addr %s437, 8
      %s439 = smul.addr %s438, 8
      %s440 = scalar_lea.vmem %s13, %s439
      %v441 = vld [vmem:[%s435] sm:$0xff]
      %v442 = vld [vmem:[%s435 + $0x8] sm:$0xff]
      %v443 = vld [vmem:[%s435 + $0x10] sm:$0xff]
      %v444 = vld [vmem:[%s435 + $0x18] sm:$0xff]
      %v445 = vld [vmem:[%s435 + $0x20] sm:$0xff]
      %v446 = vld [vmem:[%s435 + $0x28] sm:$0xff]
      %v447 = vld [vmem:[%s435 + $0x30] sm:$0xff]
      %v448 = vld [vmem:[%s435 + $0x38] sm:$0xff]
      %v449 = vld [vmem:[%s435 + $0x40] sm:$0xff]
      %v450 = vld [vmem:[%s435 + $0x48] sm:$0xff]
      %v451 = vld [vmem:[%s435 + $0x50] sm:$0xff]
      %v452 = vld [vmem:[%s435 + $0x58] sm:$0xff]
      %v453 = vld [vmem:[%s435 + $0x60] sm:$0xff]
      %v454 = vld [vmem:[%s435 + $0x68] sm:$0xff]
      %v455 = vld [vmem:[%s435 + $0x70] sm:$0xff]
      %v456 = vld [vmem:[%s435 + $0x78] sm:$0xff]
      %v457 = vld [vmem:[%s435 + $0x80] sm:$0xff]
      %v458 = vld [vmem:[%s435 + $0x88] sm:$0xff]
      %v459 = vld [vmem:[%s435 + $0x90] sm:$0xff]
      %v460 = vld [vmem:[%s435 + $0x98] sm:$0xff]
      %v461 = vld [vmem:[%s435 + $0xa0] sm:$0xff]
      %v462 = vld [vmem:[%s435 + $0xa8] sm:$0xff]
      %v463 = vld [vmem:[%s435 + $0xb0] sm:$0xff]
      %v464 = vld [vmem:[%s435 + $0xb8] sm:$0xff]
      %v465 = vld [vmem:[%s435 + $0xc0] sm:$0xff]
      %v466 = vld [vmem:[%s435 + $0xc8] sm:$0xff]
      %v467 = vld [vmem:[%s435 + $0xd0] sm:$0xff]
      %v468 = vld [vmem:[%s435 + $0xd8] sm:$0xff]
      %v469 = vld [vmem:[%s435 + $0xe0] sm:$0xff]
      %v470 = vld [vmem:[%s435 + $0xe8] sm:$0xff]
      %v471 = vld [vmem:[%s435 + $0xf0] sm:$0xff]
      %v472 = vld [vmem:[%s435 + $0xf8] sm:$0xff]
      %v473 = vld [vmem:[%s1] sm:$0xff]
      %v474 = vld [vmem:[%s1 + $0x8] sm:$0x1]
      %v475 = vld [vmem:[%s2] sm:$0x1]
      %v477 = vlaneseq
      %v478 = vshrl.u32 %v477, 7
      %v479 = vsub.s32 0, %v478
      %v480 = vrot.slane %v475, %v479
      %vm482 = vcmask 72704
      %v484 = vsel %vm482, %v441, 0
      %v487 = vsel %vm482, %v442, 0
      %v490 = vsel %vm482, %v443, 0
      %v493 = vsel %vm482, %v444, 0
      %v496 = vsel %vm482, %v445, 0
      %v499 = vsel %vm482, %v446, 0
      %v502 = vsel %vm482, %v447, 0
      %v505 = vsel %vm482, %v448, 0
      %v508 = vsel %vm482, %v449, 0
      %v511 = vsel %vm482, %v450, 0
      %v514 = vsel %vm482, %v451, 0
      %v517 = vsel %vm482, %v452, 0
      %v520 = vsel %vm482, %v453, 0
      %v523 = vsel %vm482, %v454, 0
      %v526 = vsel %vm482, %v455, 0
      %v529 = vsel %vm482, %v456, 0
      %v532 = vsel %vm482, %v457, 0
      %v535 = vsel %vm482, %v458, 0
      %v538 = vsel %vm482, %v459, 0
      %v541 = vsel %vm482, %v460, 0
      %v544 = vsel %vm482, %v461, 0
      %v547 = vsel %vm482, %v462, 0
      %v550 = vsel %vm482, %v463, 0
      %v553 = vsel %vm482, %v464, 0
      %v556 = vsel %vm482, %v465, 0
      %v559 = vsel %vm482, %v466, 0
      %v562 = vsel %vm482, %v467, 0
      %v565 = vsel %vm482, %v468, 0
      %v568 = vsel %vm482, %v469, 0
      %v571 = vsel %vm482, %v470, 0
      %v574 = vsel %vm482, %v471, 0
      %v577 = vsel %vm482, %v472, 0
      %vm579 = vcmask 1040384
      %v581 = vsel %vm579, %v474, 0
      %583 = vmatprep.subr.mxu0 0.0
      %584 = vmatpush1.msra.mxu0 0.0
      %585 = vmatprep.subr.mxu0 0.0
      %586 = vmatpush1.msra.mxu0 0.0
      %587 = vmatprep.subr.mxu0 0.0
      %588 = vmatpush1.msra.mxu0 0.0
      %589 = vmatprep.subr.mxu0 0.0
      %590 = vmatpush1.msra.mxu0 0.0
      %591 = vmatprep.subr.mxu0 0.0
      %592 = vmatpush1.msra.mxu0 0.0
      %593 = vmatprep.subr.mxu0 0.0
      %594 = vmatpush1.msra.mxu0 0.0
      %595 = vmatprep.subr.mxu0 0.0
      %596 = vmatpush1.msra.mxu0 0.0
      %597 = vmatprep.subr.mxu0 0.0
      %598 = vmatpush1.msra.mxu0 0.0
      %599 = vmatprep.subr.mxu0 0.0
      %600 = vmatpush1.msra.mxu0 0.0
      %601 = vmatprep.subr.mxu0 0.0
      %602 = vmatpush1.msra.mxu0 0.0
      %603 = vmatprep.subr.mxu0 0.0
      %604 = vmatpush1.msra.mxu0 0.0
      %605 = vmatprep.subr.mxu0 0.0
      %606 = vmatpush1.msra.mxu0 0.0
      %607 = vmatprep.subr.mxu0 0.0
      %608 = vmatpush1.msra.mxu0 0.0
      %609 = vmatprep.subr.mxu0 0.0
      %610 = vmatpush1.msra.mxu0 0.0
      %611 = vmatprep.subr.mxu0 0.0
      %612 = vmatpush1.msra.mxu0 %v581
      %613 = vmatprep.subr.mxu0 0.0
      %614 = vmatpush1.msra.mxu0 %v473
      %615 = vmatprep.subr.mxu0 0.0
      %616 = vmatpush2.msra.mxu0 0.0
      %617 = vmatprep.subr.mxu0 0.0
      %618 = vmatpush2.msra.mxu0 0.0
      %619 = vmatprep.subr.mxu0 0.0
      %620 = vmatpush2.msra.mxu0 0.0
      %621 = vmatprep.subr.mxu0 0.0
      %622 = vmatpush2.msra.mxu0 0.0
      %623 = vmatprep.subr.mxu0 0.0
      %624 = vmatpush2.msra.mxu0 0.0
      %625 = vmatprep.subr.mxu0 0.0
      %626 = vmatpush2.msra.mxu0 0.0
      %627 = vmatprep.subr.mxu0 0.0
      %628 = vmatpush2.msra.mxu0 0.0
      %629 = vmatprep.subr.mxu0 0.0
      %630 = vmatpush2.msra.mxu0 0.0
      %631 = vmatprep.subr.mxu0 0.0
      %632 = vmatpush2.msra.mxu0 0.0
      %633 = vmatprep.subr.mxu0 0.0
      %634 = vmatpush2.msra.mxu0 0.0
      %635 = vmatprep.subr.mxu0 0.0
      %636 = vmatpush2.msra.mxu0 0.0
      %637 = vmatprep.subr.mxu0 0.0
      %638 = vmatpush2.msra.mxu0 0.0
      %639 = vmatprep.subr.mxu0 0.0
      %640 = vmatpush2.msra.mxu0 0.0
      %641 = vmatprep.subr.mxu0 0.0
      %642 = vmatpush2.msra.mxu0 0.0
      %643 = vmatprep.subr.mxu0 0.0
      %644 = vmatpush2.msra.mxu0 0.0
      %645 = vmatprep.subr.mxu0 0.0
      %646 = vmatpush2.msra.mxu0 0.0
      %647 = vmatprep.mubr.f32.mxu0 0.0
      %648 = vmatmul.mubr.f32.gmra.mxu0 %v484
      %v649 = vpop.f32.mrf.mxu0
      %v650 = vadd.f32 %v480, %v649
      %v651 = vpop.f32.mrf.mxu0
      %652 = vmatprep.mubr.f32.mxu0 0.0
      %653 = vmatmul.mubr.f32.gmra.mxu0 %v487
      %v654 = vpop.f32.mrf.mxu0
      %v655 = vadd.f32 %v480, %v654
      %v656 = vpop.f32.mrf.mxu0
      %657 = vmatprep.mubr.f32.mxu0 0.0
      %658 = vmatmul.mubr.f32.gmra.mxu0 %v490
      %v659 = vpop.f32.mrf.mxu0
      %v660 = vadd.f32 %v480, %v659
      %v661 = vpop.f32.mrf.mxu0
      %662 = vmatprep.mubr.f32.mxu0 0.0
      %663 = vmatmul.mubr.f32.gmra.mxu0 %v493
      %v664 = vpop.f32.mrf.mxu0
      %v665 = vadd.f32 %v480, %v664
      %v666 = vpop.f32.mrf.mxu0
      %667 = vmatprep.mubr.f32.mxu0 0.0
      %668 = vmatmul.mubr.f32.gmra.mxu0 %v496
      %v669 = vpop.f32.mrf.mxu0
      %v670 = vadd.f32 %v480, %v669
      %v671 = vpop.f32.mrf.mxu0
      %672 = vmatprep.mubr.f32.mxu0 0.0
      %673 = vmatmul.mubr.f32.gmra.mxu0 %v499
      %v674 = vpop.f32.mrf.mxu0
      %v675 = vadd.f32 %v480, %v674
      %v676 = vpop.f32.mrf.mxu0
      %677 = vmatprep.mubr.f32.mxu0 0.0
      %678 = vmatmul.mubr.f32.gmra.mxu0 %v502
      %v679 = vpop.f32.mrf.mxu0
      %v680 = vadd.f32 %v480, %v679
      %v681 = vpop.f32.mrf.mxu0
      %682 = vmatprep.mubr.f32.mxu0 0.0
      %683 = vmatmul.mubr.f32.gmra.mxu0 %v505
      %v684 = vpop.f32.mrf.mxu0
      %v685 = vadd.f32 %v480, %v684
      %v686 = vpop.f32.mrf.mxu0
      %687 = vmatprep.mubr.f32.mxu0 0.0
      %688 = vmatmul.mubr.f32.gmra.mxu0 %v508
      %v689 = vpop.f32.mrf.mxu0
      %v690 = vadd.f32 %v480, %v689
      %v691 = vpop.f32.mrf.mxu0
      %692 = vmatprep.mubr.f32.mxu0 0.0
      %693 = vmatmul.mubr.f32.gmra.mxu0 %v511
      %v694 = vpop.f32.mrf.mxu0
      %v695 = vadd.f32 %v480, %v694
      %v696 = vpop.f32.mrf.mxu0
      %697 = vmatprep.mubr.f32.mxu0 0.0
      %698 = vmatmul.mubr.f32.gmra.mxu0 %v514
      %v699 = vpop.f32.mrf.mxu0
      %v700 = vadd.f32 %v480, %v699
      %v701 = vpop.f32.mrf.mxu0
      %702 = vmatprep.mubr.f32.mxu0 0.0
      %703 = vmatmul.mubr.f32.gmra.mxu0 %v517
      %v704 = vpop.f32.mrf.mxu0
      %v705 = vadd.f32 %v480, %v704
      %v706 = vpop.f32.mrf.mxu0
      %707 = vmatprep.mubr.f32.mxu0 0.0
      %708 = vmatmul.mubr.f32.gmra.mxu0 %v520
      %v709 = vpop.f32.mrf.mxu0
      %v710 = vadd.f32 %v480, %v709
      %v711 = vpop.f32.mrf.mxu0
      %712 = vmatprep.mubr.f32.mxu0 0.0
      %713 = vmatmul.mubr.f32.gmra.mxu0 %v523
      %v714 = vpop.f32.mrf.mxu0
      %v715 = vadd.f32 %v480, %v714
      %v716 = vpop.f32.mrf.mxu0
      %717 = vmatprep.mubr.f32.mxu0 0.0
      %718 = vmatmul.mubr.f32.gmra.mxu0 %v526
      %v719 = vpop.f32.mrf.mxu0
      %v720 = vadd.f32 %v480, %v719
      %v721 = vpop.f32.mrf.mxu0
      %722 = vmatprep.mubr.f32.mxu0 0.0
      %723 = vmatmul.mubr.f32.gmra.mxu0 %v529
      %v724 = vpop.f32.mrf.mxu0
      %v725 = vadd.f32 %v480, %v724
      %v726 = vpop.f32.mrf.mxu0
      %727 = vmatprep.mubr.f32.mxu0 0.0
      %728 = vmatmul.mubr.f32.gmra.mxu0 %v532
      %v729 = vpop.f32.mrf.mxu0
      %v730 = vadd.f32 %v480, %v729
      %v731 = vpop.f32.mrf.mxu0
      %732 = vmatprep.mubr.f32.mxu0 0.0
      %733 = vmatmul.mubr.f32.gmra.mxu0 %v535
      %v734 = vpop.f32.mrf.mxu0
      %v735 = vadd.f32 %v480, %v734
      %v736 = vpop.f32.mrf.mxu0
      %737 = vmatprep.mubr.f32.mxu0 0.0
      %738 = vmatmul.mubr.f32.gmra.mxu0 %v538
      %v739 = vpop.f32.mrf.mxu0
      %v740 = vadd.f32 %v480, %v739
      %v741 = vpop.f32.mrf.mxu0
      %742 = vmatprep.mubr.f32.mxu0 0.0
      %743 = vmatmul.mubr.f32.gmra.mxu0 %v541
      %v744 = vpop.f32.mrf.mxu0
      %v745 = vadd.f32 %v480, %v744
      %v746 = vpop.f32.mrf.mxu0
      %747 = vmatprep.mubr.f32.mxu0 0.0
      %748 = vmatmul.mubr.f32.gmra.mxu0 %v544
      %v749 = vpop.f32.mrf.mxu0
      %v750 = vadd.f32 %v480, %v749
      %v751 = vpop.f32.mrf.mxu0
      %752 = vmatprep.mubr.f32.mxu0 0.0
      %753 = vmatmul.mubr.f32.gmra.mxu0 %v547
      %v754 = vpop.f32.mrf.mxu0
      %v755 = vadd.f32 %v480, %v754
      %v756 = vpop.f32.mrf.mxu0
      %757 = vmatprep.mubr.f32.mxu0 0.0
      %758 = vmatmul.mubr.f32.gmra.mxu0 %v550
      %v759 = vpop.f32.mrf.mxu0
      %v760 = vadd.f32 %v480, %v759
      %v761 = vpop.f32.mrf.mxu0
      %762 = vmatprep.mubr.f32.mxu0 0.0
      %763 = vmatmul.mubr.f32.gmra.mxu0 %v553
      %v764 = vpop.f32.mrf.mxu0
      %v765 = vadd.f32 %v480, %v764
      %v766 = vpop.f32.mrf.mxu0
      %767 = vmatprep.mubr.f32.mxu0 0.0
      %768 = vmatmul.mubr.f32.gmra.mxu0 %v556
      %v769 = vpop.f32.mrf.mxu0
      %v770 = vadd.f32 %v480, %v769
      %v771 = vpop.f32.mrf.mxu0
      %772 = vmatprep.mubr.f32.mxu0 0.0
      %773 = vmatmul.mubr.f32.gmra.mxu0 %v559
      %v774 = vpop.f32.mrf.mxu0
      %v775 = vadd.f32 %v480, %v774
      %v776 = vpop.f32.mrf.mxu0
      %777 = vmatprep.mubr.f32.mxu0 0.0
      %778 = vmatmul.mubr.f32.gmra.mxu0 %v562
      %v779 = vpop.f32.mrf.mxu0
      %v780 = vadd.f32 %v480, %v779
      %v781 = vpop.f32.mrf.mxu0
      %782 = vmatprep.mubr.f32.mxu0 0.0
      %783 = vmatmul.mubr.f32.gmra.mxu0 %v565
      %v784 = vpop.f32.mrf.mxu0
      %v785 = vadd.f32 %v480, %v784
      %v786 = vpop.f32.mrf.mxu0
      %787 = vmatprep.mubr.f32.mxu0 0.0
      %788 = vmatmul.mubr.f32.gmra.mxu0 %v568
      %v789 = vpop.f32.mrf.mxu0
      %v790 = vadd.f32 %v480, %v789
      %v791 = vpop.f32.mrf.mxu0
      %792 = vmatprep.mubr.f32.mxu0 0.0
      %793 = vmatmul.mubr.f32.gmra.mxu0 %v571
      %v794 = vpop.f32.mrf.mxu0
      %v795 = vadd.f32 %v480, %v794
      %v796 = vpop.f32.mrf.mxu0
      %797 = vmatprep.mubr.f32.mxu0 0.0
      %798 = vmatmul.mubr.f32.gmra.mxu0 %v574
      %v799 = vpop.f32.mrf.mxu0
      %v800 = vadd.f32 %v480, %v799
      %v801 = vpop.f32.mrf.mxu0
      %802 = vmatprep.mubr.f32.mxu0 0.0
      %803 = vmatmul.mubr.f32.gmra.mxu0 %v577
      %v804 = vpop.f32.mrf.mxu0
      %v805 = vadd.f32 %v480, %v804
      %v806 = vpop.f32.mrf.mxu0
      %807 = vdwg.mxu0
      %v808 = vmax.f32 %v650, 0.0
      %v809 = vmax.f32 %v655, 0.0
      %v810 = vmax.f32 %v660, 0.0
      %v811 = vmax.f32 %v665, 0.0
      %v812 = vmax.f32 %v670, 0.0
      %v813 = vmax.f32 %v675, 0.0
      %v814 = vmax.f32 %v680, 0.0
      %v815 = vmax.f32 %v685, 0.0
      %v816 = vmax.f32 %v690, 0.0
      %v817 = vmax.f32 %v695, 0.0
      %v818 = vmax.f32 %v700, 0.0
      %v819 = vmax.f32 %v705, 0.0
      %v820 = vmax.f32 %v710, 0.0
      %v821 = vmax.f32 %v715, 0.0
      %v822 = vmax.f32 %v720, 0.0
      %v823 = vmax.f32 %v725, 0.0
      %v824 = vmax.f32 %v730, 0.0
      %v825 = vmax.f32 %v735, 0.0
      %v826 = vmax.f32 %v740, 0.0
      %v827 = vmax.f32 %v745, 0.0
      %v828 = vmax.f32 %v750, 0.0
      %v829 = vmax.f32 %v755, 0.0
      %v830 = vmax.f32 %v760, 0.0
      %v831 = vmax.f32 %v765, 0.0
      %v832 = vmax.f32 %v770, 0.0
      %v833 = vmax.f32 %v775, 0.0
      %v834 = vmax.f32 %v780, 0.0
      %v835 = vmax.f32 %v785, 0.0
      %v836 = vmax.f32 %v790, 0.0
      %v837 = vmax.f32 %v795, 0.0
      %v838 = vmax.f32 %v800, 0.0
      %v839 = vmax.f32 %v805, 0.0
      %vm840 = vcmask 130048
      %841 = vst.msk [vmem:[#allocation2] sm:$0xff] %vm840, %v808
      %842 = vst.msk [vmem:[#allocation2 + $0x8] sm:$0xff] %vm840, %v809
      %843 = vst.msk [vmem:[#allocation2 + $0x10] sm:$0xff] %vm840, %v810
      %844 = vst.msk [vmem:[#allocation2 + $0x18] sm:$0xff] %vm840, %v811
      %845 = vst.msk [vmem:[#allocation2 + $0x20] sm:$0xff] %vm840, %v812
      %846 = vst.msk [vmem:[#allocation2 + $0x28] sm:$0xff] %vm840, %v813
      %847 = vst.msk [vmem:[#allocation2 + $0x30] sm:$0xff] %vm840, %v814
      %848 = vst.msk [vmem:[#allocation2 + $0x38] sm:$0xff] %vm840, %v815
      %849 = vst.msk [vmem:[#allocation2 + $0x40] sm:$0xff] %vm840, %v816
      %850 = vst.msk [vmem:[#allocation2 + $0x48] sm:$0xff] %vm840, %v817
      %851 = vst.msk [vmem:[#allocation2 + $0x50] sm:$0xff] %vm840, %v818
      %852 = vst.msk [vmem:[#allocation2 + $0x58] sm:$0xff] %vm840, %v819
      %853 = vst.msk [vmem:[#allocation2 + $0x60] sm:$0xff] %vm840, %v820
      %854 = vst.msk [vmem:[#allocation2 + $0x68] sm:$0xff] %vm840, %v821
      %855 = vst.msk [vmem:[#allocation2 + $0x70] sm:$0xff] %vm840, %v822
      %856 = vst.msk [vmem:[#allocation2 + $0x78] sm:$0xff] %vm840, %v823
      %857 = vst.msk [vmem:[#allocation2 + $0x80] sm:$0xff] %vm840, %v824
      %858 = vst.msk [vmem:[#allocation2 + $0x88] sm:$0xff] %vm840, %v825
      %859 = vst.msk [vmem:[#allocation2 + $0x90] sm:$0xff] %vm840, %v826
      %860 = vst.msk [vmem:[#allocation2 + $0x98] sm:$0xff] %vm840, %v827
      %861 = vst.msk [vmem:[#allocation2 + $0xa0] sm:$0xff] %vm840, %v828
      %862 = vst.msk [vmem:[#allocation2 + $0xa8] sm:$0xff] %vm840, %v829
      %863 = vst.msk [vmem:[#allocation2 + $0xb0] sm:$0xff] %vm840, %v830
      %864 = vst.msk [vmem:[#allocation2 + $0xb8] sm:$0xff] %vm840, %v831
      %865 = vst.msk [vmem:[#allocation2 + $0xc0] sm:$0xff] %vm840, %v832
      %866 = vst.msk [vmem:[#allocation2 + $0xc8] sm:$0xff] %vm840, %v833
      %867 = vst.msk [vmem:[#allocation2 + $0xd0] sm:$0xff] %vm840, %v834
      %868 = vst.msk [vmem:[#allocation2 + $0xd8] sm:$0xff] %vm840, %v835
      %869 = vst.msk [vmem:[#allocation2 + $0xe0] sm:$0xff] %vm840, %v836
      %870 = vst.msk [vmem:[#allocation2 + $0xe8] sm:$0xff] %vm840, %v837
      %871 = vst.msk [vmem:[#allocation2 + $0xf0] sm:$0xff] %vm840, %v838
      %872 = vst.msk [vmem:[#allocation2 + $0xf8] sm:$0xff] %vm840, %v839
      %v873 = vld [vmem:[#allocation2] sm:$0xff]
      %v874 = vld [vmem:[#allocation2 + $0x8] sm:$0xff]
      %v875 = vld [vmem:[#allocation2 + $0x10] sm:$0xff]
      %v876 = vld [vmem:[#allocation2 + $0x18] sm:$0xff]
      %v877 = vld [vmem:[#allocation2 + $0x20] sm:$0xff]
      %v878 = vld [vmem:[#allocation2 + $0x28] sm:$0xff]
      %v879 = vld [vmem:[#allocation2 + $0x30] sm:$0xff]
      %v880 = vld [vmem:[#allocation2 + $0x38] sm:$0xff]
      %v881 = vld [vmem:[#allocation2 + $0x40] sm:$0xff]
      %v882 = vld [vmem:[#allocation2 + $0x48] sm:$0xff]
      %v883 = vld [vmem:[#allocation2 + $0x50] sm:$0xff]
      %v884 = vld [vmem:[#allocation2 + $0x58] sm:$0xff]
      %v885 = vld [vmem:[#allocation2 + $0x60] sm:$0xff]
      %v886 = vld [vmem:[#allocation2 + $0x68] sm:$0xff]
      %v887 = vld [vmem:[#allocation2 + $0x70] sm:$0xff]
      %v888 = vld [vmem:[#allocation2 + $0x78] sm:$0xff]
      %v889 = vld [vmem:[#allocation2 + $0x80] sm:$0xff]
      %v890 = vld [vmem:[#allocation2 + $0x88] sm:$0xff]
      %v891 = vld [vmem:[#allocation2 + $0x90] sm:$0xff]
      %v892 = vld [vmem:[#allocation2 + $0x98] sm:$0xff]
      %v893 = vld [vmem:[#allocation2 + $0xa0] sm:$0xff]
      %v894 = vld [vmem:[#allocation2 + $0xa8] sm:$0xff]
      %v895 = vld [vmem:[#allocation2 + $0xb0] sm:$0xff]
      %v896 = vld [vmem:[#allocation2 + $0xb8] sm:$0xff]
      %v897 = vld [vmem:[#allocation2 + $0xc0] sm:$0xff]
      %v898 = vld [vmem:[#allocation2 + $0xc8] sm:$0xff]
      %v899 = vld [vmem:[#allocation2 + $0xd0] sm:$0xff]
      %v900 = vld [vmem:[#allocation2 + $0xd8] sm:$0xff]
      %v901 = vld [vmem:[#allocation2 + $0xe0] sm:$0xff]
      %v902 = vld [vmem:[#allocation2 + $0xe8] sm:$0x7f]
      %v903 = vld [vmem:[#allocation2 + $0x1] sm:$0xff]
      %v904 = vld [vmem:[#allocation2 + $0x9] sm:$0xff]
      %v905 = vld [vmem:[#allocation2 + $0x11] sm:$0xff]
      %v906 = vld [vmem:[#allocation2 + $0x19] sm:$0xff]
      %v907 = vld [vmem:[#allocation2 + $0x21] sm:$0xff]
      %v908 = vld [vmem:[#allocation2 + $0x29] sm:$0xff]
      %v909 = vld [vmem:[#allocation2 + $0x31] sm:$0xff]
      %v910 = vld [vmem:[#allocation2 + $0x39] sm:$0xff]
      %v911 = vld [vmem:[#allocation2 + $0x41] sm:$0xff]
      %v912 = vld [vmem:[#allocation2 + $0x49] sm:$0xff]
      %v913 = vld [vmem:[#allocation2 + $0x51] sm:$0xff]
      %v914 = vld [vmem:[#allocation2 + $0x59] sm:$0xff]
      %v915 = vld [vmem:[#allocation2 + $0x61] sm:$0xff]
      %v916 = vld [vmem:[#allocation2 + $0x69] sm:$0xff]
      %v917 = vld [vmem:[#allocation2 + $0x71] sm:$0xff]
      %v918 = vld [vmem:[#allocation2 + $0x79] sm:$0xff]
      %v919 = vld [vmem:[#allocation2 + $0x81] sm:$0xff]
      %v920 = vld [vmem:[#allocation2 + $0x89] sm:$0xff]
      %v921 = vld [vmem:[#allocation2 + $0x91] sm:$0xff]
      %v922 = vld [vmem:[#allocation2 + $0x99] sm:$0xff]
      %v923 = vld [vmem:[#allocation2 + $0xa1] sm:$0xff]
      %v924 = vld [vmem:[#allocation2 + $0xa9] sm:$0xff]
      %v925 = vld [vmem:[#allocation2 + $0xb1] sm:$0xff]
      %v926 = vld [vmem:[#allocation2 + $0xb9] sm:$0xff]
      %v927 = vld [vmem:[#allocation2 + $0xc1] sm:$0xff]
      %v928 = vld [vmem:[#allocation2 + $0xc9] sm:$0xff]
      %v929 = vld [vmem:[#allocation2 + $0xd1] sm:$0xff]
      %v930 = vld [vmem:[#allocation2 + $0xd9] sm:$0xff]
      %v931 = vld [vmem:[#allocation2 + $0xe1] sm:$0xff]
      %v932 = vld [vmem:[#allocation2 + $0xe9] sm:$0x7f]
      %v933 = vmax.f32 %v873, %v903
      %v934 = vmax.f32 %v874, %v904
      %v935 = vmax.f32 %v875, %v905
      %v936 = vmax.f32 %v876, %v906
      %v937 = vmax.f32 %v877, %v907
      %v938 = vmax.f32 %v878, %v908
      %v939 = vmax.f32 %v879, %v909
      %v940 = vmax.f32 %v880, %v910
      %v941 = vmax.f32 %v881, %v911
      %v942 = vmax.f32 %v882, %v912
      %v943 = vmax.f32 %v883, %v913
      %v944 = vmax.f32 %v884, %v914
      %v945 = vmax.f32 %v885, %v915
      %v946 = vmax.f32 %v886, %v916
      %v947 = vmax.f32 %v887, %v917
      %v948 = vmax.f32 %v888, %v918
      %v949 = vmax.f32 %v889, %v919
      %v950 = vmax.f32 %v890, %v920
      %v951 = vmax.f32 %v891, %v921
      %v952 = vmax.f32 %v892, %v922
      %v953 = vmax.f32 %v893, %v923
      %v954 = vmax.f32 %v894, %v924
      %v955 = vmax.f32 %v895, %v925
      %v956 = vmax.f32 %v896, %v926
      %v957 = vmax.f32 %v897, %v927
      %v958 = vmax.f32 %v898, %v928
      %v959 = vmax.f32 %v899, %v929
      %v960 = vmax.f32 %v900, %v930
      %v961 = vmax.f32 %v901, %v931
      %v962 = vmax.f32 %v902, %v932
      %v963 = vld [vmem:[#allocation2 + $0xe8] sm:$0xff]
      %v964 = vld [vmem:[#allocation2 + $0xf0] sm:$0xff]
      %v965 = vld [vmem:[#allocation2 + $0xf8] sm:$0x7f]
      %v966 = vld [vmem:[#allocation2 + $0xe9] sm:$0xff]
      %v967 = vld [vmem:[#allocation2 + $0xf1] sm:$0xff]
      %v968 = vld [vmem:[#allocation2 + $0xf9] sm:$0x7f]
      %v969 = vmax.f32 %v963, %v966
      %v970 = vmax.f32 %v964, %v967
      %v971 = vmax.f32 %v965, %v968
      %v972 = vmax.f32 %v933, %v935
      %v973 = vmax.f32 %v934, %v936
      %v974 = vmax.f32 %v935, %v937
      %v975 = vmax.f32 %v936, %v938
      %v976 = vmax.f32 %v937, %v939
      %v977 = vmax.f32 %v938, %v940
      %v978 = vmax.f32 %v939, %v941
      %v979 = vmax.f32 %v940, %v942
      %v980 = vmax.f32 %v941, %v943
      %v981 = vmax.f32 %v942, %v944
      %v982 = vmax.f32 %v943, %v945
      %v983 = vmax.f32 %v944, %v946
      %v984 = vmax.f32 %v945, %v947
      %v985 = vmax.f32 %v946, %v948
      %v986 = vmax.f32 %v947, %v949
      %v987 = vmax.f32 %v948, %v950
      %v988 = vmax.f32 %v949, %v951
      %v989 = vmax.f32 %v950, %v952
      %v990 = vmax.f32 %v951, %v953
      %v991 = vmax.f32 %v952, %v954
      %v992 = vmax.f32 %v953, %v955
      %v993 = vmax.f32 %v954, %v956
      %v994 = vmax.f32 %v955, %v957
      %v995 = vmax.f32 %v956, %v958
      %v996 = vmax.f32 %v957, %v959
      %v997 = vmax.f32 %v958, %v960
      %v998 = vmax.f32 %v959, %v961
      %v999 = vmax.f32 %v960, %v969
      %v1000 = vmax.f32 %v961, %v970
      %v1001 = vmax.f32 %v962, %v971
      %1002 = vst.msk [vmem:[#allocation3] sm:$0xff] %vm840, %v972
      %1003 = vst.msk [vmem:[#allocation3 + $0x8] sm:$0xff] %vm840, %v973
      %1004 = vst.msk [vmem:[#allocation3 + $0x10] sm:$0xff] %vm840, %v974
      %1005 = vst.msk [vmem:[#allocation3 + $0x18] sm:$0xff] %vm840, %v975
      %1006 = vst.msk [vmem:[#allocation3 + $0x20] sm:$0xff] %vm840, %v976
      %1007 = vst.msk [vmem:[#allocation3 + $0x28] sm:$0xff] %vm840, %v977
      %1008 = vst.msk [vmem:[#allocation3 + $0x30] sm:$0xff] %vm840, %v978
      %1009 = vst.msk [vmem:[#allocation3 + $0x38] sm:$0xff] %vm840, %v979
      %1010 = vst.msk [vmem:[#allocation3 + $0x40] sm:$0xff] %vm840, %v980
      %1011 = vst.msk [vmem:[#allocation3 + $0x48] sm:$0xff] %vm840, %v981
      %1012 = vst.msk [vmem:[#allocation3 + $0x50] sm:$0xff] %vm840, %v982
      %1013 = vst.msk [vmem:[#allocation3 + $0x58] sm:$0xff] %vm840, %v983
      %1014 = vst.msk [vmem:[#allocation3 + $0x60] sm:$0xff] %vm840, %v984
      %1015 = vst.msk [vmem:[#allocation3 + $0x68] sm:$0xff] %vm840, %v985
      %1016 = vst.msk [vmem:[#allocation3 + $0x70] sm:$0xff] %vm840, %v986
      %1017 = vst.msk [vmem:[#allocation3 + $0x78] sm:$0xff] %vm840, %v987
      %1018 = vst.msk [vmem:[#allocation3 + $0x80] sm:$0xff] %vm840, %v988
      %1019 = vst.msk [vmem:[#allocation3 + $0x88] sm:$0xff] %vm840, %v989
      %1020 = vst.msk [vmem:[#allocation3 + $0x90] sm:$0xff] %vm840, %v990
      %1021 = vst.msk [vmem:[#allocation3 + $0x98] sm:$0xff] %vm840, %v991
      %1022 = vst.msk [vmem:[#allocation3 + $0xa0] sm:$0xff] %vm840, %v992
      %1023 = vst.msk [vmem:[#allocation3 + $0xa8] sm:$0xff] %vm840, %v993
      %1024 = vst.msk [vmem:[#allocation3 + $0xb0] sm:$0xff] %vm840, %v994
      %1025 = vst.msk [vmem:[#allocation3 + $0xb8] sm:$0xff] %vm840, %v995
      %1026 = vst.msk [vmem:[#allocation3 + $0xc0] sm:$0xff] %vm840, %v996
      %1027 = vst.msk [vmem:[#allocation3 + $0xc8] sm:$0xff] %vm840, %v997
      %1028 = vst.msk [vmem:[#allocation3 + $0xd0] sm:$0xff] %vm840, %v998
      %1029 = vst.msk [vmem:[#allocation3 + $0xd8] sm:$0xff] %vm840, %v999
      %1030 = vst.msk [vmem:[#allocation3 + $0xe0] sm:$0xff] %vm840, %v1000
      %vm1031 = vcmask 129024
      %1032 = vst.msk [vmem:[#allocation3 + $0xe8] sm:$0x7f] %vm1031, %v1001
      %1033 = vst.msk [vmem:[#allocation4] sm:$0xff] %vm840, 0.0
      %1034 = vst.msk [vmem:[#allocation4 + $0x8] sm:$0xff] %vm840, 0.0
      %1035 = vst.msk [vmem:[#allocation4 + $0x10] sm:$0xff] %vm840, 0.0
      %1036 = vst.msk [vmem:[#allocation4 + $0x18] sm:$0xff] %vm840, 0.0
      %1037 = vst.msk [vmem:[#allocation4 + $0x20] sm:$0xff] %vm840, 0.0
      %1038 = vst.msk [vmem:[#allocation4 + $0x28] sm:$0xff] %vm840, 0.0
      %1039 = vst.msk [vmem:[#allocation4 + $0x30] sm:$0xff] %vm840, 0.0
      %1040 = vst.msk [vmem:[#allocation4 + $0x38] sm:$0xff] %vm840, 0.0
      %1041 = vst.msk [vmem:[#allocation4 + $0x40] sm:$0xff] %vm840, 0.0
      %1042 = vst.msk [vmem:[#allocation4 + $0x48] sm:$0xff] %vm840, 0.0
      %1043 = vst.msk [vmem:[#allocation4 + $0x50] sm:$0xff] %vm840, 0.0
      %1044 = vst.msk [vmem:[#allocation4 + $0x58] sm:$0xff] %vm840, 0.0
      %1045 = vst.msk [vmem:[#allocation4 + $0x60] sm:$0xff] %vm840, 0.0
      %1046 = vst.msk [vmem:[#allocation4 + $0x68] sm:$0xff] %vm840, 0.0
      %1047 = vst.msk [vmem:[#allocation4 + $0x70] sm:$0xff] %vm840, 0.0
      %1048 = vst.msk [vmem:[#allocation4 + $0x78] sm:$0xff] %vm840, 0.0
      %1049 = vst.msk [vmem:[#allocation4 + $0x80] sm:$0xff] %vm840, 0.0
      %1050 = vst.msk [vmem:[#allocation4 + $0x88] sm:$0xff] %vm840, 0.0
      %v1051 = vld [vmem:[#allocation3] ss:$2 sm:$0xff]
      %1052 = vst.msk [vmem:[#allocation4 + $0x21] sm:$0xff] %vm840, %v1051
      %s1053 = scalar_lea.vmem [#allocation3], 32
      %v1054 = vld [vmem:[%s1053] ss:$2 sm:$0xff]
      %1055 = vst.msk [vmem:[#allocation4 + $0x2b] sm:$0xff] %vm840, %v1054
      %s1056 = scalar_lea.vmem [#allocation3], 64
      %v1057 = vld [vmem:[%s1056] ss:$2 sm:$0xff]
      %1058 = vst.msk [vmem:[#allocation4 + $0x35] sm:$0xff] %vm840, %v1057
      %s1059 = scalar_lea.vmem [#allocation3], 96
      %v1060 = vld [vmem:[%s1059] ss:$2 sm:$0xff]
      %1061 = vst.msk [vmem:[#allocation4 + $0x3f] sm:$0xff] %vm840, %v1060
      %s1062 = scalar_lea.vmem [#allocation3], 128
      %v1063 = vld [vmem:[%s1062] ss:$2 sm:$0xff]
      %1064 = vst.msk [vmem:[#allocation4 + $0x49] sm:$0xff] %vm840, %v1063
      %s1065 = scalar_lea.vmem [#allocation3], 160
      %v1066 = vld [vmem:[%s1065] ss:$2 sm:$0xff]
      %1067 = vst.msk [vmem:[#allocation4 + $0x53] sm:$0xff] %vm840, %v1066
      %s1068 = scalar_lea.vmem [#allocation3], 192
      %v1069 = vld [vmem:[%s1068] ss:$2 sm:$0xff]
      %1070 = vst.msk [vmem:[#allocation4 + $0x5d] sm:$0xff] %vm840, %v1069
      %s1071 = scalar_lea.vmem [#allocation3], 224
      %v1072 = vld [vmem:[%s1071] ss:$2 sm:$0xff]
      %1073 = vst.msk [vmem:[#allocation4 + $0x67] sm:$0xff] %vm840, %v1072
      %v1074 = vld [vmem:[#allocation4] sm:$0xff]
      %v1075 = vld [vmem:[#allocation4 + $0x8] sm:$0xff]
      %v1076 = vld [vmem:[#allocation4 + $0x10] sm:$0xff]
      %v1077 = vld [vmem:[#allocation4 + $0x18] sm:$0xff]
      %v1078 = vld [vmem:[#allocation4 + $0x20] sm:$0xff]
      %v1079 = vld [vmem:[#allocation4 + $0x28] sm:$0xff]
      %v1080 = vld [vmem:[#allocation4 + $0x30] sm:$0xff]
      %v1081 = vld [vmem:[#allocation4 + $0x38] sm:$0xff]
      %v1082 = vld [vmem:[#allocation4 + $0x40] sm:$0xff]
      %v1083 = vld [vmem:[#allocation4 + $0x48] sm:$0xff]
      %v1084 = vld [vmem:[#allocation4 + $0x50] sm:$0xff]
      %v1085 = vld [vmem:[#allocation4 + $0x58] sm:$0xff]
      %v1086 = vld [vmem:[#allocation4 + $0x60] sm:$0xff]
      %v1087 = vld [vmem:[#allocation4 + $0x68] sm:$0xff]
      %v1088 = vld [vmem:[#allocation4 + $0x70] sm:$0xff]
      %v1089 = vld [vmem:[#allocation4 + $0x78] sm:$0x3]
      %v1090 = vld [vmem:[%s3] sm:$0xff]
      %v1091 = vld [vmem:[%s3 + $0x8] sm:$0xff]
      %v1092 = vld [vmem:[#allocation4 + $0x1] sm:$0xff]
      %v1093 = vld [vmem:[#allocation4 + $0x9] sm:$0xff]
      %v1094 = vld [vmem:[#allocation4 + $0x11] sm:$0xff]
      %v1095 = vld [vmem:[#allocation4 + $0x19] sm:$0xff]
      %v1096 = vld [vmem:[#allocation4 + $0x21] sm:$0xff]
      %v1097 = vld [vmem:[#allocation4 + $0x29] sm:$0xff]
      %v1098 = vld [vmem:[#allocation4 + $0x31] sm:$0xff]
      %v1099 = vld [vmem:[#allocation4 + $0x39] sm:$0xff]
      %v1100 = vld [vmem:[#allocation4 + $0x41] sm:$0xff]
      %v1101 = vld [vmem:[#allocation4 + $0x49] sm:$0xff]
      %v1102 = vld [vmem:[#allocation4 + $0x51] sm:$0xff]
      %v1103 = vld [vmem:[#allocation4 + $0x59] sm:$0xff]
      %v1104 = vld [vmem:[#allocation4 + $0x61] sm:$0xff]
      %v1105 = vld [vmem:[#allocation4 + $0x69] sm:$0xff]
      %v1106 = vld [vmem:[#allocation4 + $0x71] sm:$0xff]
      %v1107 = vld [vmem:[#allocation4 + $0x79] sm:$0x3]
      %v1108 = vld [vmem:[%s3 + $0x10] sm:$0xff]
      %v1109 = vld [vmem:[%s3 + $0x18] sm:$0xff]
      %v1111 = vsel %vm840, %v1092, 0
      %v1114 = vsel %vm840, %v1093, 0
      %v1117 = vsel %vm840, %v1094, 0
      %v1120 = vsel %vm840, %v1095, 0
      %v1123 = vsel %vm840, %v1096, 0
      %v1126 = vsel %vm840, %v1097, 0
      %v1129 = vsel %vm840, %v1098, 0
      %v1132 = vsel %vm840, %v1099, 0
      %v1135 = vsel %vm840, %v1100, 0
      %v1138 = vsel %vm840, %v1101, 0
      %v1141 = vsel %vm840, %v1102, 0
      %v1144 = vsel %vm840, %v1103, 0
      %v1147 = vsel %vm840, %v1104, 0
      %v1150 = vsel %vm840, %v1105, 0
      %v1153 = vsel %vm840, %v1106, 0
      %v1156 = vsel %vm840, %v1107, 0
      %1158 = vmatprep.subr.mxu0 0.0
      %1159 = vmatpush1.msra.mxu0 0.0
      %1160 = vmatprep.subr.mxu0 0.0
      %1161 = vmatpush1.msra.mxu0 0.0
      %1162 = vmatprep.subr.mxu0 0.0
      %1163 = vmatpush1.msra.mxu0 0.0
      %1164 = vmatprep.subr.mxu0 0.0
      %1165 = vmatpush1.msra.mxu0 0.0
      %1166 = vmatprep.subr.mxu0 0.0
      %1167 = vmatpush1.msra.mxu0 0.0
      %1168 = vmatprep.subr.mxu0 0.0
      %1169 = vmatpush1.msra.mxu0 0.0
      %1170 = vmatprep.subr.mxu0 0.0
      %1171 = vmatpush1.msra.mxu0 0.0
      %1172 = vmatprep.subr.mxu0 0.0
      %1173 = vmatpush1.msra.mxu0 0.0
      %1174 = vmatprep.subr.mxu0 0.0
      %1175 = vmatpush1.msra.mxu0 0.0
      %1176 = vmatprep.subr.mxu0 0.0
      %1177 = vmatpush1.msra.mxu0 0.0
      %1178 = vmatprep.subr.mxu0 0.0
      %1179 = vmatpush1.msra.mxu0 0.0
      %1180 = vmatprep.subr.mxu0 0.0
      %1181 = vmatpush1.msra.mxu0 0.0
      %1182 = vmatprep.subr.mxu0 0.0
      %1183 = vmatpush1.msra.mxu0 0.0
      %1184 = vmatprep.subr.mxu0 0.0
      %1185 = vmatpush1.msra.mxu0 0.0
      %1186 = vmatprep.subr.mxu0 0.0
      %1187 = vmatpush1.msra.mxu0 %v1109
      %1188 = vmatprep.subr.mxu0 0.0
      %1189 = vmatpush1.msra.mxu0 %v1108
      %1190 = vmatprep.subr.mxu0 0.0
      %1191 = vmatpush2.msra.mxu0 0.0
      %1192 = vmatprep.subr.mxu0 0.0
      %1193 = vmatpush2.msra.mxu0 0.0
      %1194 = vmatprep.subr.mxu0 0.0
      %1195 = vmatpush2.msra.mxu0 0.0
      %1196 = vmatprep.subr.mxu0 0.0
      %1197 = vmatpush2.msra.mxu0 0.0
      %1198 = vmatprep.subr.mxu0 0.0
      %1199 = vmatpush2.msra.mxu0 0.0
      %1200 = vmatprep.subr.mxu0 0.0
      %1201 = vmatpush2.msra.mxu0 0.0
      %1202 = vmatprep.subr.mxu0 0.0
      %1203 = vmatpush2.msra.mxu0 0.0
      %1204 = vmatprep.subr.mxu0 0.0
      %1205 = vmatpush2.msra.mxu0 0.0
      %1206 = vmatprep.subr.mxu0 0.0
      %1207 = vmatpush2.msra.mxu0 0.0
      %1208 = vmatprep.subr.mxu0 0.0
      %1209 = vmatpush2.msra.mxu0 0.0
      %1210 = vmatprep.subr.mxu0 0.0
      %1211 = vmatpush2.msra.mxu0 0.0
      %1212 = vmatprep.subr.mxu0 0.0
      %1213 = vmatpush2.msra.mxu0 0.0
      %1214 = vmatprep.subr.mxu0 0.0
      %1215 = vmatpush2.msra.mxu0 0.0
      %1216 = vmatprep.subr.mxu0 0.0
      %1217 = vmatpush2.msra.mxu0 0.0
      %1218 = vmatprep.subr.mxu0 0.0
      %1219 = vmatpush2.msra.mxu0 0.0
      %1220 = vmatprep.subr.mxu0 0.0
      %1221 = vmatpush2.msra.mxu0 0.0
      %1222 = vmatprep.mubr.f32.mxu0 0.0
      %1223 = vmatmul.mubr.f32.gmra.mxu0 %v1111
      %v1224 = vpop.f32.mrf.mxu0
      %v1225 = vadd.f32 0.0, %v1224
      %v1226 = vpop.f32.mrf.mxu0
      %1227 = vmatprep.mubr.f32.mxu0 0.0
      %1228 = vmatmul.mubr.f32.gmra.mxu0 %v1114
      %v1229 = vpop.f32.mrf.mxu0
      %v1230 = vadd.f32 0.0, %v1229
      %v1231 = vpop.f32.mrf.mxu0
      %1232 = vmatprep.mubr.f32.mxu0 0.0
      %1233 = vmatmul.mubr.f32.gmra.mxu0 %v1117
      %v1234 = vpop.f32.mrf.mxu0
      %v1235 = vadd.f32 0.0, %v1234
      %v1236 = vpop.f32.mrf.mxu0
      %1237 = vmatprep.mubr.f32.mxu0 0.0
      %1238 = vmatmul.mubr.f32.gmra.mxu0 %v1120
      %v1239 = vpop.f32.mrf.mxu0
      %v1240 = vadd.f32 0.0, %v1239
      %v1241 = vpop.f32.mrf.mxu0
      %1242 = vmatprep.mubr.f32.mxu0 0.0
      %1243 = vmatmul.mubr.f32.gmra.mxu0 %v1123
      %v1244 = vpop.f32.mrf.mxu0
      %v1245 = vadd.f32 0.0, %v1244
      %v1246 = vpop.f32.mrf.mxu0
      %1247 = vmatprep.mubr.f32.mxu0 0.0
      %1248 = vmatmul.mubr.f32.gmra.mxu0 %v1126
      %v1249 = vpop.f32.mrf.mxu0
      %v1250 = vadd.f32 0.0, %v1249
      %v1251 = vpop.f32.mrf.mxu0
      %1252 = vmatprep.mubr.f32.mxu0 0.0
      %1253 = vmatmul.mubr.f32.gmra.mxu0 %v1129
      %v1254 = vpop.f32.mrf.mxu0
      %v1255 = vadd.f32 0.0, %v1254
      %v1256 = vpop.f32.mrf.mxu0
      %1257 = vmatprep.mubr.f32.mxu0 0.0
      %1258 = vmatmul.mubr.f32.gmra.mxu0 %v1132
      %v1259 = vpop.f32.mrf.mxu0
      %v1260 = vadd.f32 0.0, %v1259
      %v1261 = vpop.f32.mrf.mxu0
      %1262 = vmatprep.mubr.f32.mxu0 0.0
      %1263 = vmatmul.mubr.f32.gmra.mxu0 %v1135
      %v1264 = vpop.f32.mrf.mxu0
      %v1265 = vadd.f32 0.0, %v1264
      %v1266 = vpop.f32.mrf.mxu0
      %1267 = vmatprep.mubr.f32.mxu0 0.0
      %1268 = vmatmul.mubr.f32.gmra.mxu0 %v1138
      %v1269 = vpop.f32.mrf.mxu0
      %v1270 = vadd.f32 0.0, %v1269
      %v1271 = vpop.f32.mrf.mxu0
      %1272 = vmatprep.mubr.f32.mxu0 0.0
      %1273 = vmatmul.mubr.f32.gmra.mxu0 %v1141
      %v1274 = vpop.f32.mrf.mxu0
      %v1275 = vadd.f32 0.0, %v1274
      %v1276 = vpop.f32.mrf.mxu0
      %1277 = vmatprep.mubr.f32.mxu0 0.0
      %1278 = vmatmul.mubr.f32.gmra.mxu0 %v1144
      %v1279 = vpop.f32.mrf.mxu0
      %v1280 = vadd.f32 0.0, %v1279
      %v1281 = vpop.f32.mrf.mxu0
      %1282 = vmatprep.mubr.f32.mxu0 0.0
      %1283 = vmatmul.mubr.f32.gmra.mxu0 %v1147
      %v1284 = vpop.f32.mrf.mxu0
      %v1285 = vadd.f32 0.0, %v1284
      %v1286 = vpop.f32.mrf.mxu0
      %1287 = vmatprep.mubr.f32.mxu0 0.0
      %1288 = vmatmul.mubr.f32.gmra.mxu0 %v1150
      %v1289 = vpop.f32.mrf.mxu0
      %v1290 = vadd.f32 0.0, %v1289
      %v1291 = vpop.f32.mrf.mxu0
      %1292 = vmatprep.mubr.f32.mxu0 0.0
      %1293 = vmatmul.mubr.f32.gmra.mxu0 %v1153
      %v1294 = vpop.f32.mrf.mxu0
      %v1295 = vadd.f32 0.0, %v1294
      %v1296 = vpop.f32.mrf.mxu0
      %1297 = vmatprep.mubr.f32.mxu0 0.0
      %1298 = vmatmul.mubr.f32.gmra.mxu0 %v1156
      %v1299 = vpop.f32.mrf.mxu0
      %v1300 = vadd.f32 0.0, %v1299
      %v1301 = vpop.f32.mrf.mxu0
      %1302 = vdwg.mxu0
      %v1304 = vsel %vm840, %v1074, 0
      %v1307 = vsel %vm840, %v1075, 0
      %v1310 = vsel %vm840, %v1076, 0
      %v1313 = vsel %vm840, %v1077, 0
      %v1316 = vsel %vm840, %v1078, 0
      %v1319 = vsel %vm840, %v1079, 0
      %v1322 = vsel %vm840, %v1080, 0
      %v1325 = vsel %vm840, %v1081, 0
      %v1328 = vsel %vm840, %v1082, 0
      %v1331 = vsel %vm840, %v1083, 0
      %v1334 = vsel %vm840, %v1084, 0
      %v1337 = vsel %vm840, %v1085, 0
      %v1340 = vsel %vm840, %v1086, 0
      %v1343 = vsel %vm840, %v1087, 0
      %v1346 = vsel %vm840, %v1088, 0
      %v1349 = vsel %vm840, %v1089, 0
      %1351 = vmatprep.subr.mxu0 0.0
      %1352 = vmatpush1.msra.mxu0 0.0
      %1353 = vmatprep.subr.mxu0 0.0
      %1354 = vmatpush1.msra.mxu0 0.0
      %1355 = vmatprep.subr.mxu0 0.0
      %1356 = vmatpush1.msra.mxu0 0.0
      %1357 = vmatprep.subr.mxu0 0.0
      %1358 = vmatpush1.msra.mxu0 0.0
      %1359 = vmatprep.subr.mxu0 0.0
      %1360 = vmatpush1.msra.mxu0 0.0
      %1361 = vmatprep.subr.mxu0 0.0
      %1362 = vmatpush1.msra.mxu0 0.0
      %1363 = vmatprep.subr.mxu0 0.0
      %1364 = vmatpush1.msra.mxu0 0.0
      %1365 = vmatprep.subr.mxu0 0.0
      %1366 = vmatpush1.msra.mxu0 0.0
      %1367 = vmatprep.subr.mxu0 0.0
      %1368 = vmatpush1.msra.mxu0 0.0
      %1369 = vmatprep.subr.mxu0 0.0
      %1370 = vmatpush1.msra.mxu0 0.0
      %1371 = vmatprep.subr.mxu0 0.0
      %1372 = vmatpush1.msra.mxu0 0.0
      %1373 = vmatprep.subr.mxu0 0.0
      %1374 = vmatpush1.msra.mxu0 0.0
      %1375 = vmatprep.subr.mxu0 0.0
      %1376 = vmatpush1.msra.mxu0 0.0
      %1377 = vmatprep.subr.mxu0 0.0
      %1378 = vmatpush1.msra.mxu0 0.0
      %1379 = vmatprep.subr.mxu0 0.0
      %1380 = vmatpush1.msra.mxu0 %v1091
      %1381 = vmatprep.subr.mxu0 0.0
      %1382 = vmatpush1.msra.mxu0 %v1090
      %1383 = vmatprep.subr.mxu0 0.0
      %1384 = vmatpush2.msra.mxu0 0.0
      %1385 = vmatprep.subr.mxu0 0.0
      %1386 = vmatpush2.msra.mxu0 0.0
      %1387 = vmatprep.subr.mxu0 0.0
      %1388 = vmatpush2.msra.mxu0 0.0
      %1389 = vmatprep.subr.mxu0 0.0
      %1390 = vmatpush2.msra.mxu0 0.0
      %1391 = vmatprep.subr.mxu0 0.0
      %1392 = vmatpush2.msra.mxu0 0.0
      %1393 = vmatprep.subr.mxu0 0.0
      %1394 = vmatpush2.msra.mxu0 0.0
      %1395 = vmatprep.subr.mxu0 0.0
      %1396 = vmatpush2.msra.mxu0 0.0
      %1397 = vmatprep.subr.mxu0 0.0
      %1398 = vmatpush2.msra.mxu0 0.0
      %1399 = vmatprep.subr.mxu0 0.0
      %1400 = vmatpush2.msra.mxu0 0.0
      %1401 = vmatprep.subr.mxu0 0.0
      %1402 = vmatpush2.msra.mxu0 0.0
      %1403 = vmatprep.subr.mxu0 0.0
      %1404 = vmatpush2.msra.mxu0 0.0
      %1405 = vmatprep.subr.mxu0 0.0
      %1406 = vmatpush2.msra.mxu0 0.0
      %1407 = vmatprep.subr.mxu0 0.0
      %1408 = vmatpush2.msra.mxu0 0.0
      %1409 = vmatprep.subr.mxu0 0.0
      %1410 = vmatpush2.msra.mxu0 0.0
      %1411 = vmatprep.subr.mxu0 0.0
      %1412 = vmatpush2.msra.mxu0 0.0
      %1413 = vmatprep.subr.mxu0 0.0
      %1414 = vmatpush2.msra.mxu0 0.0
      %1415 = vmatprep.mubr.f32.mxu0 0.0
      %1416 = vmatmul.mubr.f32.gmra.mxu0 %v1304
      %v1417 = vpop.f32.mrf.mxu0
      %v1418 = vadd.f32 %v1225, %v1417
      %v1419 = vpop.f32.mrf.mxu0
      %1420 = vmatprep.mubr.f32.mxu0 0.0
      %1421 = vmatmul.mubr.f32.gmra.mxu0 %v1307
      %v1422 = vpop.f32.mrf.mxu0
      %v1423 = vadd.f32 %v1230, %v1422
      %v1424 = vpop.f32.mrf.mxu0
      %1425 = vmatprep.mubr.f32.mxu0 0.0
      %1426 = vmatmul.mubr.f32.gmra.mxu0 %v1310
      %v1427 = vpop.f32.mrf.mxu0
      %v1428 = vadd.f32 %v1235, %v1427
      %v1429 = vpop.f32.mrf.mxu0
      %1430 = vmatprep.mubr.f32.mxu0 0.0
      %1431 = vmatmul.mubr.f32.gmra.mxu0 %v1313
      %v1432 = vpop.f32.mrf.mxu0
      %v1433 = vadd.f32 %v1240, %v1432
      %v1434 = vpop.f32.mrf.mxu0
      %1435 = vmatprep.mubr.f32.mxu0 0.0
      %1436 = vmatmul.mubr.f32.gmra.mxu0 %v1316
      %v1437 = vpop.f32.mrf.mxu0
      %v1438 = vadd.f32 %v1245, %v1437
      %v1439 = vpop.f32.mrf.mxu0
      %1440 = vmatprep.mubr.f32.mxu0 0.0
      %1441 = vmatmul.mubr.f32.gmra.mxu0 %v1319
      %v1442 = vpop.f32.mrf.mxu0
      %v1443 = vadd.f32 %v1250, %v1442
      %v1444 = vpop.f32.mrf.mxu0
      %1445 = vmatprep.mubr.f32.mxu0 0.0
      %1446 = vmatmul.mubr.f32.gmra.mxu0 %v1322
      %v1447 = vpop.f32.mrf.mxu0
      %v1448 = vadd.f32 %v1255, %v1447
      %v1449 = vpop.f32.mrf.mxu0
      %1450 = vmatprep.mubr.f32.mxu0 0.0
      %1451 = vmatmul.mubr.f32.gmra.mxu0 %v1325
      %v1452 = vpop.f32.mrf.mxu0
      %v1453 = vadd.f32 %v1260, %v1452
      %v1454 = vpop.f32.mrf.mxu0
      %1455 = vmatprep.mubr.f32.mxu0 0.0
      %1456 = vmatmul.mubr.f32.gmra.mxu0 %v1328
      %v1457 = vpop.f32.mrf.mxu0
      %v1458 = vadd.f32 %v1265, %v1457
      %v1459 = vpop.f32.mrf.mxu0
      %1460 = vmatprep.mubr.f32.mxu0 0.0
      %1461 = vmatmul.mubr.f32.gmra.mxu0 %v1331
      %v1462 = vpop.f32.mrf.mxu0
      %v1463 = vadd.f32 %v1270, %v1462
      %v1464 = vpop.f32.mrf.mxu0
      %1465 = vmatprep.mubr.f32.mxu0 0.0
      %1466 = vmatmul.mubr.f32.gmra.mxu0 %v1334
      %v1467 = vpop.f32.mrf.mxu0
      %v1468 = vadd.f32 %v1275, %v1467
      %v1469 = vpop.f32.mrf.mxu0
      %1470 = vmatprep.mubr.f32.mxu0 0.0
      %1471 = vmatmul.mubr.f32.gmra.mxu0 %v1337
      %v1472 = vpop.f32.mrf.mxu0
      %v1473 = vadd.f32 %v1280, %v1472
      %v1474 = vpop.f32.mrf.mxu0
      %1475 = vmatprep.mubr.f32.mxu0 0.0
      %1476 = vmatmul.mubr.f32.gmra.mxu0 %v1340
      %v1477 = vpop.f32.mrf.mxu0
      %v1478 = vadd.f32 %v1285, %v1477
      %v1479 = vpop.f32.mrf.mxu0
      %1480 = vmatprep.mubr.f32.mxu0 0.0
      %1481 = vmatmul.mubr.f32.gmra.mxu0 %v1343
      %v1482 = vpop.f32.mrf.mxu0
      %v1483 = vadd.f32 %v1290, %v1482
      %v1484 = vpop.f32.mrf.mxu0
      %1485 = vmatprep.mubr.f32.mxu0 0.0
      %1486 = vmatmul.mubr.f32.gmra.mxu0 %v1346
      %v1487 = vpop.f32.mrf.mxu0
      %v1488 = vadd.f32 %v1295, %v1487
      %v1489 = vpop.f32.mrf.mxu0
      %1490 = vmatprep.mubr.f32.mxu0 0.0
      %1491 = vmatmul.mubr.f32.gmra.mxu0 %v1349
      %v1492 = vpop.f32.mrf.mxu0
      %v1493 = vadd.f32 %v1300, %v1492
      %v1494 = vpop.f32.mrf.mxu0
      %1495 = vdwg.mxu0
      %v1496 = vld [vmem:[#allocation4 + $0x2] sm:$0xff]
      %v1497 = vld [vmem:[#allocation4 + $0xa] sm:$0xff]
      %v1498 = vld [vmem:[#allocation4 + $0x12] sm:$0xff]
      %v1499 = vld [vmem:[#allocation4 + $0x1a] sm:$0xff]
      %v1500 = vld [vmem:[#allocation4 + $0x22] sm:$0xff]
      %v1501 = vld [vmem:[#allocation4 + $0x2a] sm:$0xff]
      %v1502 = vld [vmem:[#allocation4 + $0x32] sm:$0xff]
      %v1503 = vld [vmem:[#allocation4 + $0x3a] sm:$0xff]
      %v1504 = vld [vmem:[#allocation4 + $0x42] sm:$0xff]
      %v1505 = vld [vmem:[#allocation4 + $0x4a] sm:$0xff]
      %v1506 = vld [vmem:[#allocation4 + $0x52] sm:$0xff]
      %v1507 = vld [vmem:[#allocation4 + $0x5a] sm:$0xff]
      %v1508 = vld [vmem:[#allocation4 + $0x62] sm:$0xff]
      %v1509 = vld [vmem:[#allocation4 + $0x6a] sm:$0xff]
      %v1510 = vld [vmem:[#allocation4 + $0x72] sm:$0xff]
      %v1511 = vld [vmem:[#allocation4 + $0x7a] sm:$0x3]
      %v1512 = vld [vmem:[%s3 + $0x20] sm:$0xff]
      %v1513 = vld [vmem:[%s3 + $0x28] sm:$0xff]
      %v1515 = vsel %vm840, %v1496, 0
      %v1518 = vsel %vm840, %v1497, 0
      %v1521 = vsel %vm840, %v1498, 0
      %v1524 = vsel %vm840, %v1499, 0
      %v1527 = vsel %vm840, %v1500, 0
      %v1530 = vsel %vm840, %v1501, 0
      %v1533 = vsel %vm840, %v1502, 0
      %v1536 = vsel %vm840, %v1503, 0
      %v1539 = vsel %vm840, %v1504, 0
      %v1542 = vsel %vm840, %v1505, 0
      %v1545 = vsel %vm840, %v1506, 0
      %v1548 = vsel %vm840, %v1507, 0
      %v1551 = vsel %vm840, %v1508, 0
      %v1554 = vsel %vm840, %v1509, 0
      %v1557 = vsel %vm840, %v1510, 0
      %v1560 = vsel %vm840, %v1511, 0
      %1562 = vmatprep.subr.mxu0 0.0
      %1563 = vmatpush1.msra.mxu0 0.0
      %1564 = vmatprep.subr.mxu0 0.0
      %1565 = vmatpush1.msra.mxu0 0.0
      %1566 = vmatprep.subr.mxu0 0.0
      %1567 = vmatpush1.msra.mxu0 0.0
      %1568 = vmatprep.subr.mxu0 0.0
      %1569 = vmatpush1.msra.mxu0 0.0
      %1570 = vmatprep.subr.mxu0 0.0
      %1571 = vmatpush1.msra.mxu0 0.0
      %1572 = vmatprep.subr.mxu0 0.0
      %1573 = vmatpush1.msra.mxu0 0.0
      %1574 = vmatprep.subr.mxu0 0.0
      %1575 = vmatpush1.msra.mxu0 0.0
      %1576 = vmatprep.subr.mxu0 0.0
      %1577 = vmatpush1.msra.mxu0 0.0
      %1578 = vmatprep.subr.mxu0 0.0
      %1579 = vmatpush1.msra.mxu0 0.0
      %1580 = vmatprep.subr.mxu0 0.0
      %1581 = vmatpush1.msra.mxu0 0.0
      %1582 = vmatprep.subr.mxu0 0.0
      %1583 = vmatpush1.msra.mxu0 0.0
      %1584 = vmatprep.subr.mxu0 0.0
      %1585 = vmatpush1.msra.mxu0 0.0
      %1586 = vmatprep.subr.mxu0 0.0
      %1587 = vmatpush1.msra.mxu0 0.0
      %1588 = vmatprep.subr.mxu0 0.0
      %1589 = vmatpush1.msra.mxu0 0.0
      %1590 = vmatprep.subr.mxu0 0.0
      %1591 = vmatpush1.msra.mxu0 %v1513
      %1592 = vmatprep.subr.mxu0 0.0
      %1593 = vmatpush1.msra.mxu0 %v1512
      %1594 = vmatprep.subr.mxu0 0.0
      %1595 = vmatpush2.msra.mxu0 0.0
      %1596 = vmatprep.subr.mxu0 0.0
      %1597 = vmatpush2.msra.mxu0 0.0
      %1598 = vmatprep.subr.mxu0 0.0
      %1599 = vmatpush2.msra.mxu0 0.0
      %1600 = vmatprep.subr.mxu0 0.0
      %1601 = vmatpush2.msra.mxu0 0.0
      %1602 = vmatprep.subr.mxu0 0.0
      %1603 = vmatpush2.msra.mxu0 0.0
      %1604 = vmatprep.subr.mxu0 0.0
      %1605 = vmatpush2.msra.mxu0 0.0
      %1606 = vmatprep.subr.mxu0 0.0
      %1607 = vmatpush2.msra.mxu0 0.0
      %1608 = vmatprep.subr.mxu0 0.0
      %1609 = vmatpush2.msra.mxu0 0.0
      %1610 = vmatprep.subr.mxu0 0.0
      %1611 = vmatpush2.msra.mxu0 0.0
      %1612 = vmatprep.subr.mxu0 0.0
      %1613 = vmatpush2.msra.mxu0 0.0
      %1614 = vmatprep.subr.mxu0 0.0
      %1615 = vmatpush2.msra.mxu0 0.0
      %1616 = vmatprep.subr.mxu0 0.0
      %1617 = vmatpush2.msra.mxu0 0.0
      %1618 = vmatprep.subr.mxu0 0.0
      %1619 = vmatpush2.msra.mxu0 0.0
      %1620 = vmatprep.subr.mxu0 0.0
      %1621 = vmatpush2.msra.mxu0 0.0
      %1622 = vmatprep.subr.mxu0 0.0
      %1623 = vmatpush2.msra.mxu0 0.0
      %1624 = vmatprep.subr.mxu0 0.0
      %1625 = vmatpush2.msra.mxu0 0.0
      %1626 = vmatprep.mubr.f32.mxu0 0.0
      %1627 = vmatmul.mubr.f32.gmra.mxu0 %v1515
      %v1628 = vpop.f32.mrf.mxu0
      %v1629 = vadd.f32 0.0, %v1628
      %v1630 = vpop.f32.mrf.mxu0
      %1631 = vmatprep.mubr.f32.mxu0 0.0
      %1632 = vmatmul.mubr.f32.gmra.mxu0 %v1518
      %v1633 = vpop.f32.mrf.mxu0
      %v1634 = vadd.f32 0.0, %v1633
      %v1635 = vpop.f32.mrf.mxu0
      %1636 = vmatprep.mubr.f32.mxu0 0.0
      %1637 = vmatmul.mubr.f32.gmra.mxu0 %v1521
      %v1638 = vpop.f32.mrf.mxu0
      %v1639 = vadd.f32 0.0, %v1638
      %v1640 = vpop.f32.mrf.mxu0
      %1641 = vmatprep.mubr.f32.mxu0 0.0
      %1642 = vmatmul.mubr.f32.gmra.mxu0 %v1524
      %v1643 = vpop.f32.mrf.mxu0
      %v1644 = vadd.f32 0.0, %v1643
      %v1645 = vpop.f32.mrf.mxu0
      %1646 = vmatprep.mubr.f32.mxu0 0.0
      %1647 = vmatmul.mubr.f32.gmra.mxu0 %v1527
      %v1648 = vpop.f32.mrf.mxu0
      %v1649 = vadd.f32 0.0, %v1648
      %v1650 = vpop.f32.mrf.mxu0
      %1651 = vmatprep.mubr.f32.mxu0 0.0
      %1652 = vmatmul.mubr.f32.gmra.mxu0 %v1530
      %v1653 = vpop.f32.mrf.mxu0
      %v1654 = vadd.f32 0.0, %v1653
      %v1655 = vpop.f32.mrf.mxu0
      %1656 = vmatprep.mubr.f32.mxu0 0.0
      %1657 = vmatmul.mubr.f32.gmra.mxu0 %v1533
      %v1658 = vpop.f32.mrf.mxu0
      %v1659 = vadd.f32 0.0, %v1658
      %v1660 = vpop.f32.mrf.mxu0
      %1661 = vmatprep.mubr.f32.mxu0 0.0
      %1662 = vmatmul.mubr.f32.gmra.mxu0 %v1536
      %v1663 = vpop.f32.mrf.mxu0
      %v1664 = vadd.f32 0.0, %v1663
      %v1665 = vpop.f32.mrf.mxu0
      %1666 = vmatprep.mubr.f32.mxu0 0.0
      %1667 = vmatmul.mubr.f32.gmra.mxu0 %v1539
      %v1668 = vpop.f32.mrf.mxu0
      %v1669 = vadd.f32 0.0, %v1668
      %v1670 = vpop.f32.mrf.mxu0
      %1671 = vmatprep.mubr.f32.mxu0 0.0
      %1672 = vmatmul.mubr.f32.gmra.mxu0 %v1542
      %v1673 = vpop.f32.mrf.mxu0
      %v1674 = vadd.f32 0.0, %v1673
      %v1675 = vpop.f32.mrf.mxu0
      %1676 = vmatprep.mubr.f32.mxu0 0.0
      %1677 = vmatmul.mubr.f32.gmra.mxu0 %v1545
      %v1678 = vpop.f32.mrf.mxu0
      %v1679 = vadd.f32 0.0, %v1678
      %v1680 = vpop.f32.mrf.mxu0
      %1681 = vmatprep.mubr.f32.mxu0 0.0
      %1682 = vmatmul.mubr.f32.gmra.mxu0 %v1548
      %v1683 = vpop.f32.mrf.mxu0
      %v1684 = vadd.f32 0.0, %v1683
      %v1685 = vpop.f32.mrf.mxu0
      %1686 = vmatprep.mubr.f32.mxu0 0.0
      %1687 = vmatmul.mubr.f32.gmra.mxu0 %v1551
      %v1688 = vpop.f32.mrf.mxu0
      %v1689 = vadd.f32 0.0, %v1688
      %v1690 = vpop.f32.mrf.mxu0
      %1691 = vmatprep.mubr.f32.mxu0 0.0
      %1692 = vmatmul.mubr.f32.gmra.mxu0 %v1554
      %v1693 = vpop.f32.mrf.mxu0
      %v1694 = vadd.f32 0.0, %v1693
      %v1695 = vpop.f32.mrf.mxu0
      %1696 = vmatprep.mubr.f32.mxu0 0.0
      %1697 = vmatmul.mubr.f32.gmra.mxu0 %v1557
      %v1698 = vpop.f32.mrf.mxu0
      %v1699 = vadd.f32 0.0, %v1698
      %v1700 = vpop.f32.mrf.mxu0
      %1701 = vmatprep.mubr.f32.mxu0 0.0
      %1702 = vmatmul.mubr.f32.gmra.mxu0 %v1560
      %v1703 = vpop.f32.mrf.mxu0
      %v1704 = vadd.f32 0.0, %v1703
      %v1705 = vpop.f32.mrf.mxu0
      %1706 = vdwg.mxu0
      %v1707 = vadd.f32 %v1418, %v1629
      %v1708 = vadd.f32 %v1423, %v1634
      %v1709 = vadd.f32 %v1428, %v1639
      %v1710 = vadd.f32 %v1433, %v1644
      %v1711 = vadd.f32 %v1438, %v1649
      %v1712 = vadd.f32 %v1443, %v1654
      %v1713 = vadd.f32 %v1448, %v1659
      %v1714 = vadd.f32 %v1453, %v1664
      %v1715 = vadd.f32 %v1458, %v1669
      %v1716 = vadd.f32 %v1463, %v1674
      %v1717 = vadd.f32 %v1468, %v1679
      %v1718 = vadd.f32 %v1473, %v1684
      %v1719 = vadd.f32 %v1478, %v1689
      %v1720 = vadd.f32 %v1483, %v1694
      %v1721 = vadd.f32 %v1488, %v1699
      %v1722 = vadd.f32 %v1493, %v1704
      %v1723 = vld [vmem:[#allocation4 + $0xa] sm:$0xff]
      %v1724 = vld [vmem:[#allocation4 + $0x12] sm:$0xff]
      %v1725 = vld [vmem:[#allocation4 + $0x1a] sm:$0xff]
      %v1726 = vld [vmem:[#allocation4 + $0x22] sm:$0xff]
      %v1727 = vld [vmem:[#allocation4 + $0x2a] sm:$0xff]
      %v1728 = vld [vmem:[#allocation4 + $0x32] sm:$0xff]
      %v1729 = vld [vmem:[#allocation4 + $0x3a] sm:$0xff]
      %v1730 = vld [vmem:[#allocation4 + $0x42] sm:$0xff]
      %v1731 = vld [vmem:[#allocation4 + $0x4a] sm:$0xff]
      %v1732 = vld [vmem:[#allocation4 + $0x52] sm:$0xff]
      %v1733 = vld [vmem:[#allocation4 + $0x5a] sm:$0xff]
      %v1734 = vld [vmem:[#allocation4 + $0x62] sm:$0xff]
      %v1735 = vld [vmem:[#allocation4 + $0x6a] sm:$0xff]
      %v1736 = vld [vmem:[#allocation4 + $0x72] sm:$0xff]
      %v1737 = vld [vmem:[#allocation4 + $0x7a] sm:$0xff]
      %v1738 = vld [vmem:[#allocation4 + $0x82] sm:$0x3]
      %v1739 = vld [vmem:[%s3 + $0x30] sm:$0xff]
      %v1740 = vld [vmem:[%s3 + $0x38] sm:$0xff]
      %v1742 = vsel %vm840, %v1723, 0
      %v1745 = vsel %vm840, %v1724, 0
      %v1748 = vsel %vm840, %v1725, 0
      %v1751 = vsel %vm840, %v1726, 0
      %v1754 = vsel %vm840, %v1727, 0
      %v1757 = vsel %vm840, %v1728, 0
      %v1760 = vsel %vm840, %v1729, 0
      %v1763 = vsel %vm840, %v1730, 0
      %v1766 = vsel %vm840, %v1731, 0
      %v1769 = vsel %vm840, %v1732, 0
      %v1772 = vsel %vm840, %v1733, 0
      %v1775 = vsel %vm840, %v1734, 0
      %v1778 = vsel %vm840, %v1735, 0
      %v1781 = vsel %vm840, %v1736, 0
      %v1784 = vsel %vm840, %v1737, 0
      %v1787 = vsel %vm840, %v1738, 0
      %1789 = vmatprep.subr.mxu0 0.0
      %1790 = vmatpush1.msra.mxu0 0.0
      %1791 = vmatprep.subr.mxu0 0.0
      %1792 = vmatpush1.msra.mxu0 0.0
      %1793 = vmatprep.subr.mxu0 0.0
      %1794 = vmatpush1.msra.mxu0 0.0
      %1795 = vmatprep.subr.mxu0 0.0
      %1796 = vmatpush1.msra.mxu0 0.0
      %1797 = vmatprep.subr.mxu0 0.0
      %1798 = vmatpush1.msra.mxu0 0.0
      %1799 = vmatprep.subr.mxu0 0.0
      %1800 = vmatpush1.msra.mxu0 0.0
      %1801 = vmatprep.subr.mxu0 0.0
      %1802 = vmatpush1.msra.mxu0 0.0
      %1803 = vmatprep.subr.mxu0 0.0
      %1804 = vmatpush1.msra.mxu0 0.0
      %1805 = vmatprep.subr.mxu0 0.0
      %1806 = vmatpush1.msra.mxu0 0.0
      %1807 = vmatprep.subr.mxu0 0.0
      %1808 = vmatpush1.msra.mxu0 0.0
      %1809 = vmatprep.subr.mxu0 0.0
      %1810 = vmatpush1.msra.mxu0 0.0
      %1811 = vmatprep.subr.mxu0 0.0
      %1812 = vmatpush1.msra.mxu0 0.0
      %1813 = vmatprep.subr.mxu0 0.0
      %1814 = vmatpush1.msra.mxu0 0.0
      %1815 = vmatprep.subr.mxu0 0.0
      %1816 = vmatpush1.msra.mxu0 0.0
      %1817 = vmatprep.subr.mxu0 0.0
      %1818 = vmatpush1.msra.mxu0 %v1740
      %1819 = vmatprep.subr.mxu0 0.0
      %1820 = vmatpush1.msra.mxu0 %v1739
      %1821 = vmatprep.subr.mxu0 0.0
      %1822 = vmatpush2.msra.mxu0 0.0
      %1823 = vmatprep.subr.mxu0 0.0
      %1824 = vmatpush2.msra.mxu0 0.0
      %1825 = vmatprep.subr.mxu0 0.0
      %1826 = vmatpush2.msra.mxu0 0.0
      %1827 = vmatprep.subr.mxu0 0.0
      %1828 = vmatpush2.msra.mxu0 0.0
      %1829 = vmatprep.subr.mxu0 0.0
      %1830 = vmatpush2.msra.mxu0 0.0
      %1831 = vmatprep.subr.mxu0 0.0
      %1832 = vmatpush2.msra.mxu0 0.0
      %1833 = vmatprep.subr.mxu0 0.0
      %1834 = vmatpush2.msra.mxu0 0.0
      %1835 = vmatprep.subr.mxu0 0.0
      %1836 = vmatpush2.msra.mxu0 0.0
      %1837 = vmatprep.subr.mxu0 0.0
      %1838 = vmatpush2.msra.mxu0 0.0
      %1839 = vmatprep.subr.mxu0 0.0
      %1840 = vmatpush2.msra.mxu0 0.0
      %1841 = vmatprep.subr.mxu0 0.0
      %1842 = vmatpush2.msra.mxu0 0.0
      %1843 = vmatprep.subr.mxu0 0.0
      %1844 = vmatpush2.msra.mxu0 0.0
      %1845 = vmatprep.subr.mxu0 0.0
      %1846 = vmatpush2.msra.mxu0 0.0
      %1847 = vmatprep.subr.mxu0 0.0
      %1848 = vmatpush2.msra.mxu0 0.0
      %1849 = vmatprep.subr.mxu0 0.0
      %1850 = vmatpush2.msra.mxu0 0.0
      %1851 = vmatprep.subr.mxu0 0.0
      %1852 = vmatpush2.msra.mxu0 0.0
      %1853 = vmatprep.mubr.f32.mxu0 0.0
      %1854 = vmatmul.mubr.f32.gmra.mxu0 %v1742
      %v1855 = vpop.f32.mrf.mxu0
      %v1856 = vadd.f32 0.0, %v1855
      %v1857 = vpop.f32.mrf.mxu0
      %1858 = vmatprep.mubr.f32.mxu0 0.0
      %1859 = vmatmul.mubr.f32.gmra.mxu0 %v1745
      %v1860 = vpop.f32.mrf.mxu0
      %v1861 = vadd.f32 0.0, %v1860
      %v1862 = vpop.f32.mrf.mxu0
      %1863 = vmatprep.mubr.f32.mxu0 0.0
      %1864 = vmatmul.mubr.f32.gmra.mxu0 %v1748
      %v1865 = vpop.f32.mrf.mxu0
      %v1866 = vadd.f32 0.0, %v1865
      %v1867 = vpop.f32.mrf.mxu0
      %1868 = vmatprep.mubr.f32.mxu0 0.0
      %1869 = vmatmul.mubr.f32.gmra.mxu0 %v1751
      %v1870 = vpop.f32.mrf.mxu0
      %v1871 = vadd.f32 0.0, %v1870
      %v1872 = vpop.f32.mrf.mxu0
      %1873 = vmatprep.mubr.f32.mxu0 0.0
      %1874 = vmatmul.mubr.f32.gmra.mxu0 %v1754
      %v1875 = vpop.f32.mrf.mxu0
      %v1876 = vadd.f32 0.0, %v1875
      %v1877 = vpop.f32.mrf.mxu0
      %1878 = vmatprep.mubr.f32.mxu0 0.0
      %1879 = vmatmul.mubr.f32.gmra.mxu0 %v1757
      %v1880 = vpop.f32.mrf.mxu0
      %v1881 = vadd.f32 0.0, %v1880
      %v1882 = vpop.f32.mrf.mxu0
      %1883 = vmatprep.mubr.f32.mxu0 0.0
      %1884 = vmatmul.mubr.f32.gmra.mxu0 %v1760
      %v1885 = vpop.f32.mrf.mxu0
      %v1886 = vadd.f32 0.0, %v1885
      %v1887 = vpop.f32.mrf.mxu0
      %1888 = vmatprep.mubr.f32.mxu0 0.0
      %1889 = vmatmul.mubr.f32.gmra.mxu0 %v1763
      %v1890 = vpop.f32.mrf.mxu0
      %v1891 = vadd.f32 0.0, %v1890
      %v1892 = vpop.f32.mrf.mxu0
      %1893 = vmatprep.mubr.f32.mxu0 0.0
      %1894 = vmatmul.mubr.f32.gmra.mxu0 %v1766
      %v1895 = vpop.f32.mrf.mxu0
      %v1896 = vadd.f32 0.0, %v1895
      %v1897 = vpop.f32.mrf.mxu0
      %1898 = vmatprep.mubr.f32.mxu0 0.0
      %1899 = vmatmul.mubr.f32.gmra.mxu0 %v1769
      %v1900 = vpop.f32.mrf.mxu0
      %v1901 = vadd.f32 0.0, %v1900
      %v1902 = vpop.f32.mrf.mxu0
      %1903 = vmatprep.mubr.f32.mxu0 0.0
      %1904 = vmatmul.mubr.f32.gmra.mxu0 %v1772
      %v1905 = vpop.f32.mrf.mxu0
      %v1906 = vadd.f32 0.0, %v1905
      %v1907 = vpop.f32.mrf.mxu0
      %1908 = vmatprep.mubr.f32.mxu0 0.0
      %1909 = vmatmul.mubr.f32.gmra.mxu0 %v1775
      %v1910 = vpop.f32.mrf.mxu0
      %v1911 = vadd.f32 0.0, %v1910
      %v1912 = vpop.f32.mrf.mxu0
      %1913 = vmatprep.mubr.f32.mxu0 0.0
      %1914 = vmatmul.mubr.f32.gmra.mxu0 %v1778
      %v1915 = vpop.f32.mrf.mxu0
      %v1916 = vadd.f32 0.0, %v1915
      %v1917 = vpop.f32.mrf.mxu0
      %1918 = vmatprep.mubr.f32.mxu0 0.0
      %1919 = vmatmul.mubr.f32.gmra.mxu0 %v1781
      %v1920 = vpop.f32.mrf.mxu0
      %v1921 = vadd.f32 0.0, %v1920
      %v1922 = vpop.f32.mrf.mxu0
      %1923 = vmatprep.mubr.f32.mxu0 0.0
      %1924 = vmatmul.mubr.f32.gmra.mxu0 %v1784
      %v1925 = vpop.f32.mrf.mxu0
      %v1926 = vadd.f32 0.0, %v1925
      %v1927 = vpop.f32.mrf.mxu0
      %1928 = vmatprep.mubr.f32.mxu0 0.0
      %1929 = vmatmul.mubr.f32.gmra.mxu0 %v1787
      %v1930 = vpop.f32.mrf.mxu0
      %v1931 = vadd.f32 0.0, %v1930
      %v1932 = vpop.f32.mrf.mxu0
      %1933 = vdwg.mxu0
      %v1934 = vadd.f32 %v1707, %v1856
      %v1935 = vadd.f32 %v1708, %v1861
      %v1936 = vadd.f32 %v1709, %v1866
      %v1937 = vadd.f32 %v1710, %v1871
      %v1938 = vadd.f32 %v1711, %v1876
      %v1939 = vadd.f32 %v1712, %v1881
      %v1940 = vadd.f32 %v1713, %v1886
      %v1941 = vadd.f32 %v1714, %v1891
      %v1942 = vadd.f32 %v1715, %v1896
      %v1943 = vadd.f32 %v1716, %v1901
      %v1944 = vadd.f32 %v1717, %v1906
      %v1945 = vadd.f32 %v1718, %v1911
      %v1946 = vadd.f32 %v1719, %v1916
      %v1947 = vadd.f32 %v1720, %v1921
      %v1948 = vadd.f32 %v1721, %v1926
      %v1949 = vadd.f32 %v1722, %v1931
      %v1950 = vld [vmem:[#allocation4 + $0xb] sm:$0xff]
      %v1951 = vld [vmem:[#allocation4 + $0x13] sm:$0xff]
      %v1952 = vld [vmem:[#allocation4 + $0x1b] sm:$0xff]
      %v1953 = vld [vmem:[#allocation4 + $0x23] sm:$0xff]
      %v1954 = vld [vmem:[#allocation4 + $0x2b] sm:$0xff]
      %v1955 = vld [vmem:[#allocation4 + $0x33] sm:$0xff]
      %v1956 = vld [vmem:[#allocation4 + $0x3b] sm:$0xff]
      %v1957 = vld [vmem:[#allocation4 + $0x43] sm:$0xff]
      %v1958 = vld [vmem:[#allocation4 + $0x4b] sm:$0xff]
      %v1959 = vld [vmem:[#allocation4 + $0x53] sm:$0xff]
      %v1960 = vld [vmem:[#allocation4 + $0x5b] sm:$0xff]
      %v1961 = vld [vmem:[#allocation4 + $0x63] sm:$0xff]
      %v1962 = vld [vmem:[#allocation4 + $0x6b] sm:$0xff]
      %v1963 = vld [vmem:[#allocation4 + $0x73] sm:$0xff]
      %v1964 = vld [vmem:[#allocation4 + $0x7b] sm:$0xff]
      %v1965 = vld [vmem:[#allocation4 + $0x83] sm:$0x3]
      %v1966 = vld [vmem:[%s3 + $0x40] sm:$0xff]
      %v1967 = vld [vmem:[%s3 + $0x48] sm:$0xff]
      %v1969 = vsel %vm840, %v1950, 0
      %v1972 = vsel %vm840, %v1951, 0
      %v1975 = vsel %vm840, %v1952, 0
      %v1978 = vsel %vm840, %v1953, 0
      %v1981 = vsel %vm840, %v1954, 0
      %v1984 = vsel %vm840, %v1955, 0
      %v1987 = vsel %vm840, %v1956, 0
      %v1990 = vsel %vm840, %v1957, 0
      %v1993 = vsel %vm840, %v1958, 0
      %v1996 = vsel %vm840, %v1959, 0
      %v1999 = vsel %vm840, %v1960, 0
      %v2002 = vsel %vm840, %v1961, 0
      %v2005 = vsel %vm840, %v1962, 0
      %v2008 = vsel %vm840, %v1963, 0
      %v2011 = vsel %vm840, %v1964, 0
      %v2014 = vsel %vm840, %v1965, 0
      %2016 = vmatprep.subr.mxu0 0.0
      %2017 = vmatpush1.msra.mxu0 0.0
      %2018 = vmatprep.subr.mxu0 0.0
      %2019 = vmatpush1.msra.mxu0 0.0
      %2020 = vmatprep.subr.mxu0 0.0
      %2021 = vmatpush1.msra.mxu0 0.0
      %2022 = vmatprep.subr.mxu0 0.0
      %2023 = vmatpush1.msra.mxu0 0.0
      %2024 = vmatprep.subr.mxu0 0.0
      %2025 = vmatpush1.msra.mxu0 0.0
      %2026 = vmatprep.subr.mxu0 0.0
      %2027 = vmatpush1.msra.mxu0 0.0
      %2028 = vmatprep.subr.mxu0 0.0
      %2029 = vmatpush1.msra.mxu0 0.0
      %2030 = vmatprep.subr.mxu0 0.0
      %2031 = vmatpush1.msra.mxu0 0.0
      %2032 = vmatprep.subr.mxu0 0.0
      %2033 = vmatpush1.msra.mxu0 0.0
      %2034 = vmatprep.subr.mxu0 0.0
      %2035 = vmatpush1.msra.mxu0 0.0
      %2036 = vmatprep.subr.mxu0 0.0
      %2037 = vmatpush1.msra.mxu0 0.0
      %2038 = vmatprep.subr.mxu0 0.0
      %2039 = vmatpush1.msra.mxu0 0.0
      %2040 = vmatprep.subr.mxu0 0.0
      %2041 = vmatpush1.msra.mxu0 0.0
      %2042 = vmatprep.subr.mxu0 0.0
      %2043 = vmatpush1.msra.mxu0 0.0
      %2044 = vmatprep.subr.mxu0 0.0
      %2045 = vmatpush1.msra.mxu0 %v1967
      %2046 = vmatprep.subr.mxu0 0.0
      %2047 = vmatpush1.msra.mxu0 %v1966
      %2048 = vmatprep.subr.mxu0 0.0
      %2049 = vmatpush2.msra.mxu0 0.0
      %2050 = vmatprep.subr.mxu0 0.0
      %2051 = vmatpush2.msra.mxu0 0.0
      %2052 = vmatprep.subr.mxu0 0.0
      %2053 = vmatpush2.msra.mxu0 0.0
      %2054 = vmatprep.subr.mxu0 0.0
      %2055 = vmatpush2.msra.mxu0 0.0
      %2056 = vmatprep.subr.mxu0 0.0
      %2057 = vmatpush2.msra.mxu0 0.0
      %2058 = vmatprep.subr.mxu0 0.0
      %2059 = vmatpush2.msra.mxu0 0.0
      %2060 = vmatprep.subr.mxu0 0.0
      %2061 = vmatpush2.msra.mxu0 0.0
      %2062 = vmatprep.subr.mxu0 0.0
      %2063 = vmatpush2.msra.mxu0 0.0
      %2064 = vmatprep.subr.mxu0 0.0
      %2065 = vmatpush2.msra.mxu0 0.0
      %2066 = vmatprep.subr.mxu0 0.0
      %2067 = vmatpush2.msra.mxu0 0.0
      %2068 = vmatprep.subr.mxu0 0.0
      %2069 = vmatpush2.msra.mxu0 0.0
      %2070 = vmatprep.subr.mxu0 0.0
      %2071 = vmatpush2.msra.mxu0 0.0
      %2072 = vmatprep.subr.mxu0 0.0
      %2073 = vmatpush2.msra.mxu0 0.0
      %2074 = vmatprep.subr.mxu0 0.0
      %2075 = vmatpush2.msra.mxu0 0.0
      %2076 = vmatprep.subr.mxu0 0.0
      %2077 = vmatpush2.msra.mxu0 0.0
      %2078 = vmatprep.subr.mxu0 0.0
      %2079 = vmatpush2.msra.mxu0 0.0
      %2080 = vmatprep.mubr.f32.mxu0 0.0
      %2081 = vmatmul.mubr.f32.gmra.mxu0 %v1969
      %v2082 = vpop.f32.mrf.mxu0
      %v2083 = vadd.f32 0.0, %v2082
      %v2084 = vpop.f32.mrf.mxu0
      %2085 = vmatprep.mubr.f32.mxu0 0.0
      %2086 = vmatmul.mubr.f32.gmra.mxu0 %v1972
      %v2087 = vpop.f32.mrf.mxu0
      %v2088 = vadd.f32 0.0, %v2087
      %v2089 = vpop.f32.mrf.mxu0
      %2090 = vmatprep.mubr.f32.mxu0 0.0
      %2091 = vmatmul.mubr.f32.gmra.mxu0 %v1975
      %v2092 = vpop.f32.mrf.mxu0
      %v2093 = vadd.f32 0.0, %v2092
      %v2094 = vpop.f32.mrf.mxu0
      %2095 = vmatprep.mubr.f32.mxu0 0.0
      %2096 = vmatmul.mubr.f32.gmra.mxu0 %v1978
      %v2097 = vpop.f32.mrf.mxu0
      %v2098 = vadd.f32 0.0, %v2097
      %v2099 = vpop.f32.mrf.mxu0
      %2100 = vmatprep.mubr.f32.mxu0 0.0
      %2101 = vmatmul.mubr.f32.gmra.mxu0 %v1981
      %v2102 = vpop.f32.mrf.mxu0
      %v2103 = vadd.f32 0.0, %v2102
      %v2104 = vpop.f32.mrf.mxu0
      %2105 = vmatprep.mubr.f32.mxu0 0.0
      %2106 = vmatmul.mubr.f32.gmra.mxu0 %v1984
      %v2107 = vpop.f32.mrf.mxu0
      %v2108 = vadd.f32 0.0, %v2107
      %v2109 = vpop.f32.mrf.mxu0
      %2110 = vmatprep.mubr.f32.mxu0 0.0
      %2111 = vmatmul.mubr.f32.gmra.mxu0 %v1987
      %v2112 = vpop.f32.mrf.mxu0
      %v2113 = vadd.f32 0.0, %v2112
      %v2114 = vpop.f32.mrf.mxu0
      %2115 = vmatprep.mubr.f32.mxu0 0.0
      %2116 = vmatmul.mubr.f32.gmra.mxu0 %v1990
      %v2117 = vpop.f32.mrf.mxu0
      %v2118 = vadd.f32 0.0, %v2117
      %v2119 = vpop.f32.mrf.mxu0
      %2120 = vmatprep.mubr.f32.mxu0 0.0
      %2121 = vmatmul.mubr.f32.gmra.mxu0 %v1993
      %v2122 = vpop.f32.mrf.mxu0
      %v2123 = vadd.f32 0.0, %v2122
      %v2124 = vpop.f32.mrf.mxu0
      %2125 = vmatprep.mubr.f32.mxu0 0.0
      %2126 = vmatmul.mubr.f32.gmra.mxu0 %v1996
      %v2127 = vpop.f32.mrf.mxu0
      %v2128 = vadd.f32 0.0, %v2127
      %v2129 = vpop.f32.mrf.mxu0
      %2130 = vmatprep.mubr.f32.mxu0 0.0
      %2131 = vmatmul.mubr.f32.gmra.mxu0 %v1999
      %v2132 = vpop.f32.mrf.mxu0
      %v2133 = vadd.f32 0.0, %v2132
      %v2134 = vpop.f32.mrf.mxu0
      %2135 = vmatprep.mubr.f32.mxu0 0.0
      %2136 = vmatmul.mubr.f32.gmra.mxu0 %v2002
      %v2137 = vpop.f32.mrf.mxu0
      %v2138 = vadd.f32 0.0, %v2137
      %v2139 = vpop.f32.mrf.mxu0
      %2140 = vmatprep.mubr.f32.mxu0 0.0
      %2141 = vmatmul.mubr.f32.gmra.mxu0 %v2005
      %v2142 = vpop.f32.mrf.mxu0
      %v2143 = vadd.f32 0.0, %v2142
      %v2144 = vpop.f32.mrf.mxu0
      %2145 = vmatprep.mubr.f32.mxu0 0.0
      %2146 = vmatmul.mubr.f32.gmra.mxu0 %v2008
      %v2147 = vpop.f32.mrf.mxu0
      %v2148 = vadd.f32 0.0, %v2147
      %v2149 = vpop.f32.mrf.mxu0
      %2150 = vmatprep.mubr.f32.mxu0 0.0
      %2151 = vmatmul.mubr.f32.gmra.mxu0 %v2011
      %v2152 = vpop.f32.mrf.mxu0
      %v2153 = vadd.f32 0.0, %v2152
      %v2154 = vpop.f32.mrf.mxu0
      %2155 = vmatprep.mubr.f32.mxu0 0.0
      %2156 = vmatmul.mubr.f32.gmra.mxu0 %v2014
      %v2157 = vpop.f32.mrf.mxu0
      %v2158 = vadd.f32 0.0, %v2157
      %v2159 = vpop.f32.mrf.mxu0
      %2160 = vdwg.mxu0
      %v2161 = vadd.f32 %v1934, %v2083
      %v2162 = vadd.f32 %v1935, %v2088
      %v2163 = vadd.f32 %v1936, %v2093
      %v2164 = vadd.f32 %v1937, %v2098
      %v2165 = vadd.f32 %v1938, %v2103
      %v2166 = vadd.f32 %v1939, %v2108
      %v2167 = vadd.f32 %v1940, %v2113
      %v2168 = vadd.f32 %v1941, %v2118
      %v2169 = vadd.f32 %v1942, %v2123
      %v2170 = vadd.f32 %v1943, %v2128
      %v2171 = vadd.f32 %v1944, %v2133
      %v2172 = vadd.f32 %v1945, %v2138
      %v2173 = vadd.f32 %v1946, %v2143
      %v2174 = vadd.f32 %v1947, %v2148
      %v2175 = vadd.f32 %v1948, %v2153
      %v2176 = vadd.f32 %v1949, %v2158
      %v2177 = vld [vmem:[#allocation4 + $0xc] sm:$0xff]
      %v2178 = vld [vmem:[#allocation4 + $0x14] sm:$0xff]
      %v2179 = vld [vmem:[#allocation4 + $0x1c] sm:$0xff]
      %v2180 = vld [vmem:[#allocation4 + $0x24] sm:$0xff]
      %v2181 = vld [vmem:[#allocation4 + $0x2c] sm:$0xff]
      %v2182 = vld [vmem:[#allocation4 + $0x34] sm:$0xff]
      %v2183 = vld [vmem:[#allocation4 + $0x3c] sm:$0xff]
      %v2184 = vld [vmem:[#allocation4 + $0x44] sm:$0xff]
      %v2185 = vld [vmem:[#allocation4 + $0x4c] sm:$0xff]
      %v2186 = vld [vmem:[#allocation4 + $0x54] sm:$0xff]
      %v2187 = vld [vmem:[#allocation4 + $0x5c] sm:$0xff]
      %v2188 = vld [vmem:[#allocation4 + $0x64] sm:$0xff]
      %v2189 = vld [vmem:[#allocation4 + $0x6c] sm:$0xff]
      %v2190 = vld [vmem:[#allocation4 + $0x74] sm:$0xff]
      %v2191 = vld [vmem:[#allocation4 + $0x7c] sm:$0xff]
      %v2192 = vld [vmem:[#allocation4 + $0x84] sm:$0x3]
      %v2193 = vld [vmem:[%s3 + $0x50] sm:$0xff]
      %v2194 = vld [vmem:[%s3 + $0x58] sm:$0xff]
      %v2196 = vsel %vm840, %v2177, 0
      %v2199 = vsel %vm840, %v2178, 0
      %v2202 = vsel %vm840, %v2179, 0
      %v2205 = vsel %vm840, %v2180, 0
      %v2208 = vsel %vm840, %v2181, 0
      %v2211 = vsel %vm840, %v2182, 0
      %v2214 = vsel %vm840, %v2183, 0
      %v2217 = vsel %vm840, %v2184, 0
      %v2220 = vsel %vm840, %v2185, 0
      %v2223 = vsel %vm840, %v2186, 0
      %v2226 = vsel %vm840, %v2187, 0
      %v2229 = vsel %vm840, %v2188, 0
      %v2232 = vsel %vm840, %v2189, 0
      %v2235 = vsel %vm840, %v2190, 0
      %v2238 = vsel %vm840, %v2191, 0
      %v2241 = vsel %vm840, %v2192, 0
      %2243 = vmatprep.subr.mxu0 0.0
      %2244 = vmatpush1.msra.mxu0 0.0
      %2245 = vmatprep.subr.mxu0 0.0
      %2246 = vmatpush1.msra.mxu0 0.0
      %2247 = vmatprep.subr.mxu0 0.0
      %2248 = vmatpush1.msra.mxu0 0.0
      %2249 = vmatprep.subr.mxu0 0.0
      %2250 = vmatpush1.msra.mxu0 0.0
      %2251 = vmatprep.subr.mxu0 0.0
      %2252 = vmatpush1.msra.mxu0 0.0
      %2253 = vmatprep.subr.mxu0 0.0
      %2254 = vmatpush1.msra.mxu0 0.0
      %2255 = vmatprep.subr.mxu0 0.0
      %2256 = vmatpush1.msra.mxu0 0.0
      %2257 = vmatprep.subr.mxu0 0.0
      %2258 = vmatpush1.msra.mxu0 0.0
      %2259 = vmatprep.subr.mxu0 0.0
      %2260 = vmatpush1.msra.mxu0 0.0
      %2261 = vmatprep.subr.mxu0 0.0
      %2262 = vmatpush1.msra.mxu0 0.0
      %2263 = vmatprep.subr.mxu0 0.0
      %2264 = vmatpush1.msra.mxu0 0.0
      %2265 = vmatprep.subr.mxu0 0.0
      %2266 = vmatpush1.msra.mxu0 0.0
      %2267 = vmatprep.subr.mxu0 0.0
      %2268 = vmatpush1.msra.mxu0 0.0
      %2269 = vmatprep.subr.mxu0 0.0
      %2270 = vmatpush1.msra.mxu0 0.0
      %2271 = vmatprep.subr.mxu0 0.0
      %2272 = vmatpush1.msra.mxu0 %v2194
      %2273 = vmatprep.subr.mxu0 0.0
      %2274 = vmatpush1.msra.mxu0 %v2193
      %2275 = vmatprep.subr.mxu0 0.0
      %2276 = vmatpush2.msra.mxu0 0.0
      %2277 = vmatprep.subr.mxu0 0.0
      %2278 = vmatpush2.msra.mxu0 0.0
      %2279 = vmatprep.subr.mxu0 0.0
      %2280 = vmatpush2.msra.mxu0 0.0
      %2281 = vmatprep.subr.mxu0 0.0
      %2282 = vmatpush2.msra.mxu0 0.0
      %2283 = vmatprep.subr.mxu0 0.0
      %2284 = vmatpush2.msra.mxu0 0.0
      %2285 = vmatprep.subr.mxu0 0.0
      %2286 = vmatpush2.msra.mxu0 0.0
      %2287 = vmatprep.subr.mxu0 0.0
      %2288 = vmatpush2.msra.mxu0 0.0
      %2289 = vmatprep.subr.mxu0 0.0
      %2290 = vmatpush2.msra.mxu0 0.0
      %2291 = vmatprep.subr.mxu0 0.0
      %2292 = vmatpush2.msra.mxu0 0.0
      %2293 = vmatprep.subr.mxu0 0.0
      %2294 = vmatpush2.msra.mxu0 0.0
      %2295 = vmatprep.subr.mxu0 0.0
      %2296 = vmatpush2.msra.mxu0 0.0
      %2297 = vmatprep.subr.mxu0 0.0
      %2298 = vmatpush2.msra.mxu0 0.0
      %2299 = vmatprep.subr.mxu0 0.0
      %2300 = vmatpush2.msra.mxu0 0.0
      %2301 = vmatprep.subr.mxu0 0.0
      %2302 = vmatpush2.msra.mxu0 0.0
      %2303 = vmatprep.subr.mxu0 0.0
      %2304 = vmatpush2.msra.mxu0 0.0
      %2305 = vmatprep.subr.mxu0 0.0
      %2306 = vmatpush2.msra.mxu0 0.0
      %2307 = vmatprep.mubr.f32.mxu0 0.0
      %2308 = vmatmul.mubr.f32.gmra.mxu0 %v2196
      %v2309 = vpop.f32.mrf.mxu0
      %v2310 = vadd.f32 0.0, %v2309
      %v2311 = vpop.f32.mrf.mxu0
      %2312 = vmatprep.mubr.f32.mxu0 0.0
      %2313 = vmatmul.mubr.f32.gmra.mxu0 %v2199
      %v2314 = vpop.f32.mrf.mxu0
      %v2315 = vadd.f32 0.0, %v2314
      %v2316 = vpop.f32.mrf.mxu0
      %2317 = vmatprep.mubr.f32.mxu0 0.0
      %2318 = vmatmul.mubr.f32.gmra.mxu0 %v2202
      %v2319 = vpop.f32.mrf.mxu0
      %v2320 = vadd.f32 0.0, %v2319
      %v2321 = vpop.f32.mrf.mxu0
      %2322 = vmatprep.mubr.f32.mxu0 0.0
      %2323 = vmatmul.mubr.f32.gmra.mxu0 %v2205
      %v2324 = vpop.f32.mrf.mxu0
      %v2325 = vadd.f32 0.0, %v2324
      %v2326 = vpop.f32.mrf.mxu0
      %2327 = vmatprep.mubr.f32.mxu0 0.0
      %2328 = vmatmul.mubr.f32.gmra.mxu0 %v2208
      %v2329 = vpop.f32.mrf.mxu0
      %v2330 = vadd.f32 0.0, %v2329
      %v2331 = vpop.f32.mrf.mxu0
      %2332 = vmatprep.mubr.f32.mxu0 0.0
      %2333 = vmatmul.mubr.f32.gmra.mxu0 %v2211
      %v2334 = vpop.f32.mrf.mxu0
      %v2335 = vadd.f32 0.0, %v2334
      %v2336 = vpop.f32.mrf.mxu0
      %2337 = vmatprep.mubr.f32.mxu0 0.0
      %2338 = vmatmul.mubr.f32.gmra.mxu0 %v2214
      %v2339 = vpop.f32.mrf.mxu0
      %v2340 = vadd.f32 0.0, %v2339
      %v2341 = vpop.f32.mrf.mxu0
      %2342 = vmatprep.mubr.f32.mxu0 0.0
      %2343 = vmatmul.mubr.f32.gmra.mxu0 %v2217
      %v2344 = vpop.f32.mrf.mxu0
      %v2345 = vadd.f32 0.0, %v2344
      %v2346 = vpop.f32.mrf.mxu0
      %2347 = vmatprep.mubr.f32.mxu0 0.0
      %2348 = vmatmul.mubr.f32.gmra.mxu0 %v2220
      %v2349 = vpop.f32.mrf.mxu0
      %v2350 = vadd.f32 0.0, %v2349
      %v2351 = vpop.f32.mrf.mxu0
      %2352 = vmatprep.mubr.f32.mxu0 0.0
      %2353 = vmatmul.mubr.f32.gmra.mxu0 %v2223
      %v2354 = vpop.f32.mrf.mxu0
      %v2355 = vadd.f32 0.0, %v2354
      %v2356 = vpop.f32.mrf.mxu0
      %2357 = vmatprep.mubr.f32.mxu0 0.0
      %2358 = vmatmul.mubr.f32.gmra.mxu0 %v2226
      %v2359 = vpop.f32.mrf.mxu0
      %v2360 = vadd.f32 0.0, %v2359
      %v2361 = vpop.f32.mrf.mxu0
      %2362 = vmatprep.mubr.f32.mxu0 0.0
      %2363 = vmatmul.mubr.f32.gmra.mxu0 %v2229
      %v2364 = vpop.f32.mrf.mxu0
      %v2365 = vadd.f32 0.0, %v2364
      %v2366 = vpop.f32.mrf.mxu0
      %2367 = vmatprep.mubr.f32.mxu0 0.0
      %2368 = vmatmul.mubr.f32.gmra.mxu0 %v2232
      %v2369 = vpop.f32.mrf.mxu0
      %v2370 = vadd.f32 0.0, %v2369
      %v2371 = vpop.f32.mrf.mxu0
      %2372 = vmatprep.mubr.f32.mxu0 0.0
      %2373 = vmatmul.mubr.f32.gmra.mxu0 %v2235
      %v2374 = vpop.f32.mrf.mxu0
      %v2375 = vadd.f32 0.0, %v2374
      %v2376 = vpop.f32.mrf.mxu0
      %2377 = vmatprep.mubr.f32.mxu0 0.0
      %2378 = vmatmul.mubr.f32.gmra.mxu0 %v2238
      %v2379 = vpop.f32.mrf.mxu0
      %v2380 = vadd.f32 0.0, %v2379
      %v2381 = vpop.f32.mrf.mxu0
      %2382 = vmatprep.mubr.f32.mxu0 0.0
      %2383 = vmatmul.mubr.f32.gmra.mxu0 %v2241
      %v2384 = vpop.f32.mrf.mxu0
      %v2385 = vadd.f32 0.0, %v2384
      %v2386 = vpop.f32.mrf.mxu0
      %2387 = vdwg.mxu0
      %v2388 = vadd.f32 %v2161, %v2310
      %v2389 = vadd.f32 %v2162, %v2315
      %v2390 = vadd.f32 %v2163, %v2320
      %v2391 = vadd.f32 %v2164, %v2325
      %v2392 = vadd.f32 %v2165, %v2330
      %v2393 = vadd.f32 %v2166, %v2335
      %v2394 = vadd.f32 %v2167, %v2340
      %v2395 = vadd.f32 %v2168, %v2345
      %v2396 = vadd.f32 %v2169, %v2350
      %v2397 = vadd.f32 %v2170, %v2355
      %v2398 = vadd.f32 %v2171, %v2360
      %v2399 = vadd.f32 %v2172, %v2365
      %v2400 = vadd.f32 %v2173, %v2370
      %v2401 = vadd.f32 %v2174, %v2375
      %v2402 = vadd.f32 %v2175, %v2380
      %v2403 = vadd.f32 %v2176, %v2385
      %v2404 = vld [vmem:[#allocation4 + $0x14] sm:$0xff]
      %v2405 = vld [vmem:[#allocation4 + $0x1c] sm:$0xff]
      %v2406 = vld [vmem:[#allocation4 + $0x24] sm:$0xff]
      %v2407 = vld [vmem:[#allocation4 + $0x2c] sm:$0xff]
      %v2408 = vld [vmem:[#allocation4 + $0x34] sm:$0xff]
      %v2409 = vld [vmem:[#allocation4 + $0x3c] sm:$0xff]
      %v2410 = vld [vmem:[#allocation4 + $0x44] sm:$0xff]
      %v2411 = vld [vmem:[#allocation4 + $0x4c] sm:$0xff]
      %v2412 = vld [vmem:[#allocation4 + $0x54] sm:$0xff]
      %v2413 = vld [vmem:[#allocation4 + $0x5c] sm:$0xff]
      %v2414 = vld [vmem:[#allocation4 + $0x64] sm:$0xff]
      %v2415 = vld [vmem:[#allocation4 + $0x6c] sm:$0xff]
      %v2416 = vld [vmem:[#allocation4 + $0x74] sm:$0xff]
      %v2417 = vld [vmem:[#allocation4 + $0x7c] sm:$0xff]
      %v2418 = vld [vmem:[#allocation4 + $0x84] sm:$0xff]
      %v2419 = vld [vmem:[#allocation4 + $0x8c] sm:$0x3]
      %v2420 = vld [vmem:[%s3 + $0x60] sm:$0xff]
      %v2421 = vld [vmem:[%s3 + $0x68] sm:$0xff]
      %v2423 = vsel %vm840, %v2404, 0
      %v2426 = vsel %vm840, %v2405, 0
      %v2429 = vsel %vm840, %v2406, 0
      %v2432 = vsel %vm840, %v2407, 0
      %v2435 = vsel %vm840, %v2408, 0
      %v2438 = vsel %vm840, %v2409, 0
      %v2441 = vsel %vm840, %v2410, 0
      %v2444 = vsel %vm840, %v2411, 0
      %v2447 = vsel %vm840, %v2412, 0
      %v2450 = vsel %vm840, %v2413, 0
      %v2453 = vsel %vm840, %v2414, 0
      %v2456 = vsel %vm840, %v2415, 0
      %v2459 = vsel %vm840, %v2416, 0
      %v2462 = vsel %vm840, %v2417, 0
      %v2465 = vsel %vm840, %v2418, 0
      %v2468 = vsel %vm840, %v2419, 0
      %2470 = vmatprep.subr.mxu0 0.0
      %2471 = vmatpush1.msra.mxu0 0.0
      %2472 = vmatprep.subr.mxu0 0.0
      %2473 = vmatpush1.msra.mxu0 0.0
      %2474 = vmatprep.subr.mxu0 0.0
      %2475 = vmatpush1.msra.mxu0 0.0
      %2476 = vmatprep.subr.mxu0 0.0
      %2477 = vmatpush1.msra.mxu0 0.0
      %2478 = vmatprep.subr.mxu0 0.0
      %2479 = vmatpush1.msra.mxu0 0.0
      %2480 = vmatprep.subr.mxu0 0.0
      %2481 = vmatpush1.msra.mxu0 0.0
      %2482 = vmatprep.subr.mxu0 0.0
      %2483 = vmatpush1.msra.mxu0 0.0
      %2484 = vmatprep.subr.mxu0 0.0
      %2485 = vmatpush1.msra.mxu0 0.0
      %2486 = vmatprep.subr.mxu0 0.0
      %2487 = vmatpush1.msra.mxu0 0.0
      %2488 = vmatprep.subr.mxu0 0.0
      %2489 = vmatpush1.msra.mxu0 0.0
      %2490 = vmatprep.subr.mxu0 0.0
      %2491 = vmatpush1.msra.mxu0 0.0
      %2492 = vmatprep.subr.mxu0 0.0
      %2493 = vmatpush1.msra.mxu0 0.0
      %2494 = vmatprep.subr.mxu0 0.0
      %2495 = vmatpush1.msra.mxu0 0.0
      %2496 = vmatprep.subr.mxu0 0.0
      %2497 = vmatpush1.msra.mxu0 0.0
      %2498 = vmatprep.subr.mxu0 0.0
      %2499 = vmatpush1.msra.mxu0 %v2421
      %2500 = vmatprep.subr.mxu0 0.0
      %2501 = vmatpush1.msra.mxu0 %v2420
      %2502 = vmatprep.subr.mxu0 0.0
      %2503 = vmatpush2.msra.mxu0 0.0
      %2504 = vmatprep.subr.mxu0 0.0
      %2505 = vmatpush2.msra.mxu0 0.0
      %2506 = vmatprep.subr.mxu0 0.0
      %2507 = vmatpush2.msra.mxu0 0.0
      %2508 = vmatprep.subr.mxu0 0.0
      %2509 = vmatpush2.msra.mxu0 0.0
      %2510 = vmatprep.subr.mxu0 0.0
      %2511 = vmatpush2.msra.mxu0 0.0
      %2512 = vmatprep.subr.mxu0 0.0
      %2513 = vmatpush2.msra.mxu0 0.0
      %2514 = vmatprep.subr.mxu0 0.0
      %2515 = vmatpush2.msra.mxu0 0.0
      %2516 = vmatprep.subr.mxu0 0.0
      %2517 = vmatpush2.msra.mxu0 0.0
      %2518 = vmatprep.subr.mxu0 0.0
      %2519 = vmatpush2.msra.mxu0 0.0
      %2520 = vmatprep.subr.mxu0 0.0
      %2521 = vmatpush2.msra.mxu0 0.0
      %2522 = vmatprep.subr.mxu0 0.0
      %2523 = vmatpush2.msra.mxu0 0.0
      %2524 = vmatprep.subr.mxu0 0.0
      %2525 = vmatpush2.msra.mxu0 0.0
      %2526 = vmatprep.subr.mxu0 0.0
      %2527 = vmatpush2.msra.mxu0 0.0
      %2528 = vmatprep.subr.mxu0 0.0
      %2529 = vmatpush2.msra.mxu0 0.0
      %2530 = vmatprep.subr.mxu0 0.0
      %2531 = vmatpush2.msra.mxu0 0.0
      %2532 = vmatprep.subr.mxu0 0.0
      %2533 = vmatpush2.msra.mxu0 0.0
      %2534 = vmatprep.mubr.f32.mxu0 0.0
      %2535 = vmatmul.mubr.f32.gmra.mxu0 %v2423
      %v2536 = vpop.f32.mrf.mxu0
      %v2537 = vadd.f32 0.0, %v2536
      %v2538 = vpop.f32.mrf.mxu0
      %2539 = vmatprep.mubr.f32.mxu0 0.0
      %2540 = vmatmul.mubr.f32.gmra.mxu0 %v2426
      %v2541 = vpop.f32.mrf.mxu0
      %v2542 = vadd.f32 0.0, %v2541
      %v2543 = vpop.f32.mrf.mxu0
      %2544 = vmatprep.mubr.f32.mxu0 0.0
      %2545 = vmatmul.mubr.f32.gmra.mxu0 %v2429
      %v2546 = vpop.f32.mrf.mxu0
      %v2547 = vadd.f32 0.0, %v2546
      %v2548 = vpop.f32.mrf.mxu0
      %2549 = vmatprep.mubr.f32.mxu0 0.0
      %2550 = vmatmul.mubr.f32.gmra.mxu0 %v2432
      %v2551 = vpop.f32.mrf.mxu0
      %v2552 = vadd.f32 0.0, %v2551
      %v2553 = vpop.f32.mrf.mxu0
      %2554 = vmatprep.mubr.f32.mxu0 0.0
      %2555 = vmatmul.mubr.f32.gmra.mxu0 %v2435
      %v2556 = vpop.f32.mrf.mxu0
      %v2557 = vadd.f32 0.0, %v2556
      %v2558 = vpop.f32.mrf.mxu0
      %2559 = vmatprep.mubr.f32.mxu0 0.0
      %2560 = vmatmul.mubr.f32.gmra.mxu0 %v2438
      %v2561 = vpop.f32.mrf.mxu0
      %v2562 = vadd.f32 0.0, %v2561
      %v2563 = vpop.f32.mrf.mxu0
      %2564 = vmatprep.mubr.f32.mxu0 0.0
      %2565 = vmatmul.mubr.f32.gmra.mxu0 %v2441
      %v2566 = vpop.f32.mrf.mxu0
      %v2567 = vadd.f32 0.0, %v2566
      %v2568 = vpop.f32.mrf.mxu0
      %2569 = vmatprep.mubr.f32.mxu0 0.0
      %2570 = vmatmul.mubr.f32.gmra.mxu0 %v2444
      %v2571 = vpop.f32.mrf.mxu0
      %v2572 = vadd.f32 0.0, %v2571
      %v2573 = vpop.f32.mrf.mxu0
      %2574 = vmatprep.mubr.f32.mxu0 0.0
      %2575 = vmatmul.mubr.f32.gmra.mxu0 %v2447
      %v2576 = vpop.f32.mrf.mxu0
      %v2577 = vadd.f32 0.0, %v2576
      %v2578 = vpop.f32.mrf.mxu0
      %2579 = vmatprep.mubr.f32.mxu0 0.0
      %2580 = vmatmul.mubr.f32.gmra.mxu0 %v2450
      %v2581 = vpop.f32.mrf.mxu0
      %v2582 = vadd.f32 0.0, %v2581
      %v2583 = vpop.f32.mrf.mxu0
      %2584 = vmatprep.mubr.f32.mxu0 0.0
      %2585 = vmatmul.mubr.f32.gmra.mxu0 %v2453
      %v2586 = vpop.f32.mrf.mxu0
      %v2587 = vadd.f32 0.0, %v2586
      %v2588 = vpop.f32.mrf.mxu0
      %2589 = vmatprep.mubr.f32.mxu0 0.0
      %2590 = vmatmul.mubr.f32.gmra.mxu0 %v2456
      %v2591 = vpop.f32.mrf.mxu0
      %v2592 = vadd.f32 0.0, %v2591
      %v2593 = vpop.f32.mrf.mxu0
      %2594 = vmatprep.mubr.f32.mxu0 0.0
      %2595 = vmatmul.mubr.f32.gmra.mxu0 %v2459
      %v2596 = vpop.f32.mrf.mxu0
      %v2597 = vadd.f32 0.0, %v2596
      %v2598 = vpop.f32.mrf.mxu0
      %2599 = vmatprep.mubr.f32.mxu0 0.0
      %2600 = vmatmul.mubr.f32.gmra.mxu0 %v2462
      %v2601 = vpop.f32.mrf.mxu0
      %v2602 = vadd.f32 0.0, %v2601
      %v2603 = vpop.f32.mrf.mxu0
      %2604 = vmatprep.mubr.f32.mxu0 0.0
      %2605 = vmatmul.mubr.f32.gmra.mxu0 %v2465
      %v2606 = vpop.f32.mrf.mxu0
      %v2607 = vadd.f32 0.0, %v2606
      %v2608 = vpop.f32.mrf.mxu0
      %2609 = vmatprep.mubr.f32.mxu0 0.0
      %2610 = vmatmul.mubr.f32.gmra.mxu0 %v2468
      %v2611 = vpop.f32.mrf.mxu0
      %v2612 = vadd.f32 0.0, %v2611
      %v2613 = vpop.f32.mrf.mxu0
      %2614 = vdwg.mxu0
      %v2615 = vadd.f32 %v2388, %v2537
      %v2616 = vadd.f32 %v2389, %v2542
      %v2617 = vadd.f32 %v2390, %v2547
      %v2618 = vadd.f32 %v2391, %v2552
      %v2619 = vadd.f32 %v2392, %v2557
      %v2620 = vadd.f32 %v2393, %v2562
      %v2621 = vadd.f32 %v2394, %v2567
      %v2622 = vadd.f32 %v2395, %v2572
      %v2623 = vadd.f32 %v2396, %v2577
      %v2624 = vadd.f32 %v2397, %v2582
      %v2625 = vadd.f32 %v2398, %v2587
      %v2626 = vadd.f32 %v2399, %v2592
      %v2627 = vadd.f32 %v2400, %v2597
      %v2628 = vadd.f32 %v2401, %v2602
      %v2629 = vadd.f32 %v2402, %v2607
      %v2630 = vadd.f32 %v2403, %v2612
      %v2631 = vld [vmem:[#allocation4 + $0x15] sm:$0xff]
      %v2632 = vld [vmem:[#allocation4 + $0x1d] sm:$0xff]
      %v2633 = vld [vmem:[#allocation4 + $0x25] sm:$0xff]
      %v2634 = vld [vmem:[#allocation4 + $0x2d] sm:$0xff]
      %v2635 = vld [vmem:[#allocation4 + $0x35] sm:$0xff]
      %v2636 = vld [vmem:[#allocation4 + $0x3d] sm:$0xff]
      %v2637 = vld [vmem:[#allocation4 + $0x45] sm:$0xff]
      %v2638 = vld [vmem:[#allocation4 + $0x4d] sm:$0xff]
      %v2639 = vld [vmem:[#allocation4 + $0x55] sm:$0xff]
      %v2640 = vld [vmem:[#allocation4 + $0x5d] sm:$0xff]
      %v2641 = vld [vmem:[#allocation4 + $0x65] sm:$0xff]
      %v2642 = vld [vmem:[#allocation4 + $0x6d] sm:$0xff]
      %v2643 = vld [vmem:[#allocation4 + $0x75] sm:$0xff]
      %v2644 = vld [vmem:[#allocation4 + $0x7d] sm:$0xff]
      %v2645 = vld [vmem:[#allocation4 + $0x85] sm:$0xff]
      %v2646 = vld [vmem:[#allocation4 + $0x8d] sm:$0x3]
      %v2647 = vld [vmem:[%s3 + $0x70] sm:$0xff]
      %v2648 = vld [vmem:[%s3 + $0x78] sm:$0xff]
      %v2650 = vsel %vm840, %v2631, 0
      %v2653 = vsel %vm840, %v2632, 0
      %v2656 = vsel %vm840, %v2633, 0
      %v2659 = vsel %vm840, %v2634, 0
      %v2662 = vsel %vm840, %v2635, 0
      %v2665 = vsel %vm840, %v2636, 0
      %v2668 = vsel %vm840, %v2637, 0
      %v2671 = vsel %vm840, %v2638, 0
      %v2674 = vsel %vm840, %v2639, 0
      %v2677 = vsel %vm840, %v2640, 0
      %v2680 = vsel %vm840, %v2641, 0
      %v2683 = vsel %vm840, %v2642, 0
      %v2686 = vsel %vm840, %v2643, 0
      %v2689 = vsel %vm840, %v2644, 0
      %v2692 = vsel %vm840, %v2645, 0
      %v2695 = vsel %vm840, %v2646, 0
      %2697 = vmatprep.subr.mxu0 0.0
      %2698 = vmatpush1.msra.mxu0 0.0
      %2699 = vmatprep.subr.mxu0 0.0
      %2700 = vmatpush1.msra.mxu0 0.0
      %2701 = vmatprep.subr.mxu0 0.0
      %2702 = vmatpush1.msra.mxu0 0.0
      %2703 = vmatprep.subr.mxu0 0.0
      %2704 = vmatpush1.msra.mxu0 0.0
      %2705 = vmatprep.subr.mxu0 0.0
      %2706 = vmatpush1.msra.mxu0 0.0
      %2707 = vmatprep.subr.mxu0 0.0
      %2708 = vmatpush1.msra.mxu0 0.0
      %2709 = vmatprep.subr.mxu0 0.0
      %2710 = vmatpush1.msra.mxu0 0.0
      %2711 = vmatprep.subr.mxu0 0.0
      %2712 = vmatpush1.msra.mxu0 0.0
      %2713 = vmatprep.subr.mxu0 0.0
      %2714 = vmatpush1.msra.mxu0 0.0
      %2715 = vmatprep.subr.mxu0 0.0
      %2716 = vmatpush1.msra.mxu0 0.0
      %2717 = vmatprep.subr.mxu0 0.0
      %2718 = vmatpush1.msra.mxu0 0.0
      %2719 = vmatprep.subr.mxu0 0.0
      %2720 = vmatpush1.msra.mxu0 0.0
      %2721 = vmatprep.subr.mxu0 0.0
      %2722 = vmatpush1.msra.mxu0 0.0
      %2723 = vmatprep.subr.mxu0 0.0
      %2724 = vmatpush1.msra.mxu0 0.0
      %2725 = vmatprep.subr.mxu0 0.0
      %2726 = vmatpush1.msra.mxu0 %v2648
      %2727 = vmatprep.subr.mxu0 0.0
      %2728 = vmatpush1.msra.mxu0 %v2647
      %2729 = vmatprep.subr.mxu0 0.0
      %2730 = vmatpush2.msra.mxu0 0.0
      %2731 = vmatprep.subr.mxu0 0.0
      %2732 = vmatpush2.msra.mxu0 0.0
      %2733 = vmatprep.subr.mxu0 0.0
      %2734 = vmatpush2.msra.mxu0 0.0
      %2735 = vmatprep.subr.mxu0 0.0
      %2736 = vmatpush2.msra.mxu0 0.0
      %2737 = vmatprep.subr.mxu0 0.0
      %2738 = vmatpush2.msra.mxu0 0.0
      %2739 = vmatprep.subr.mxu0 0.0
      %2740 = vmatpush2.msra.mxu0 0.0
      %2741 = vmatprep.subr.mxu0 0.0
      %2742 = vmatpush2.msra.mxu0 0.0
      %2743 = vmatprep.subr.mxu0 0.0
      %2744 = vmatpush2.msra.mxu0 0.0
      %2745 = vmatprep.subr.mxu0 0.0
      %2746 = vmatpush2.msra.mxu0 0.0
      %2747 = vmatprep.subr.mxu0 0.0
      %2748 = vmatpush2.msra.mxu0 0.0
      %2749 = vmatprep.subr.mxu0 0.0
      %2750 = vmatpush2.msra.mxu0 0.0
      %2751 = vmatprep.subr.mxu0 0.0
      %2752 = vmatpush2.msra.mxu0 0.0
      %2753 = vmatprep.subr.mxu0 0.0
      %2754 = vmatpush2.msra.mxu0 0.0
      %2755 = vmatprep.subr.mxu0 0.0
      %2756 = vmatpush2.msra.mxu0 0.0
      %2757 = vmatprep.subr.mxu0 0.0
      %2758 = vmatpush2.msra.mxu0 0.0
      %2759 = vmatprep.subr.mxu0 0.0
      %2760 = vmatpush2.msra.mxu0 0.0
      %2761 = vmatprep.mubr.f32.mxu0 0.0
      %2762 = vmatmul.mubr.f32.gmra.mxu0 %v2650
      %v2763 = vpop.f32.mrf.mxu0
      %v2764 = vadd.f32 0.0, %v2763
      %v2765 = vpop.f32.mrf.mxu0
      %2766 = vmatprep.mubr.f32.mxu0 0.0
      %2767 = vmatmul.mubr.f32.gmra.mxu0 %v2653
      %v2768 = vpop.f32.mrf.mxu0
      %v2769 = vadd.f32 0.0, %v2768
      %v2770 = vpop.f32.mrf.mxu0
      %2771 = vmatprep.mubr.f32.mxu0 0.0
      %2772 = vmatmul.mubr.f32.gmra.mxu0 %v2656
      %v2773 = vpop.f32.mrf.mxu0
      %v2774 = vadd.f32 0.0, %v2773
      %v2775 = vpop.f32.mrf.mxu0
      %2776 = vmatprep.mubr.f32.mxu0 0.0
      %2777 = vmatmul.mubr.f32.gmra.mxu0 %v2659
      %v2778 = vpop.f32.mrf.mxu0
      %v2779 = vadd.f32 0.0, %v2778
      %v2780 = vpop.f32.mrf.mxu0
      %2781 = vmatprep.mubr.f32.mxu0 0.0
      %2782 = vmatmul.mubr.f32.gmra.mxu0 %v2662
      %v2783 = vpop.f32.mrf.mxu0
      %v2784 = vadd.f32 0.0, %v2783
      %v2785 = vpop.f32.mrf.mxu0
      %2786 = vmatprep.mubr.f32.mxu0 0.0
      %2787 = vmatmul.mubr.f32.gmra.mxu0 %v2665
      %v2788 = vpop.f32.mrf.mxu0
      %v2789 = vadd.f32 0.0, %v2788
      %v2790 = vpop.f32.mrf.mxu0
      %2791 = vmatprep.mubr.f32.mxu0 0.0
      %2792 = vmatmul.mubr.f32.gmra.mxu0 %v2668
      %v2793 = vpop.f32.mrf.mxu0
      %v2794 = vadd.f32 0.0, %v2793
      %v2795 = vpop.f32.mrf.mxu0
      %2796 = vmatprep.mubr.f32.mxu0 0.0
      %2797 = vmatmul.mubr.f32.gmra.mxu0 %v2671
      %v2798 = vpop.f32.mrf.mxu0
      %v2799 = vadd.f32 0.0, %v2798
      %v2800 = vpop.f32.mrf.mxu0
      %2801 = vmatprep.mubr.f32.mxu0 0.0
      %2802 = vmatmul.mubr.f32.gmra.mxu0 %v2674
      %v2803 = vpop.f32.mrf.mxu0
      %v2804 = vadd.f32 0.0, %v2803
      %v2805 = vpop.f32.mrf.mxu0
      %2806 = vmatprep.mubr.f32.mxu0 0.0
      %2807 = vmatmul.mubr.f32.gmra.mxu0 %v2677
      %v2808 = vpop.f32.mrf.mxu0
      %v2809 = vadd.f32 0.0, %v2808
      %v2810 = vpop.f32.mrf.mxu0
      %2811 = vmatprep.mubr.f32.mxu0 0.0
      %2812 = vmatmul.mubr.f32.gmra.mxu0 %v2680
      %v2813 = vpop.f32.mrf.mxu0
      %v2814 = vadd.f32 0.0, %v2813
      %v2815 = vpop.f32.mrf.mxu0
      %2816 = vmatprep.mubr.f32.mxu0 0.0
      %2817 = vmatmul.mubr.f32.gmra.mxu0 %v2683
      %v2818 = vpop.f32.mrf.mxu0
      %v2819 = vadd.f32 0.0, %v2818
      %v2820 = vpop.f32.mrf.mxu0
      %2821 = vmatprep.mubr.f32.mxu0 0.0
      %2822 = vmatmul.mubr.f32.gmra.mxu0 %v2686
      %v2823 = vpop.f32.mrf.mxu0
      %v2824 = vadd.f32 0.0, %v2823
      %v2825 = vpop.f32.mrf.mxu0
      %2826 = vmatprep.mubr.f32.mxu0 0.0
      %2827 = vmatmul.mubr.f32.gmra.mxu0 %v2689
      %v2828 = vpop.f32.mrf.mxu0
      %v2829 = vadd.f32 0.0, %v2828
      %v2830 = vpop.f32.mrf.mxu0
      %2831 = vmatprep.mubr.f32.mxu0 0.0
      %2832 = vmatmul.mubr.f32.gmra.mxu0 %v2692
      %v2833 = vpop.f32.mrf.mxu0
      %v2834 = vadd.f32 0.0, %v2833
      %v2835 = vpop.f32.mrf.mxu0
      %2836 = vmatprep.mubr.f32.mxu0 0.0
      %2837 = vmatmul.mubr.f32.gmra.mxu0 %v2695
      %v2838 = vpop.f32.mrf.mxu0
      %v2839 = vadd.f32 0.0, %v2838
      %v2840 = vpop.f32.mrf.mxu0
      %2841 = vdwg.mxu0
      %v2842 = vadd.f32 %v2615, %v2764
      %v2843 = vadd.f32 %v2616, %v2769
      %v2844 = vadd.f32 %v2617, %v2774
      %v2845 = vadd.f32 %v2618, %v2779
      %v2846 = vadd.f32 %v2619, %v2784
      %v2847 = vadd.f32 %v2620, %v2789
      %v2848 = vadd.f32 %v2621, %v2794
      %v2849 = vadd.f32 %v2622, %v2799
      %v2850 = vadd.f32 %v2623, %v2804
      %v2851 = vadd.f32 %v2624, %v2809
      %v2852 = vadd.f32 %v2625, %v2814
      %v2853 = vadd.f32 %v2626, %v2819
      %v2854 = vadd.f32 %v2627, %v2824
      %v2855 = vadd.f32 %v2628, %v2829
      %v2856 = vadd.f32 %v2629, %v2834
      %v2857 = vadd.f32 %v2630, %v2839
      %v2858 = vld [vmem:[#allocation4 + $0x16] sm:$0xff]
      %v2859 = vld [vmem:[#allocation4 + $0x1e] sm:$0xff]
      %v2860 = vld [vmem:[#allocation4 + $0x26] sm:$0xff]
      %v2861 = vld [vmem:[#allocation4 + $0x2e] sm:$0xff]
      %v2862 = vld [vmem:[#allocation4 + $0x36] sm:$0xff]
      %v2863 = vld [vmem:[#allocation4 + $0x3e] sm:$0xff]
      %v2864 = vld [vmem:[#allocation4 + $0x46] sm:$0xff]
      %v2865 = vld [vmem:[#allocation4 + $0x4e] sm:$0xff]
      %v2866 = vld [vmem:[#allocation4 + $0x56] sm:$0xff]
      %v2867 = vld [vmem:[#allocation4 + $0x5e] sm:$0xff]
      %v2868 = vld [vmem:[#allocation4 + $0x66] sm:$0xff]
      %v2869 = vld [vmem:[#allocation4 + $0x6e] sm:$0xff]
      %v2870 = vld [vmem:[#allocation4 + $0x76] sm:$0xff]
      %v2871 = vld [vmem:[#allocation4 + $0x7e] sm:$0xff]
      %v2872 = vld [vmem:[#allocation4 + $0x86] sm:$0xff]
      %v2873 = vld [vmem:[#allocation4 + $0x8e] sm:$0x3]
      %v2874 = vld [vmem:[%s3 + $0x80] sm:$0xff]
      %v2875 = vld [vmem:[%s3 + $0x88] sm:$0xff]
      %v2877 = vsel %vm840, %v2858, 0
      %v2880 = vsel %vm840, %v2859, 0
      %v2883 = vsel %vm840, %v2860, 0
      %v2886 = vsel %vm840, %v2861, 0
      %v2889 = vsel %vm840, %v2862, 0
      %v2892 = vsel %vm840, %v2863, 0
      %v2895 = vsel %vm840, %v2864, 0
      %v2898 = vsel %vm840, %v2865, 0
      %v2901 = vsel %vm840, %v2866, 0
      %v2904 = vsel %vm840, %v2867, 0
      %v2907 = vsel %vm840, %v2868, 0
      %v2910 = vsel %vm840, %v2869, 0
      %v2913 = vsel %vm840, %v2870, 0
      %v2916 = vsel %vm840, %v2871, 0
      %v2919 = vsel %vm840, %v2872, 0
      %v2922 = vsel %vm840, %v2873, 0
      %2924 = vmatprep.subr.mxu0 0.0
      %2925 = vmatpush1.msra.mxu0 0.0
      %2926 = vmatprep.subr.mxu0 0.0
      %2927 = vmatpush1.msra.mxu0 0.0
      %2928 = vmatprep.subr.mxu0 0.0
      %2929 = vmatpush1.msra.mxu0 0.0
      %2930 = vmatprep.subr.mxu0 0.0
      %2931 = vmatpush1.msra.mxu0 0.0
      %2932 = vmatprep.subr.mxu0 0.0
      %2933 = vmatpush1.msra.mxu0 0.0
      %2934 = vmatprep.subr.mxu0 0.0
      %2935 = vmatpush1.msra.mxu0 0.0
      %2936 = vmatprep.subr.mxu0 0.0
      %2937 = vmatpush1.msra.mxu0 0.0
      %2938 = vmatprep.subr.mxu0 0.0
      %2939 = vmatpush1.msra.mxu0 0.0
      %2940 = vmatprep.subr.mxu0 0.0
      %2941 = vmatpush1.msra.mxu0 0.0
      %2942 = vmatprep.subr.mxu0 0.0
      %2943 = vmatpush1.msra.mxu0 0.0
      %2944 = vmatprep.subr.mxu0 0.0
      %2945 = vmatpush1.msra.mxu0 0.0
      %2946 = vmatprep.subr.mxu0 0.0
      %2947 = vmatpush1.msra.mxu0 0.0
      %2948 = vmatprep.subr.mxu0 0.0
      %2949 = vmatpush1.msra.mxu0 0.0
      %2950 = vmatprep.subr.mxu0 0.0
      %2951 = vmatpush1.msra.mxu0 0.0
      %2952 = vmatprep.subr.mxu0 0.0
      %2953 = vmatpush1.msra.mxu0 %v2875
      %2954 = vmatprep.subr.mxu0 0.0
      %2955 = vmatpush1.msra.mxu0 %v2874
      %2956 = vmatprep.subr.mxu0 0.0
      %2957 = vmatpush2.msra.mxu0 0.0
      %2958 = vmatprep.subr.mxu0 0.0
      %2959 = vmatpush2.msra.mxu0 0.0
      %2960 = vmatprep.subr.mxu0 0.0
      %2961 = vmatpush2.msra.mxu0 0.0
      %2962 = vmatprep.subr.mxu0 0.0
      %2963 = vmatpush2.msra.mxu0 0.0
      %2964 = vmatprep.subr.mxu0 0.0
      %2965 = vmatpush2.msra.mxu0 0.0
      %2966 = vmatprep.subr.mxu0 0.0
      %2967 = vmatpush2.msra.mxu0 0.0
      %2968 = vmatprep.subr.mxu0 0.0
      %2969 = vmatpush2.msra.mxu0 0.0
      %2970 = vmatprep.subr.mxu0 0.0
      %2971 = vmatpush2.msra.mxu0 0.0
      %2972 = vmatprep.subr.mxu0 0.0
      %2973 = vmatpush2.msra.mxu0 0.0
      %2974 = vmatprep.subr.mxu0 0.0
      %2975 = vmatpush2.msra.mxu0 0.0
      %2976 = vmatprep.subr.mxu0 0.0
      %2977 = vmatpush2.msra.mxu0 0.0
      %2978 = vmatprep.subr.mxu0 0.0
      %2979 = vmatpush2.msra.mxu0 0.0
      %2980 = vmatprep.subr.mxu0 0.0
      %2981 = vmatpush2.msra.mxu0 0.0
      %2982 = vmatprep.subr.mxu0 0.0
      %2983 = vmatpush2.msra.mxu0 0.0
      %2984 = vmatprep.subr.mxu0 0.0
      %2985 = vmatpush2.msra.mxu0 0.0
      %2986 = vmatprep.subr.mxu0 0.0
      %2987 = vmatpush2.msra.mxu0 0.0
      %2988 = vmatprep.mubr.f32.mxu0 0.0
      %2989 = vmatmul.mubr.f32.gmra.mxu0 %v2877
      %v2990 = vpop.f32.mrf.mxu0
      %v2991 = vadd.f32 0.0, %v2990
      %v2992 = vpop.f32.mrf.mxu0
      %2993 = vmatprep.mubr.f32.mxu0 0.0
      %2994 = vmatmul.mubr.f32.gmra.mxu0 %v2880
      %v2995 = vpop.f32.mrf.mxu0
      %v2996 = vadd.f32 0.0, %v2995
      %v2997 = vpop.f32.mrf.mxu0
      %2998 = vmatprep.mubr.f32.mxu0 0.0
      %2999 = vmatmul.mubr.f32.gmra.mxu0 %v2883
      %v3000 = vpop.f32.mrf.mxu0
      %v3001 = vadd.f32 0.0, %v3000
      %v3002 = vpop.f32.mrf.mxu0
      %3003 = vmatprep.mubr.f32.mxu0 0.0
      %3004 = vmatmul.mubr.f32.gmra.mxu0 %v2886
      %v3005 = vpop.f32.mrf.mxu0
      %v3006 = vadd.f32 0.0, %v3005
      %v3007 = vpop.f32.mrf.mxu0
      %3008 = vmatprep.mubr.f32.mxu0 0.0
      %3009 = vmatmul.mubr.f32.gmra.mxu0 %v2889
      %v3010 = vpop.f32.mrf.mxu0
      %v3011 = vadd.f32 0.0, %v3010
      %v3012 = vpop.f32.mrf.mxu0
      %3013 = vmatprep.mubr.f32.mxu0 0.0
      %3014 = vmatmul.mubr.f32.gmra.mxu0 %v2892
      %v3015 = vpop.f32.mrf.mxu0
      %v3016 = vadd.f32 0.0, %v3015
      %v3017 = vpop.f32.mrf.mxu0
      %3018 = vmatprep.mubr.f32.mxu0 0.0
      %3019 = vmatmul.mubr.f32.gmra.mxu0 %v2895
      %v3020 = vpop.f32.mrf.mxu0
      %v3021 = vadd.f32 0.0, %v3020
      %v3022 = vpop.f32.mrf.mxu0
      %3023 = vmatprep.mubr.f32.mxu0 0.0
      %3024 = vmatmul.mubr.f32.gmra.mxu0 %v2898
      %v3025 = vpop.f32.mrf.mxu0
      %v3026 = vadd.f32 0.0, %v3025
      %v3027 = vpop.f32.mrf.mxu0
      %3028 = vmatprep.mubr.f32.mxu0 0.0
      %3029 = vmatmul.mubr.f32.gmra.mxu0 %v2901
      %v3030 = vpop.f32.mrf.mxu0
      %v3031 = vadd.f32 0.0, %v3030
      %v3032 = vpop.f32.mrf.mxu0
      %3033 = vmatprep.mubr.f32.mxu0 0.0
      %3034 = vmatmul.mubr.f32.gmra.mxu0 %v2904
      %v3035 = vpop.f32.mrf.mxu0
      %v3036 = vadd.f32 0.0, %v3035
      %v3037 = vpop.f32.mrf.mxu0
      %3038 = vmatprep.mubr.f32.mxu0 0.0
      %3039 = vmatmul.mubr.f32.gmra.mxu0 %v2907
      %v3040 = vpop.f32.mrf.mxu0
      %v3041 = vadd.f32 0.0, %v3040
      %v3042 = vpop.f32.mrf.mxu0
      %3043 = vmatprep.mubr.f32.mxu0 0.0
      %3044 = vmatmul.mubr.f32.gmra.mxu0 %v2910
      %v3045 = vpop.f32.mrf.mxu0
      %v3046 = vadd.f32 0.0, %v3045
      %v3047 = vpop.f32.mrf.mxu0
      %3048 = vmatprep.mubr.f32.mxu0 0.0
      %3049 = vmatmul.mubr.f32.gmra.mxu0 %v2913
      %v3050 = vpop.f32.mrf.mxu0
      %v3051 = vadd.f32 0.0, %v3050
      %v3052 = vpop.f32.mrf.mxu0
      %3053 = vmatprep.mubr.f32.mxu0 0.0
      %3054 = vmatmul.mubr.f32.gmra.mxu0 %v2916
      %v3055 = vpop.f32.mrf.mxu0
      %v3056 = vadd.f32 0.0, %v3055
      %v3057 = vpop.f32.mrf.mxu0
      %3058 = vmatprep.mubr.f32.mxu0 0.0
      %3059 = vmatmul.mubr.f32.gmra.mxu0 %v2919
      %v3060 = vpop.f32.mrf.mxu0
      %v3061 = vadd.f32 0.0, %v3060
      %v3062 = vpop.f32.mrf.mxu0
      %3063 = vmatprep.mubr.f32.mxu0 0.0
      %3064 = vmatmul.mubr.f32.gmra.mxu0 %v2922
      %v3065 = vpop.f32.mrf.mxu0
      %v3066 = vadd.f32 0.0, %v3065
      %v3067 = vpop.f32.mrf.mxu0
      %3068 = vdwg.mxu0
      %v3069 = vadd.f32 %v2842, %v2991
      %v3070 = vadd.f32 %v2843, %v2996
      %v3071 = vadd.f32 %v2844, %v3001
      %v3072 = vadd.f32 %v2845, %v3006
      %v3073 = vadd.f32 %v2846, %v3011
      %v3074 = vadd.f32 %v2847, %v3016
      %v3075 = vadd.f32 %v2848, %v3021
      %v3076 = vadd.f32 %v2849, %v3026
      %v3077 = vadd.f32 %v2850, %v3031
      %v3078 = vadd.f32 %v2851, %v3036
      %v3079 = vadd.f32 %v2852, %v3041
      %v3080 = vadd.f32 %v2853, %v3046
      %v3081 = vadd.f32 %v2854, %v3051
      %v3082 = vadd.f32 %v2855, %v3056
      %v3083 = vadd.f32 %v2856, %v3061
      %v3084 = vadd.f32 %v2857, %v3066
      %v3085 = vld [vmem:[%s4] sm:$0x1]
      %v3087 = vlaneseq
      %v3088 = vshrl.u32 %v3087, 7
      %v3089 = vsub.s32 0, %v3088
      %v3090 = vrot.slane %v3085, %v3089
      %v3092 = vadd.f32 %v3069, %v3090
      %v3093 = vadd.f32 %v3070, %v3090
      %v3094 = vadd.f32 %v3071, %v3090
      %v3095 = vadd.f32 %v3072, %v3090
      %v3096 = vadd.f32 %v3073, %v3090
      %v3097 = vadd.f32 %v3074, %v3090
      %v3098 = vadd.f32 %v3075, %v3090
      %v3099 = vadd.f32 %v3076, %v3090
      %v3100 = vadd.f32 %v3077, %v3090
      %v3101 = vadd.f32 %v3078, %v3090
      %v3102 = vadd.f32 %v3079, %v3090
      %v3103 = vadd.f32 %v3080, %v3090
      %v3104 = vadd.f32 %v3081, %v3090
      %v3105 = vadd.f32 %v3082, %v3090
      %v3106 = vadd.f32 %v3083, %v3090
      %v3107 = vadd.f32 %v3084, %v3090
      %v3108 = vmax.f32 %v3092, 0.0
      %v3109 = vmax.f32 %v3093, 0.0
      %v3110 = vmax.f32 %v3094, 0.0
      %v3111 = vmax.f32 %v3095, 0.0
      %v3112 = vmax.f32 %v3096, 0.0
      %v3113 = vmax.f32 %v3097, 0.0
      %v3114 = vmax.f32 %v3098, 0.0
      %v3115 = vmax.f32 %v3099, 0.0
      %v3116 = vmax.f32 %v3100, 0.0
      %v3117 = vmax.f32 %v3101, 0.0
      %v3118 = vmax.f32 %v3102, 0.0
      %v3119 = vmax.f32 %v3103, 0.0
      %v3120 = vmax.f32 %v3104, 0.0
      %v3121 = vmax.f32 %v3105, 0.0
      %v3122 = vmax.f32 %v3106, 0.0
      %v3123 = vmax.f32 %v3107, 0.0
      %vm3124 = vcmask 523264
      %3125 = vst.msk [vmem:[#allocation5] sm:$0xff] %vm3124, %v3108
      %3126 = vst.msk [vmem:[#allocation5 + $0x8] sm:$0xff] %vm3124, %v3109
      %3127 = vst.msk [vmem:[#allocation5 + $0x10] sm:$0xff] %vm3124, %v3110
      %3128 = vst.msk [vmem:[#allocation5 + $0x18] sm:$0xff] %vm3124, %v3111
      %3129 = vst.msk [vmem:[#allocation5 + $0x20] sm:$0xff] %vm3124, %v3112
      %3130 = vst.msk [vmem:[#allocation5 + $0x28] sm:$0xff] %vm3124, %v3113
      %3131 = vst.msk [vmem:[#allocation5 + $0x30] sm:$0xff] %vm3124, %v3114
      %3132 = vst.msk [vmem:[#allocation5 + $0x38] sm:$0xff] %vm3124, %v3115
      %3133 = vst.msk [vmem:[#allocation5 + $0x40] sm:$0xff] %vm3124, %v3116
      %3134 = vst.msk [vmem:[#allocation5 + $0x48] sm:$0xff] %vm3124, %v3117
      %3135 = vst.msk [vmem:[#allocation5 + $0x50] sm:$0xff] %vm3124, %v3118
      %3136 = vst.msk [vmem:[#allocation5 + $0x58] sm:$0xff] %vm3124, %v3119
      %3137 = vst.msk [vmem:[#allocation5 + $0x60] sm:$0xff] %vm3124, %v3120
      %3138 = vst.msk [vmem:[#allocation5 + $0x68] sm:$0xff] %vm3124, %v3121
      %3139 = vst.msk [vmem:[#allocation5 + $0x70] sm:$0xff] %vm3124, %v3122
      %vm3140 = vcmask 517120
      %3141 = vst.msk [vmem:[#allocation5 + $0x78] sm:$0x3] %vm3140, %v3123
      %v3142 = vld [vmem:[#allocation5] sm:$0xff]
      %v3143 = vld [vmem:[#allocation5 + $0x8] sm:$0xff]
      %v3144 = vld [vmem:[#allocation5 + $0x10] sm:$0xff]
      %v3145 = vld [vmem:[#allocation5 + $0x18] sm:$0xff]
      %v3146 = vld [vmem:[#allocation5 + $0x20] sm:$0xff]
      %v3147 = vld [vmem:[#allocation5 + $0x28] sm:$0xff]
      %v3148 = vld [vmem:[#allocation5 + $0x30] sm:$0xff]
      %v3149 = vld [vmem:[#allocation5 + $0x38] sm:$0xff]
      %v3150 = vld [vmem:[#allocation5 + $0x40] sm:$0xff]
      %v3151 = vld [vmem:[#allocation5 + $0x48] sm:$0xff]
      %v3152 = vld [vmem:[#allocation5 + $0x50] sm:$0xff]
      %v3153 = vld [vmem:[#allocation5 + $0x58] sm:$0xff]
      %v3154 = vld [vmem:[#allocation5 + $0x60] sm:$0xff]
      %v3155 = vld [vmem:[#allocation5 + $0x68] sm:$0x7f]
      %v3156 = vld [vmem:[#allocation5 + $0x1] sm:$0xff]
      %v3157 = vld [vmem:[#allocation5 + $0x9] sm:$0xff]
      %v3158 = vld [vmem:[#allocation5 + $0x11] sm:$0xff]
      %v3159 = vld [vmem:[#allocation5 + $0x19] sm:$0xff]
      %v3160 = vld [vmem:[#allocation5 + $0x21] sm:$0xff]
      %v3161 = vld [vmem:[#allocation5 + $0x29] sm:$0xff]
      %v3162 = vld [vmem:[#allocation5 + $0x31] sm:$0xff]
      %v3163 = vld [vmem:[#allocation5 + $0x39] sm:$0xff]
      %v3164 = vld [vmem:[#allocation5 + $0x41] sm:$0xff]
      %v3165 = vld [vmem:[#allocation5 + $0x49] sm:$0xff]
      %v3166 = vld [vmem:[#allocation5 + $0x51] sm:$0xff]
      %v3167 = vld [vmem:[#allocation5 + $0x59] sm:$0xff]
      %v3168 = vld [vmem:[#allocation5 + $0x61] sm:$0xff]
      %v3169 = vld [vmem:[#allocation5 + $0x69] sm:$0x7f]
      %v3170 = vmax.f32 %v3142, %v3156
      %v3171 = vmax.f32 %v3143, %v3157
      %v3172 = vmax.f32 %v3144, %v3158
      %v3173 = vmax.f32 %v3145, %v3159
      %v3174 = vmax.f32 %v3146, %v3160
      %v3175 = vmax.f32 %v3147, %v3161
      %v3176 = vmax.f32 %v3148, %v3162
      %v3177 = vmax.f32 %v3149, %v3163
      %v3178 = vmax.f32 %v3150, %v3164
      %v3179 = vmax.f32 %v3151, %v3165
      %v3180 = vmax.f32 %v3152, %v3166
      %v3181 = vmax.f32 %v3153, %v3167
      %v3182 = vmax.f32 %v3154, %v3168
      %v3183 = vmax.f32 %v3155, %v3169
      %v3184 = vld [vmem:[#allocation5 + $0xa] sm:$0xff]
      %v3185 = vld [vmem:[#allocation5 + $0x12] sm:$0xff]
      %v3186 = vld [vmem:[#allocation5 + $0x1a] sm:$0xff]
      %v3187 = vld [vmem:[#allocation5 + $0x22] sm:$0xff]
      %v3188 = vld [vmem:[#allocation5 + $0x2a] sm:$0xff]
      %v3189 = vld [vmem:[#allocation5 + $0x32] sm:$0xff]
      %v3190 = vld [vmem:[#allocation5 + $0x3a] sm:$0xff]
      %v3191 = vld [vmem:[#allocation5 + $0x42] sm:$0xff]
      %v3192 = vld [vmem:[#allocation5 + $0x4a] sm:$0xff]
      %v3193 = vld [vmem:[#allocation5 + $0x52] sm:$0xff]
      %v3194 = vld [vmem:[#allocation5 + $0x5a] sm:$0xff]
      %v3195 = vld [vmem:[#allocation5 + $0x62] sm:$0xff]
      %v3196 = vld [vmem:[#allocation5 + $0x6a] sm:$0xff]
      %v3197 = vld [vmem:[#allocation5 + $0x72] sm:$0x7f]
      %v3198 = vld [vmem:[#allocation5 + $0xb] sm:$0xff]
      %v3199 = vld [vmem:[#allocation5 + $0x13] sm:$0xff]
      %v3200 = vld [vmem:[#allocation5 + $0x1b] sm:$0xff]
      %v3201 = vld [vmem:[#allocation5 + $0x23] sm:$0xff]
      %v3202 = vld [vmem:[#allocation5 + $0x2b] sm:$0xff]
      %v3203 = vld [vmem:[#allocation5 + $0x33] sm:$0xff]
      %v3204 = vld [vmem:[#allocation5 + $0x3b] sm:$0xff]
      %v3205 = vld [vmem:[#allocation5 + $0x43] sm:$0xff]
      %v3206 = vld [vmem:[#allocation5 + $0x4b] sm:$0xff]
      %v3207 = vld [vmem:[#allocation5 + $0x53] sm:$0xff]
      %v3208 = vld [vmem:[#allocation5 + $0x5b] sm:$0xff]
      %v3209 = vld [vmem:[#allocation5 + $0x63] sm:$0xff]
      %v3210 = vld [vmem:[#allocation5 + $0x6b] sm:$0xff]
      %v3211 = vld [vmem:[#allocation5 + $0x73] sm:$0x7f]
      %v3212 = vmax.f32 %v3184, %v3198
      %v3213 = vmax.f32 %v3185, %v3199
      %v3214 = vmax.f32 %v3186, %v3200
      %v3215 = vmax.f32 %v3187, %v3201
      %v3216 = vmax.f32 %v3188, %v3202
      %v3217 = vmax.f32 %v3189, %v3203
      %v3218 = vmax.f32 %v3190, %v3204
      %v3219 = vmax.f32 %v3191, %v3205
      %v3220 = vmax.f32 %v3192, %v3206
      %v3221 = vmax.f32 %v3193, %v3207
      %v3222 = vmax.f32 %v3194, %v3208
      %v3223 = vmax.f32 %v3195, %v3209
      %v3224 = vmax.f32 %v3196, %v3210
      %v3225 = vmax.f32 %v3197, %v3211
      %v3226 = vmax.f32 %v3170, %v3212
      %v3227 = vmax.f32 %v3171, %v3213
      %v3228 = vmax.f32 %v3172, %v3214
      %v3229 = vmax.f32 %v3173, %v3215
      %v3230 = vmax.f32 %v3174, %v3216
      %v3231 = vmax.f32 %v3175, %v3217
      %v3232 = vmax.f32 %v3176, %v3218
      %v3233 = vmax.f32 %v3177, %v3219
      %v3234 = vmax.f32 %v3178, %v3220
      %v3235 = vmax.f32 %v3179, %v3221
      %v3236 = vmax.f32 %v3180, %v3222
      %v3237 = vmax.f32 %v3181, %v3223
      %v3238 = vmax.f32 %v3182, %v3224
      %v3239 = vmax.f32 %v3183, %v3225
      %3240 = vst.msk [vmem:[#allocation6] sm:$0xff] %vm3124, %v3226
      %3241 = vst.msk [vmem:[#allocation6 + $0x8] sm:$0xff] %vm3124, %v3227
      %3242 = vst.msk [vmem:[#allocation6 + $0x10] sm:$0xff] %vm3124, %v3228
      %3243 = vst.msk [vmem:[#allocation6 + $0x18] sm:$0xff] %vm3124, %v3229
      %3244 = vst.msk [vmem:[#allocation6 + $0x20] sm:$0xff] %vm3124, %v3230
      %3245 = vst.msk [vmem:[#allocation6 + $0x28] sm:$0xff] %vm3124, %v3231
      %3246 = vst.msk [vmem:[#allocation6 + $0x30] sm:$0xff] %vm3124, %v3232
      %3247 = vst.msk [vmem:[#allocation6 + $0x38] sm:$0xff] %vm3124, %v3233
      %3248 = vst.msk [vmem:[#allocation6 + $0x40] sm:$0xff] %vm3124, %v3234
      %3249 = vst.msk [vmem:[#allocation6 + $0x48] sm:$0xff] %vm3124, %v3235
      %3250 = vst.msk [vmem:[#allocation6 + $0x50] sm:$0xff] %vm3124, %v3236
      %3251 = vst.msk [vmem:[#allocation6 + $0x58] sm:$0xff] %vm3124, %v3237
      %3252 = vst.msk [vmem:[#allocation6 + $0x60] sm:$0xff] %vm3124, %v3238
      %vm3253 = vcmask 522240
      %3254 = vst.msk [vmem:[#allocation6 + $0x68] sm:$0x7f] %vm3253, %v3239
      %3255 = vst.msk [vmem:[#allocation7] sm:$0xff] %vm3124, 0.0
      %3256 = vst.msk [vmem:[#allocation7 + $0x8] sm:$0xff] %vm3124, 0.0
      %3257 = vst.msk [vmem:[#allocation7 + $0x10] sm:$0xff] %vm3124, 0.0
      %3258 = vst.msk [vmem:[#allocation7 + $0x18] sm:$0xff] %vm3124, 0.0
      %3259 = vst.msk [vmem:[#allocation7 + $0x20] sm:$0xff] %vm3124, 0.0
      %3260 = vst.msk [vmem:[#allocation7 + $0x28] sm:$0xff] %vm3124, 0.0
      %3261 = vst.msk [vmem:[#allocation7 + $0x30] sm:$0xff] %vm3124, 0.0
      %3262 = vst.msk [vmem:[#allocation7 + $0x38] sm:$0xff] %vm3124, 0.0
      %s3263 = scalar_lea.vmem [#allocation6], 22
      %v3264 = vld [vmem:[%s3263] ss:$2 sm:$0xf]
      %vm3265 = vcmask 519168
      %3266 = vst.msk [vmem:[#allocation7 + $0x15] sm:$0xf] %vm3265, %v3264
      %s3267 = scalar_lea.vmem [#allocation6], 42
      %v3268 = vld [vmem:[%s3267] ss:$2 sm:$0xf]
      %3269 = vst.msk [vmem:[#allocation7 + $0x1b] sm:$0xf] %vm3265, %v3268
      %s3270 = scalar_lea.vmem [#allocation6], 62
      %v3271 = vld [vmem:[%s3270] ss:$2 sm:$0xf]
      %3272 = vst.msk [vmem:[#allocation7 + $0x21] sm:$0xf] %vm3265, %v3271
      %s3273 = scalar_lea.vmem [#allocation6], 82
      %v3274 = vld [vmem:[%s3273] ss:$2 sm:$0xf]
      %3275 = vst.msk [vmem:[#allocation7 + $0x27] sm:$0xf] %vm3265, %v3274
      %v3276 = vld [vmem:[#allocation7] sm:$0xff]
      %v3277 = vld [vmem:[#allocation7 + $0x8] sm:$0xff]
      %v3278 = vld [vmem:[#allocation7 + $0x10] sm:$0xff]
      %v3279 = vld [vmem:[#allocation7 + $0x18] sm:$0xff]
      %v3280 = vld [vmem:[#allocation7 + $0x20] sm:$0xff]
      %v3281 = vld [vmem:[#allocation7 + $0x28] sm:$0xff]
      %v3282 = vld [vmem:[#allocation7 + $0x30] sm:$0x3]
      %v3283 = vld [vmem:[%s5] sm:$0xff]
      %v3284 = vld [vmem:[%s5 + $0x8] sm:$0xff]
      %v3285 = vld [vmem:[%s5 + $0x10] sm:$0xff]
      %v3286 = vld [vmem:[%s5 + $0x18] sm:$0xff]
      %v3287 = vld [vmem:[%s5 + $0x20] sm:$0xff]
      %v3288 = vld [vmem:[%s5 + $0x28] sm:$0xff]
      %v3289 = vld [vmem:[%s5 + $0x30] sm:$0xff]
      %v3290 = vld [vmem:[%s5 + $0x38] sm:$0xff]
      %v3291 = vld [vmem:[%s5 + $0x40] sm:$0xff]
      %v3292 = vld [vmem:[%s5 + $0x48] sm:$0xff]
      %v3293 = vld [vmem:[%s5 + $0x50] sm:$0xff]
      %v3294 = vld [vmem:[%s5 + $0x58] sm:$0xff]
      %v3295 = vld [vmem:[%s5 + $0x60] sm:$0xff]
      %v3296 = vld [vmem:[%s5 + $0x68] sm:$0xff]
      %v3297 = vld [vmem:[%s5 + $0x70] sm:$0xff]
      %v3298 = vld [vmem:[%s5 + $0x78] sm:$0xff]
      %v3299 = vld [vmem:[#allocation7 + $0x1] sm:$0xff]
      %v3300 = vld [vmem:[#allocation7 + $0x9] sm:$0xff]
      %v3301 = vld [vmem:[#allocation7 + $0x11] sm:$0xff]
      %v3302 = vld [vmem:[#allocation7 + $0x19] sm:$0xff]
      %v3303 = vld [vmem:[#allocation7 + $0x21] sm:$0xff]
      %v3304 = vld [vmem:[#allocation7 + $0x29] sm:$0xff]
      %v3305 = vld [vmem:[#allocation7 + $0x31] sm:$0x3]
      %v3306 = vld [vmem:[%s5 + $0x80] sm:$0xff]
      %v3307 = vld [vmem:[%s5 + $0x88] sm:$0xff]
      %v3308 = vld [vmem:[%s5 + $0x90] sm:$0xff]
      %v3309 = vld [vmem:[%s5 + $0x98] sm:$0xff]
      %v3310 = vld [vmem:[%s5 + $0xa0] sm:$0xff]
      %v3311 = vld [vmem:[%s5 + $0xa8] sm:$0xff]
      %v3312 = vld [vmem:[%s5 + $0xb0] sm:$0xff]
      %v3313 = vld [vmem:[%s5 + $0xb8] sm:$0xff]
      %v3314 = vld [vmem:[%s5 + $0xc0] sm:$0xff]
      %v3315 = vld [vmem:[%s5 + $0xc8] sm:$0xff]
      %v3316 = vld [vmem:[%s5 + $0xd0] sm:$0xff]
      %v3317 = vld [vmem:[%s5 + $0xd8] sm:$0xff]
      %v3318 = vld [vmem:[%s5 + $0xe0] sm:$0xff]
      %v3319 = vld [vmem:[%s5 + $0xe8] sm:$0xff]
      %v3320 = vld [vmem:[%s5 + $0xf0] sm:$0xff]
      %v3321 = vld [vmem:[%s5 + $0xf8] sm:$0xff]
      %v3323 = vsel %vm3124, %v3299, 0
      %v3326 = vsel %vm3124, %v3300, 0
      %v3329 = vsel %vm3124, %v3301, 0
      %v3332 = vsel %vm3124, %v3302, 0
      %v3335 = vsel %vm3124, %v3303, 0
      %v3338 = vsel %vm3124, %v3304, 0
      %v3341 = vsel %vm3124, %v3305, 0
      %3343 = vmatprep.subr.mxu0 0.0
      %3344 = vmatpush1.msra.mxu0 0.0
      %3345 = vmatprep.subr.mxu0 0.0
      %3346 = vmatpush1.msra.mxu0 0.0
      %3347 = vmatprep.subr.mxu0 0.0
      %3348 = vmatpush1.msra.mxu0 0.0
      %3349 = vmatprep.subr.mxu0 0.0
      %3350 = vmatpush1.msra.mxu0 0.0
      %3351 = vmatprep.subr.mxu0 0.0
      %3352 = vmatpush1.msra.mxu0 0.0
      %3353 = vmatprep.subr.mxu0 0.0
      %3354 = vmatpush1.msra.mxu0 0.0
      %3355 = vmatprep.subr.mxu0 0.0
      %3356 = vmatpush1.msra.mxu0 0.0
      %3357 = vmatprep.subr.mxu0 0.0
      %3358 = vmatpush1.msra.mxu0 0.0
      %3359 = vmatprep.subr.mxu0 %v3321
      %3360 = vmatpush1.msra.mxu0 %v3320
      %3361 = vmatprep.subr.mxu0 %v3319
      %3362 = vmatpush1.msra.mxu0 %v3318
      %3363 = vmatprep.subr.mxu0 %v3317
      %3364 = vmatpush1.msra.mxu0 %v3316
      %3365 = vmatprep.subr.mxu0 %v3315
      %3366 = vmatpush1.msra.mxu0 %v3314
      %3367 = vmatprep.subr.mxu0 %v3313
      %3368 = vmatpush1.msra.mxu0 %v3312
      %3369 = vmatprep.subr.mxu0 %v3311
      %3370 = vmatpush1.msra.mxu0 %v3310
      %3371 = vmatprep.subr.mxu0 %v3309
      %3372 = vmatpush1.msra.mxu0 %v3308
      %3373 = vmatprep.subr.mxu0 %v3307
      %3374 = vmatpush1.msra.mxu0 %v3306
      %3375 = vmatprep.subr.mxu0 0.0
      %3376 = vmatpush2.msra.mxu0 0.0
      %3377 = vmatprep.subr.mxu0 0.0
      %3378 = vmatpush2.msra.mxu0 0.0
      %3379 = vmatprep.subr.mxu0 0.0
      %3380 = vmatpush2.msra.mxu0 0.0
      %3381 = vmatprep.subr.mxu0 0.0
      %3382 = vmatpush2.msra.mxu0 0.0
      %3383 = vmatprep.subr.mxu0 0.0
      %3384 = vmatpush2.msra.mxu0 0.0
      %3385 = vmatprep.subr.mxu0 0.0
      %3386 = vmatpush2.msra.mxu0 0.0
      %3387 = vmatprep.subr.mxu0 0.0
      %3388 = vmatpush2.msra.mxu0 0.0
      %3389 = vmatprep.subr.mxu0 0.0
      %3390 = vmatpush2.msra.mxu0 0.0
      %3391 = vmatprep.subr.mxu0 0.0
      %3392 = vmatpush2.msra.mxu0 0.0
      %3393 = vmatprep.subr.mxu0 0.0
      %3394 = vmatpush2.msra.mxu0 0.0
      %3395 = vmatprep.subr.mxu0 0.0
      %3396 = vmatpush2.msra.mxu0 0.0
      %3397 = vmatprep.subr.mxu0 0.0
      %3398 = vmatpush2.msra.mxu0 0.0
      %3399 = vmatprep.subr.mxu0 0.0
      %3400 = vmatpush2.msra.mxu0 0.0
      %3401 = vmatprep.subr.mxu0 0.0
      %3402 = vmatpush2.msra.mxu0 0.0
      %3403 = vmatprep.subr.mxu0 0.0
      %3404 = vmatpush2.msra.mxu0 0.0
      %3405 = vmatprep.subr.mxu0 0.0
      %3406 = vmatpush2.msra.mxu0 0.0
      %3407 = vmatprep.mubr.f32.mxu0 0.0
      %3408 = vmatmul.mubr.f32.gmra.mxu0 %v3323
      %v3409 = vpop.f32.mrf.mxu0
      %v3410 = vadd.f32 0.0, %v3409
      %v3411 = vpop.f32.mrf.mxu0
      %v3412 = vadd.f32 0.0, %v3411
      %3413 = vmatprep.mubr.f32.mxu0 0.0
      %3414 = vmatmul.mubr.f32.gmra.mxu0 %v3326
      %v3415 = vpop.f32.mrf.mxu0
      %v3416 = vadd.f32 0.0, %v3415
      %v3417 = vpop.f32.mrf.mxu0
      %v3418 = vadd.f32 0.0, %v3417
      %3419 = vmatprep.mubr.f32.mxu0 0.0
      %3420 = vmatmul.mubr.f32.gmra.mxu0 %v3329
      %v3421 = vpop.f32.mrf.mxu0
      %v3422 = vadd.f32 0.0, %v3421
      %v3423 = vpop.f32.mrf.mxu0
      %v3424 = vadd.f32 0.0, %v3423
      %3425 = vmatprep.mubr.f32.mxu0 0.0
      %3426 = vmatmul.mubr.f32.gmra.mxu0 %v3332
      %v3427 = vpop.f32.mrf.mxu0
      %v3428 = vadd.f32 0.0, %v3427
      %v3429 = vpop.f32.mrf.mxu0
      %v3430 = vadd.f32 0.0, %v3429
      %3431 = vmatprep.mubr.f32.mxu0 0.0
      %3432 = vmatmul.mubr.f32.gmra.mxu0 %v3335
      %v3433 = vpop.f32.mrf.mxu0
      %v3434 = vadd.f32 0.0, %v3433
      %v3435 = vpop.f32.mrf.mxu0
      %v3436 = vadd.f32 0.0, %v3435
      %3437 = vmatprep.mubr.f32.mxu0 0.0
      %3438 = vmatmul.mubr.f32.gmra.mxu0 %v3338
      %v3439 = vpop.f32.mrf.mxu0
      %v3440 = vadd.f32 0.0, %v3439
      %v3441 = vpop.f32.mrf.mxu0
      %v3442 = vadd.f32 0.0, %v3441
      %3443 = vmatprep.mubr.f32.mxu0 0.0
      %3444 = vmatmul.mubr.f32.gmra.mxu0 %v3341
      %v3445 = vpop.f32.mrf.mxu0
      %v3446 = vadd.f32 0.0, %v3445
      %v3447 = vpop.f32.mrf.mxu0
      %v3448 = vadd.f32 0.0, %v3447
      %3449 = vdwg.mxu0
      %v3451 = vsel %vm3124, %v3276, 0
      %v3454 = vsel %vm3124, %v3277, 0
      %v3457 = vsel %vm3124, %v3278, 0
      %v3460 = vsel %vm3124, %v3279, 0
      %v3463 = vsel %vm3124, %v3280, 0
      %v3466 = vsel %vm3124, %v3281, 0
      %v3469 = vsel %vm3124, %v3282, 0
      %3471 = vmatprep.subr.mxu0 0.0
      %3472 = vmatpush1.msra.mxu0 0.0
      %3473 = vmatprep.subr.mxu0 0.0
      %3474 = vmatpush1.msra.mxu0 0.0
      %3475 = vmatprep.subr.mxu0 0.0
      %3476 = vmatpush1.msra.mxu0 0.0
      %3477 = vmatprep.subr.mxu0 0.0
      %3478 = vmatpush1.msra.mxu0 0.0
      %3479 = vmatprep.subr.mxu0 0.0
      %3480 = vmatpush1.msra.mxu0 0.0
      %3481 = vmatprep.subr.mxu0 0.0
      %3482 = vmatpush1.msra.mxu0 0.0
      %3483 = vmatprep.subr.mxu0 0.0
      %3484 = vmatpush1.msra.mxu0 0.0
      %3485 = vmatprep.subr.mxu0 0.0
      %3486 = vmatpush1.msra.mxu0 0.0
      %3487 = vmatprep.subr.mxu0 %v3298
      %3488 = vmatpush1.msra.mxu0 %v3297
      %3489 = vmatprep.subr.mxu0 %v3296
      %3490 = vmatpush1.msra.mxu0 %v3295
      %3491 = vmatprep.subr.mxu0 %v3294
      %3492 = vmatpush1.msra.mxu0 %v3293
      %3493 = vmatprep.subr.mxu0 %v3292
      %3494 = vmatpush1.msra.mxu0 %v3291
      %3495 = vmatprep.subr.mxu0 %v3290
      %3496 = vmatpush1.msra.mxu0 %v3289
      %3497 = vmatprep.subr.mxu0 %v3288
      %3498 = vmatpush1.msra.mxu0 %v3287
      %3499 = vmatprep.subr.mxu0 %v3286
      %3500 = vmatpush1.msra.mxu0 %v3285
      %3501 = vmatprep.subr.mxu0 %v3284
      %3502 = vmatpush1.msra.mxu0 %v3283
      %3503 = vmatprep.subr.mxu0 0.0
      %3504 = vmatpush2.msra.mxu0 0.0
      %3505 = vmatprep.subr.mxu0 0.0
      %3506 = vmatpush2.msra.mxu0 0.0
      %3507 = vmatprep.subr.mxu0 0.0
      %3508 = vmatpush2.msra.mxu0 0.0
      %3509 = vmatprep.subr.mxu0 0.0
      %3510 = vmatpush2.msra.mxu0 0.0
      %3511 = vmatprep.subr.mxu0 0.0
      %3512 = vmatpush2.msra.mxu0 0.0
      %3513 = vmatprep.subr.mxu0 0.0
      %3514 = vmatpush2.msra.mxu0 0.0
      %3515 = vmatprep.subr.mxu0 0.0
      %3516 = vmatpush2.msra.mxu0 0.0
      %3517 = vmatprep.subr.mxu0 0.0
      %3518 = vmatpush2.msra.mxu0 0.0
      %3519 = vmatprep.subr.mxu0 0.0
      %3520 = vmatpush2.msra.mxu0 0.0
      %3521 = vmatprep.subr.mxu0 0.0
      %3522 = vmatpush2.msra.mxu0 0.0
      %3523 = vmatprep.subr.mxu0 0.0
      %3524 = vmatpush2.msra.mxu0 0.0
      %3525 = vmatprep.subr.mxu0 0.0
      %3526 = vmatpush2.msra.mxu0 0.0
      %3527 = vmatprep.subr.mxu0 0.0
      %3528 = vmatpush2.msra.mxu0 0.0
      %3529 = vmatprep.subr.mxu0 0.0
      %3530 = vmatpush2.msra.mxu0 0.0
      %3531 = vmatprep.subr.mxu0 0.0
      %3532 = vmatpush2.msra.mxu0 0.0
      %3533 = vmatprep.subr.mxu0 0.0
      %3534 = vmatpush2.msra.mxu0 0.0
      %3535 = vmatprep.mubr.f32.mxu0 0.0
      %3536 = vmatmul.mubr.f32.gmra.mxu0 %v3451
      %v3537 = vpop.f32.mrf.mxu0
      %v3538 = vadd.f32 %v3410, %v3537
      %v3539 = vpop.f32.mrf.mxu0
      %v3540 = vadd.f32 %v3412, %v3539
      %3541 = vmatprep.mubr.f32.mxu0 0.0
      %3542 = vmatmul.mubr.f32.gmra.mxu0 %v3454
      %v3543 = vpop.f32.mrf.mxu0
      %v3544 = vadd.f32 %v3416, %v3543
      %v3545 = vpop.f32.mrf.mxu0
      %v3546 = vadd.f32 %v3418, %v3545
      %3547 = vmatprep.mubr.f32.mxu0 0.0
      %3548 = vmatmul.mubr.f32.gmra.mxu0 %v3457
      %v3549 = vpop.f32.mrf.mxu0
      %v3550 = vadd.f32 %v3422, %v3549
      %v3551 = vpop.f32.mrf.mxu0
      %v3552 = vadd.f32 %v3424, %v3551
      %3553 = vmatprep.mubr.f32.mxu0 0.0
      %3554 = vmatmul.mubr.f32.gmra.mxu0 %v3460
      %v3555 = vpop.f32.mrf.mxu0
      %v3556 = vadd.f32 %v3428, %v3555
      %v3557 = vpop.f32.mrf.mxu0
      %v3558 = vadd.f32 %v3430, %v3557
      %3559 = vmatprep.mubr.f32.mxu0 0.0
      %3560 = vmatmul.mubr.f32.gmra.mxu0 %v3463
      %v3561 = vpop.f32.mrf.mxu0
      %v3562 = vadd.f32 %v3434, %v3561
      %v3563 = vpop.f32.mrf.mxu0
      %v3564 = vadd.f32 %v3436, %v3563
      %3565 = vmatprep.mubr.f32.mxu0 0.0
      %3566 = vmatmul.mubr.f32.gmra.mxu0 %v3466
      %v3567 = vpop.f32.mrf.mxu0
      %v3568 = vadd.f32 %v3440, %v3567
      %v3569 = vpop.f32.mrf.mxu0
      %v3570 = vadd.f32 %v3442, %v3569
      %3571 = vmatprep.mubr.f32.mxu0 0.0
      %3572 = vmatmul.mubr.f32.gmra.mxu0 %v3469
      %v3573 = vpop.f32.mrf.mxu0
      %v3574 = vadd.f32 %v3446, %v3573
      %v3575 = vpop.f32.mrf.mxu0
      %v3576 = vadd.f32 %v3448, %v3575
      %3577 = vdwg.mxu0
      %v3578 = vld [vmem:[#allocation7 + $0x2] sm:$0xff]
      %v3579 = vld [vmem:[#allocation7 + $0xa] sm:$0xff]
      %v3580 = vld [vmem:[#allocation7 + $0x12] sm:$0xff]
      %v3581 = vld [vmem:[#allocation7 + $0x1a] sm:$0xff]
      %v3582 = vld [vmem:[#allocation7 + $0x22] sm:$0xff]
      %v3583 = vld [vmem:[#allocation7 + $0x2a] sm:$0xff]
      %v3584 = vld [vmem:[#allocation7 + $0x32] sm:$0x3]
      %v3585 = vld [vmem:[%s5 + $0x100] sm:$0xff]
      %v3586 = vld [vmem:[%s5 + $0x108] sm:$0xff]
      %v3587 = vld [vmem:[%s5 + $0x110] sm:$0xff]
      %v3588 = vld [vmem:[%s5 + $0x118] sm:$0xff]
      %v3589 = vld [vmem:[%s5 + $0x120] sm:$0xff]
      %v3590 = vld [vmem:[%s5 + $0x128] sm:$0xff]
      %v3591 = vld [vmem:[%s5 + $0x130] sm:$0xff]
      %v3592 = vld [vmem:[%s5 + $0x138] sm:$0xff]
      %v3593 = vld [vmem:[%s5 + $0x140] sm:$0xff]
      %v3594 = vld [vmem:[%s5 + $0x148] sm:$0xff]
      %v3595 = vld [vmem:[%s5 + $0x150] sm:$0xff]
      %v3596 = vld [vmem:[%s5 + $0x158] sm:$0xff]
      %v3597 = vld [vmem:[%s5 + $0x160] sm:$0xff]
      %v3598 = vld [vmem:[%s5 + $0x168] sm:$0xff]
      %v3599 = vld [vmem:[%s5 + $0x170] sm:$0xff]
      %v3600 = vld [vmem:[%s5 + $0x178] sm:$0xff]
      %v3602 = vsel %vm3124, %v3578, 0
      %v3605 = vsel %vm3124, %v3579, 0
      %v3608 = vsel %vm3124, %v3580, 0
      %v3611 = vsel %vm3124, %v3581, 0
      %v3614 = vsel %vm3124, %v3582, 0
      %v3617 = vsel %vm3124, %v3583, 0
      %v3620 = vsel %vm3124, %v3584, 0
      %3622 = vmatprep.subr.mxu0 0.0
      %3623 = vmatpush1.msra.mxu0 0.0
      %3624 = vmatprep.subr.mxu0 0.0
      %3625 = vmatpush1.msra.mxu0 0.0
      %3626 = vmatprep.subr.mxu0 0.0
      %3627 = vmatpush1.msra.mxu0 0.0
      %3628 = vmatprep.subr.mxu0 0.0
      %3629 = vmatpush1.msra.mxu0 0.0
      %3630 = vmatprep.subr.mxu0 0.0
      %3631 = vmatpush1.msra.mxu0 0.0
      %3632 = vmatprep.subr.mxu0 0.0
      %3633 = vmatpush1.msra.mxu0 0.0
      %3634 = vmatprep.subr.mxu0 0.0
      %3635 = vmatpush1.msra.mxu0 0.0
      %3636 = vmatprep.subr.mxu0 0.0
      %3637 = vmatpush1.msra.mxu0 0.0
      %3638 = vmatprep.subr.mxu0 %v3600
      %3639 = vmatpush1.msra.mxu0 %v3599
      %3640 = vmatprep.subr.mxu0 %v3598
      %3641 = vmatpush1.msra.mxu0 %v3597
      %3642 = vmatprep.subr.mxu0 %v3596
      %3643 = vmatpush1.msra.mxu0 %v3595
      %3644 = vmatprep.subr.mxu0 %v3594
      %3645 = vmatpush1.msra.mxu0 %v3593
      %3646 = vmatprep.subr.mxu0 %v3592
      %3647 = vmatpush1.msra.mxu0 %v3591
      %3648 = vmatprep.subr.mxu0 %v3590
      %3649 = vmatpush1.msra.mxu0 %v3589
      %3650 = vmatprep.subr.mxu0 %v3588
      %3651 = vmatpush1.msra.mxu0 %v3587
      %3652 = vmatprep.subr.mxu0 %v3586
      %3653 = vmatpush1.msra.mxu0 %v3585
      %3654 = vmatprep.subr.mxu0 0.0
      %3655 = vmatpush2.msra.mxu0 0.0
      %3656 = vmatprep.subr.mxu0 0.0
      %3657 = vmatpush2.msra.mxu0 0.0
      %3658 = vmatprep.subr.mxu0 0.0
      %3659 = vmatpush2.msra.mxu0 0.0
      %3660 = vmatprep.subr.mxu0 0.0
      %3661 = vmatpush2.msra.mxu0 0.0
      %3662 = vmatprep.subr.mxu0 0.0
      %3663 = vmatpush2.msra.mxu0 0.0
      %3664 = vmatprep.subr.mxu0 0.0
      %3665 = vmatpush2.msra.mxu0 0.0
      %3666 = vmatprep.subr.mxu0 0.0
      %3667 = vmatpush2.msra.mxu0 0.0
      %3668 = vmatprep.subr.mxu0 0.0
      %3669 = vmatpush2.msra.mxu0 0.0
      %3670 = vmatprep.subr.mxu0 0.0
      %3671 = vmatpush2.msra.mxu0 0.0
      %3672 = vmatprep.subr.mxu0 0.0
      %3673 = vmatpush2.msra.mxu0 0.0
      %3674 = vmatprep.subr.mxu0 0.0
      %3675 = vmatpush2.msra.mxu0 0.0
      %3676 = vmatprep.subr.mxu0 0.0
      %3677 = vmatpush2.msra.mxu0 0.0
      %3678 = vmatprep.subr.mxu0 0.0
      %3679 = vmatpush2.msra.mxu0 0.0
      %3680 = vmatprep.subr.mxu0 0.0
      %3681 = vmatpush2.msra.mxu0 0.0
      %3682 = vmatprep.subr.mxu0 0.0
      %3683 = vmatpush2.msra.mxu0 0.0
      %3684 = vmatprep.subr.mxu0 0.0
      %3685 = vmatpush2.msra.mxu0 0.0
      %3686 = vmatprep.mubr.f32.mxu0 0.0
      %3687 = vmatmul.mubr.f32.gmra.mxu0 %v3602
      %v3688 = vpop.f32.mrf.mxu0
      %v3689 = vadd.f32 0.0, %v3688
      %v3690 = vpop.f32.mrf.mxu0
      %v3691 = vadd.f32 0.0, %v3690
      %3692 = vmatprep.mubr.f32.mxu0 0.0
      %3693 = vmatmul.mubr.f32.gmra.mxu0 %v3605
      %v3694 = vpop.f32.mrf.mxu0
      %v3695 = vadd.f32 0.0, %v3694
      %v3696 = vpop.f32.mrf.mxu0
      %v3697 = vadd.f32 0.0, %v3696
      %3698 = vmatprep.mubr.f32.mxu0 0.0
      %3699 = vmatmul.mubr.f32.gmra.mxu0 %v3608
      %v3700 = vpop.f32.mrf.mxu0
      %v3701 = vadd.f32 0.0, %v3700
      %v3702 = vpop.f32.mrf.mxu0
      %v3703 = vadd.f32 0.0, %v3702
      %3704 = vmatprep.mubr.f32.mxu0 0.0
      %3705 = vmatmul.mubr.f32.gmra.mxu0 %v3611
      %v3706 = vpop.f32.mrf.mxu0
      %v3707 = vadd.f32 0.0, %v3706
      %v3708 = vpop.f32.mrf.mxu0
      %v3709 = vadd.f32 0.0, %v3708
      %3710 = vmatprep.mubr.f32.mxu0 0.0
      %3711 = vmatmul.mubr.f32.gmra.mxu0 %v3614
      %v3712 = vpop.f32.mrf.mxu0
      %v3713 = vadd.f32 0.0, %v3712
      %v3714 = vpop.f32.mrf.mxu0
      %v3715 = vadd.f32 0.0, %v3714
      %3716 = vmatprep.mubr.f32.mxu0 0.0
      %3717 = vmatmul.mubr.f32.gmra.mxu0 %v3617
      %v3718 = vpop.f32.mrf.mxu0
      %v3719 = vadd.f32 0.0, %v3718
      %v3720 = vpop.f32.mrf.mxu0
      %v3721 = vadd.f32 0.0, %v3720
      %3722 = vmatprep.mubr.f32.mxu0 0.0
      %3723 = vmatmul.mubr.f32.gmra.mxu0 %v3620
      %v3724 = vpop.f32.mrf.mxu0
      %v3725 = vadd.f32 0.0, %v3724
      %v3726 = vpop.f32.mrf.mxu0
      %v3727 = vadd.f32 0.0, %v3726
      %3728 = vdwg.mxu0
      %v3729 = vadd.f32 %v3538, %v3689
      %v3730 = vadd.f32 %v3540, %v3691
      %v3731 = vadd.f32 %v3544, %v3695
      %v3732 = vadd.f32 %v3546, %v3697
      %v3733 = vadd.f32 %v3550, %v3701
      %v3734 = vadd.f32 %v3552, %v3703
      %v3735 = vadd.f32 %v3556, %v3707
      %v3736 = vadd.f32 %v3558, %v3709
      %v3737 = vadd.f32 %v3562, %v3713
      %v3738 = vadd.f32 %v3564, %v3715
      %v3739 = vadd.f32 %v3568, %v3719
      %v3740 = vadd.f32 %v3570, %v3721
      %v3741 = vadd.f32 %v3574, %v3725
      %v3742 = vadd.f32 %v3576, %v3727
      %v3743 = vld [vmem:[#allocation7 + $0x6] sm:$0xff]
      %v3744 = vld [vmem:[#allocation7 + $0xe] sm:$0xff]
      %v3745 = vld [vmem:[#allocation7 + $0x16] sm:$0xff]
      %v3746 = vld [vmem:[#allocation7 + $0x1e] sm:$0xff]
      %v3747 = vld [vmem:[#allocation7 + $0x26] sm:$0xff]
      %v3748 = vld [vmem:[#allocation7 + $0x2e] sm:$0xff]
      %v3749 = vld [vmem:[#allocation7 + $0x36] sm:$0x3]
      %v3750 = vld [vmem:[%s5 + $0x180] sm:$0xff]
      %v3751 = vld [vmem:[%s5 + $0x188] sm:$0xff]
      %v3752 = vld [vmem:[%s5 + $0x190] sm:$0xff]
      %v3753 = vld [vmem:[%s5 + $0x198] sm:$0xff]
      %v3754 = vld [vmem:[%s5 + $0x1a0] sm:$0xff]
      %v3755 = vld [vmem:[%s5 + $0x1a8] sm:$0xff]
      %v3756 = vld [vmem:[%s5 + $0x1b0] sm:$0xff]
      %v3757 = vld [vmem:[%s5 + $0x1b8] sm:$0xff]
      %v3758 = vld [vmem:[%s5 + $0x1c0] sm:$0xff]
      %v3759 = vld [vmem:[%s5 + $0x1c8] sm:$0xff]
      %v3760 = vld [vmem:[%s5 + $0x1d0] sm:$0xff]
      %v3761 = vld [vmem:[%s5 + $0x1d8] sm:$0xff]
      %v3762 = vld [vmem:[%s5 + $0x1e0] sm:$0xff]
      %v3763 = vld [vmem:[%s5 + $0x1e8] sm:$0xff]
      %v3764 = vld [vmem:[%s5 + $0x1f0] sm:$0xff]
      %v3765 = vld [vmem:[%s5 + $0x1f8] sm:$0xff]
      %v3767 = vsel %vm3124, %v3743, 0
      %v3770 = vsel %vm3124, %v3744, 0
      %v3773 = vsel %vm3124, %v3745, 0
      %v3776 = vsel %vm3124, %v3746, 0
      %v3779 = vsel %vm3124, %v3747, 0
      %v3782 = vsel %vm3124, %v3748, 0
      %v3785 = vsel %vm3124, %v3749, 0
      %3787 = vmatprep.subr.mxu0 0.0
      %3788 = vmatpush1.msra.mxu0 0.0
      %3789 = vmatprep.subr.mxu0 0.0
      %3790 = vmatpush1.msra.mxu0 0.0
      %3791 = vmatprep.subr.mxu0 0.0
      %3792 = vmatpush1.msra.mxu0 0.0
      %3793 = vmatprep.subr.mxu0 0.0
      %3794 = vmatpush1.msra.mxu0 0.0
      %3795 = vmatprep.subr.mxu0 0.0
      %3796 = vmatpush1.msra.mxu0 0.0
      %3797 = vmatprep.subr.mxu0 0.0
      %3798 = vmatpush1.msra.mxu0 0.0
      %3799 = vmatprep.subr.mxu0 0.0
      %3800 = vmatpush1.msra.mxu0 0.0
      %3801 = vmatprep.subr.mxu0 0.0
      %3802 = vmatpush1.msra.mxu0 0.0
      %3803 = vmatprep.subr.mxu0 %v3765
      %3804 = vmatpush1.msra.mxu0 %v3764
      %3805 = vmatprep.subr.mxu0 %v3763
      %3806 = vmatpush1.msra.mxu0 %v3762
      %3807 = vmatprep.subr.mxu0 %v3761
      %3808 = vmatpush1.msra.mxu0 %v3760
      %3809 = vmatprep.subr.mxu0 %v3759
      %3810 = vmatpush1.msra.mxu0 %v3758
      %3811 = vmatprep.subr.mxu0 %v3757
      %3812 = vmatpush1.msra.mxu0 %v3756
      %3813 = vmatprep.subr.mxu0 %v3755
      %3814 = vmatpush1.msra.mxu0 %v3754
      %3815 = vmatprep.subr.mxu0 %v3753
      %3816 = vmatpush1.msra.mxu0 %v3752
      %3817 = vmatprep.subr.mxu0 %v3751
      %3818 = vmatpush1.msra.mxu0 %v3750
      %3819 = vmatprep.subr.mxu0 0.0
      %3820 = vmatpush2.msra.mxu0 0.0
      %3821 = vmatprep.subr.mxu0 0.0
      %3822 = vmatpush2.msra.mxu0 0.0
      %3823 = vmatprep.subr.mxu0 0.0
      %3824 = vmatpush2.msra.mxu0 0.0
      %3825 = vmatprep.subr.mxu0 0.0
      %3826 = vmatpush2.msra.mxu0 0.0
      %3827 = vmatprep.subr.mxu0 0.0
      %3828 = vmatpush2.msra.mxu0 0.0
      %3829 = vmatprep.subr.mxu0 0.0
      %3830 = vmatpush2.msra.mxu0 0.0
      %3831 = vmatprep.subr.mxu0 0.0
      %3832 = vmatpush2.msra.mxu0 0.0
      %3833 = vmatprep.subr.mxu0 0.0
      %3834 = vmatpush2.msra.mxu0 0.0
      %3835 = vmatprep.subr.mxu0 0.0
      %3836 = vmatpush2.msra.mxu0 0.0
      %3837 = vmatprep.subr.mxu0 0.0
      %3838 = vmatpush2.msra.mxu0 0.0
      %3839 = vmatprep.subr.mxu0 0.0
      %3840 = vmatpush2.msra.mxu0 0.0
      %3841 = vmatprep.subr.mxu0 0.0
      %3842 = vmatpush2.msra.mxu0 0.0
      %3843 = vmatprep.subr.mxu0 0.0
      %3844 = vmatpush2.msra.mxu0 0.0
      %3845 = vmatprep.subr.mxu0 0.0
      %3846 = vmatpush2.msra.mxu0 0.0
      %3847 = vmatprep.subr.mxu0 0.0
      %3848 = vmatpush2.msra.mxu0 0.0
      %3849 = vmatprep.subr.mxu0 0.0
      %3850 = vmatpush2.msra.mxu0 0.0
      %3851 = vmatprep.mubr.f32.mxu0 0.0
      %3852 = vmatmul.mubr.f32.gmra.mxu0 %v3767
      %v3853 = vpop.f32.mrf.mxu0
      %v3854 = vadd.f32 0.0, %v3853
      %v3855 = vpop.f32.mrf.mxu0
      %v3856 = vadd.f32 0.0, %v3855
      %3857 = vmatprep.mubr.f32.mxu0 0.0
      %3858 = vmatmul.mubr.f32.gmra.mxu0 %v3770
      %v3859 = vpop.f32.mrf.mxu0
      %v3860 = vadd.f32 0.0, %v3859
      %v3861 = vpop.f32.mrf.mxu0
      %v3862 = vadd.f32 0.0, %v3861
      %3863 = vmatprep.mubr.f32.mxu0 0.0
      %3864 = vmatmul.mubr.f32.gmra.mxu0 %v3773
      %v3865 = vpop.f32.mrf.mxu0
      %v3866 = vadd.f32 0.0, %v3865
      %v3867 = vpop.f32.mrf.mxu0
      %v3868 = vadd.f32 0.0, %v3867
      %3869 = vmatprep.mubr.f32.mxu0 0.0
      %3870 = vmatmul.mubr.f32.gmra.mxu0 %v3776
      %v3871 = vpop.f32.mrf.mxu0
      %v3872 = vadd.f32 0.0, %v3871
      %v3873 = vpop.f32.mrf.mxu0
      %v3874 = vadd.f32 0.0, %v3873
      %3875 = vmatprep.mubr.f32.mxu0 0.0
      %3876 = vmatmul.mubr.f32.gmra.mxu0 %v3779
      %v3877 = vpop.f32.mrf.mxu0
      %v3878 = vadd.f32 0.0, %v3877
      %v3879 = vpop.f32.mrf.mxu0
      %v3880 = vadd.f32 0.0, %v3879
      %3881 = vmatprep.mubr.f32.mxu0 0.0
      %3882 = vmatmul.mubr.f32.gmra.mxu0 %v3782
      %v3883 = vpop.f32.mrf.mxu0
      %v3884 = vadd.f32 0.0, %v3883
      %v3885 = vpop.f32.mrf.mxu0
      %v3886 = vadd.f32 0.0, %v3885
      %3887 = vmatprep.mubr.f32.mxu0 0.0
      %3888 = vmatmul.mubr.f32.gmra.mxu0 %v3785
      %v3889 = vpop.f32.mrf.mxu0
      %v3890 = vadd.f32 0.0, %v3889
      %v3891 = vpop.f32.mrf.mxu0
      %v3892 = vadd.f32 0.0, %v3891
      %3893 = vdwg.mxu0
      %v3894 = vadd.f32 %v3729, %v3854
      %v3895 = vadd.f32 %v3730, %v3856
      %v3896 = vadd.f32 %v3731, %v3860
      %v3897 = vadd.f32 %v3732, %v3862
      %v3898 = vadd.f32 %v3733, %v3866
      %v3899 = vadd.f32 %v3734, %v3868
      %v3900 = vadd.f32 %v3735, %v3872
      %v3901 = vadd.f32 %v3736, %v3874
      %v3902 = vadd.f32 %v3737, %v3878
      %v3903 = vadd.f32 %v3738, %v3880
      %v3904 = vadd.f32 %v3739, %v3884
      %v3905 = vadd.f32 %v3740, %v3886
      %v3906 = vadd.f32 %v3741, %v3890
      %v3907 = vadd.f32 %v3742, %v3892
      %v3908 = vld [vmem:[#allocation7 + $0x7] sm:$0xff]
      %v3909 = vld [vmem:[#allocation7 + $0xf] sm:$0xff]
      %v3910 = vld [vmem:[#allocation7 + $0x17] sm:$0xff]
      %v3911 = vld [vmem:[#allocation7 + $0x1f] sm:$0xff]
      %v3912 = vld [vmem:[#allocation7 + $0x27] sm:$0xff]
      %v3913 = vld [vmem:[#allocation7 + $0x2f] sm:$0xff]
      %v3914 = vld [vmem:[#allocation7 + $0x37] sm:$0x3]
      %v3915 = vld [vmem:[%s5 + $0x200] sm:$0xff]
      %v3916 = vld [vmem:[%s5 + $0x208] sm:$0xff]
      %v3917 = vld [vmem:[%s5 + $0x210] sm:$0xff]
      %v3918 = vld [vmem:[%s5 + $0x218] sm:$0xff]
      %v3919 = vld [vmem:[%s5 + $0x220] sm:$0xff]
      %v3920 = vld [vmem:[%s5 + $0x228] sm:$0xff]
      %v3921 = vld [vmem:[%s5 + $0x230] sm:$0xff]
      %v3922 = vld [vmem:[%s5 + $0x238] sm:$0xff]
      %v3923 = vld [vmem:[%s5 + $0x240] sm:$0xff]
      %v3924 = vld [vmem:[%s5 + $0x248] sm:$0xff]
      %v3925 = vld [vmem:[%s5 + $0x250] sm:$0xff]
      %v3926 = vld [vmem:[%s5 + $0x258] sm:$0xff]
      %v3927 = vld [vmem:[%s5 + $0x260] sm:$0xff]
      %v3928 = vld [vmem:[%s5 + $0x268] sm:$0xff]
      %v3929 = vld [vmem:[%s5 + $0x270] sm:$0xff]
      %v3930 = vld [vmem:[%s5 + $0x278] sm:$0xff]
      %v3932 = vsel %vm3124, %v3908, 0
      %v3935 = vsel %vm3124, %v3909, 0
      %v3938 = vsel %vm3124, %v3910, 0
      %v3941 = vsel %vm3124, %v3911, 0
      %v3944 = vsel %vm3124, %v3912, 0
      %v3947 = vsel %vm3124, %v3913, 0
      %v3950 = vsel %vm3124, %v3914, 0
      %3952 = vmatprep.subr.mxu0 0.0
      %3953 = vmatpush1.msra.mxu0 0.0
      %3954 = vmatprep.subr.mxu0 0.0
      %3955 = vmatpush1.msra.mxu0 0.0
      %3956 = vmatprep.subr.mxu0 0.0
      %3957 = vmatpush1.msra.mxu0 0.0
      %3958 = vmatprep.subr.mxu0 0.0
      %3959 = vmatpush1.msra.mxu0 0.0
      %3960 = vmatprep.subr.mxu0 0.0
      %3961 = vmatpush1.msra.mxu0 0.0
      %3962 = vmatprep.subr.mxu0 0.0
      %3963 = vmatpush1.msra.mxu0 0.0
      %3964 = vmatprep.subr.mxu0 0.0
      %3965 = vmatpush1.msra.mxu0 0.0
      %3966 = vmatprep.subr.mxu0 0.0
      %3967 = vmatpush1.msra.mxu0 0.0
      %3968 = vmatprep.subr.mxu0 %v3930
      %3969 = vmatpush1.msra.mxu0 %v3929
      %3970 = vmatprep.subr.mxu0 %v3928
      %3971 = vmatpush1.msra.mxu0 %v3927
      %3972 = vmatprep.subr.mxu0 %v3926
      %3973 = vmatpush1.msra.mxu0 %v3925
      %3974 = vmatprep.subr.mxu0 %v3924
      %3975 = vmatpush1.msra.mxu0 %v3923
      %3976 = vmatprep.subr.mxu0 %v3922
      %3977 = vmatpush1.msra.mxu0 %v3921
      %3978 = vmatprep.subr.mxu0 %v3920
      %3979 = vmatpush1.msra.mxu0 %v3919
      %3980 = vmatprep.subr.mxu0 %v3918
      %3981 = vmatpush1.msra.mxu0 %v3917
      %3982 = vmatprep.subr.mxu0 %v3916
      %3983 = vmatpush1.msra.mxu0 %v3915
      %3984 = vmatprep.subr.mxu0 0.0
      %3985 = vmatpush2.msra.mxu0 0.0
      %3986 = vmatprep.subr.mxu0 0.0
      %3987 = vmatpush2.msra.mxu0 0.0
      %3988 = vmatprep.subr.mxu0 0.0
      %3989 = vmatpush2.msra.mxu0 0.0
      %3990 = vmatprep.subr.mxu0 0.0
      %3991 = vmatpush2.msra.mxu0 0.0
      %3992 = vmatprep.subr.mxu0 0.0
      %3993 = vmatpush2.msra.mxu0 0.0
      %3994 = vmatprep.subr.mxu0 0.0
      %3995 = vmatpush2.msra.mxu0 0.0
      %3996 = vmatprep.subr.mxu0 0.0
      %3997 = vmatpush2.msra.mxu0 0.0
      %3998 = vmatprep.subr.mxu0 0.0
      %3999 = vmatpush2.msra.mxu0 0.0
      %4000 = vmatprep.subr.mxu0 0.0
      %4001 = vmatpush2.msra.mxu0 0.0
      %4002 = vmatprep.subr.mxu0 0.0
      %4003 = vmatpush2.msra.mxu0 0.0
      %4004 = vmatprep.subr.mxu0 0.0
      %4005 = vmatpush2.msra.mxu0 0.0
      %4006 = vmatprep.subr.mxu0 0.0
      %4007 = vmatpush2.msra.mxu0 0.0
      %4008 = vmatprep.subr.mxu0 0.0
      %4009 = vmatpush2.msra.mxu0 0.0
      %4010 = vmatprep.subr.mxu0 0.0
      %4011 = vmatpush2.msra.mxu0 0.0
      %4012 = vmatprep.subr.mxu0 0.0
      %4013 = vmatpush2.msra.mxu0 0.0
      %4014 = vmatprep.subr.mxu0 0.0
      %4015 = vmatpush2.msra.mxu0 0.0
      %4016 = vmatprep.mubr.f32.mxu0 0.0
      %4017 = vmatmul.mubr.f32.gmra.mxu0 %v3932
      %v4018 = vpop.f32.mrf.mxu0
      %v4019 = vadd.f32 0.0, %v4018
      %v4020 = vpop.f32.mrf.mxu0
      %v4021 = vadd.f32 0.0, %v4020
      %4022 = vmatprep.mubr.f32.mxu0 0.0
      %4023 = vmatmul.mubr.f32.gmra.mxu0 %v3935
      %v4024 = vpop.f32.mrf.mxu0
      %v4025 = vadd.f32 0.0, %v4024
      %v4026 = vpop.f32.mrf.mxu0
      %v4027 = vadd.f32 0.0, %v4026
      %4028 = vmatprep.mubr.f32.mxu0 0.0
      %4029 = vmatmul.mubr.f32.gmra.mxu0 %v3938
      %v4030 = vpop.f32.mrf.mxu0
      %v4031 = vadd.f32 0.0, %v4030
      %v4032 = vpop.f32.mrf.mxu0
      %v4033 = vadd.f32 0.0, %v4032
      %4034 = vmatprep.mubr.f32.mxu0 0.0
      %4035 = vmatmul.mubr.f32.gmra.mxu0 %v3941
      %v4036 = vpop.f32.mrf.mxu0
      %v4037 = vadd.f32 0.0, %v4036
      %v4038 = vpop.f32.mrf.mxu0
      %v4039 = vadd.f32 0.0, %v4038
      %4040 = vmatprep.mubr.f32.mxu0 0.0
      %4041 = vmatmul.mubr.f32.gmra.mxu0 %v3944
      %v4042 = vpop.f32.mrf.mxu0
      %v4043 = vadd.f32 0.0, %v4042
      %v4044 = vpop.f32.mrf.mxu0
      %v4045 = vadd.f32 0.0, %v4044
      %4046 = vmatprep.mubr.f32.mxu0 0.0
      %4047 = vmatmul.mubr.f32.gmra.mxu0 %v3947
      %v4048 = vpop.f32.mrf.mxu0
      %v4049 = vadd.f32 0.0, %v4048
      %v4050 = vpop.f32.mrf.mxu0
      %v4051 = vadd.f32 0.0, %v4050
      %4052 = vmatprep.mubr.f32.mxu0 0.0
      %4053 = vmatmul.mubr.f32.gmra.mxu0 %v3950
      %v4054 = vpop.f32.mrf.mxu0
      %v4055 = vadd.f32 0.0, %v4054
      %v4056 = vpop.f32.mrf.mxu0
      %v4057 = vadd.f32 0.0, %v4056
      %4058 = vdwg.mxu0
      %v4059 = vadd.f32 %v3894, %v4019
      %v4060 = vadd.f32 %v3895, %v4021
      %v4061 = vadd.f32 %v3896, %v4025
      %v4062 = vadd.f32 %v3897, %v4027
      %v4063 = vadd.f32 %v3898, %v4031
      %v4064 = vadd.f32 %v3899, %v4033
      %v4065 = vadd.f32 %v3900, %v4037
      %v4066 = vadd.f32 %v3901, %v4039
      %v4067 = vadd.f32 %v3902, %v4043
      %v4068 = vadd.f32 %v3903, %v4045
      %v4069 = vadd.f32 %v3904, %v4049
      %v4070 = vadd.f32 %v3905, %v4051
      %v4071 = vadd.f32 %v3906, %v4055
      %v4072 = vadd.f32 %v3907, %v4057
      %v4073 = vld [vmem:[#allocation7 + $0x8] sm:$0xff]
      %v4074 = vld [vmem:[#allocation7 + $0x10] sm:$0xff]
      %v4075 = vld [vmem:[#allocation7 + $0x18] sm:$0xff]
      %v4076 = vld [vmem:[#allocation7 + $0x20] sm:$0xff]
      %v4077 = vld [vmem:[#allocation7 + $0x28] sm:$0xff]
      %v4078 = vld [vmem:[#allocation7 + $0x30] sm:$0xff]
      %v4079 = vld [vmem:[#allocation7 + $0x38] sm:$0x3]
      %v4080 = vld [vmem:[%s5 + $0x280] sm:$0xff]
      %v4081 = vld [vmem:[%s5 + $0x288] sm:$0xff]
      %v4082 = vld [vmem:[%s5 + $0x290] sm:$0xff]
      %v4083 = vld [vmem:[%s5 + $0x298] sm:$0xff]
      %v4084 = vld [vmem:[%s5 + $0x2a0] sm:$0xff]
      %v4085 = vld [vmem:[%s5 + $0x2a8] sm:$0xff]
      %v4086 = vld [vmem:[%s5 + $0x2b0] sm:$0xff]
      %v4087 = vld [vmem:[%s5 + $0x2b8] sm:$0xff]
      %v4088 = vld [vmem:[%s5 + $0x2c0] sm:$0xff]
      %v4089 = vld [vmem:[%s5 + $0x2c8] sm:$0xff]
      %v4090 = vld [vmem:[%s5 + $0x2d0] sm:$0xff]
      %v4091 = vld [vmem:[%s5 + $0x2d8] sm:$0xff]
      %v4092 = vld [vmem:[%s5 + $0x2e0] sm:$0xff]
      %v4093 = vld [vmem:[%s5 + $0x2e8] sm:$0xff]
      %v4094 = vld [vmem:[%s5 + $0x2f0] sm:$0xff]
      %v4095 = vld [vmem:[%s5 + $0x2f8] sm:$0xff]
      %v4097 = vsel %vm3124, %v4073, 0
      %v4100 = vsel %vm3124, %v4074, 0
      %v4103 = vsel %vm3124, %v4075, 0
      %v4106 = vsel %vm3124, %v4076, 0
      %v4109 = vsel %vm3124, %v4077, 0
      %v4112 = vsel %vm3124, %v4078, 0
      %v4115 = vsel %vm3124, %v4079, 0
      %4117 = vmatprep.subr.mxu0 0.0
      %4118 = vmatpush1.msra.mxu0 0.0
      %4119 = vmatprep.subr.mxu0 0.0
      %4120 = vmatpush1.msra.mxu0 0.0
      %4121 = vmatprep.subr.mxu0 0.0
      %4122 = vmatpush1.msra.mxu0 0.0
      %4123 = vmatprep.subr.mxu0 0.0
      %4124 = vmatpush1.msra.mxu0 0.0
      %4125 = vmatprep.subr.mxu0 0.0
      %4126 = vmatpush1.msra.mxu0 0.0
      %4127 = vmatprep.subr.mxu0 0.0
      %4128 = vmatpush1.msra.mxu0 0.0
      %4129 = vmatprep.subr.mxu0 0.0
      %4130 = vmatpush1.msra.mxu0 0.0
      %4131 = vmatprep.subr.mxu0 0.0
      %4132 = vmatpush1.msra.mxu0 0.0
      %4133 = vmatprep.subr.mxu0 %v4095
      %4134 = vmatpush1.msra.mxu0 %v4094
      %4135 = vmatprep.subr.mxu0 %v4093
      %4136 = vmatpush1.msra.mxu0 %v4092
      %4137 = vmatprep.subr.mxu0 %v4091
      %4138 = vmatpush1.msra.mxu0 %v4090
      %4139 = vmatprep.subr.mxu0 %v4089
      %4140 = vmatpush1.msra.mxu0 %v4088
      %4141 = vmatprep.subr.mxu0 %v4087
      %4142 = vmatpush1.msra.mxu0 %v4086
      %4143 = vmatprep.subr.mxu0 %v4085
      %4144 = vmatpush1.msra.mxu0 %v4084
      %4145 = vmatprep.subr.mxu0 %v4083
      %4146 = vmatpush1.msra.mxu0 %v4082
      %4147 = vmatprep.subr.mxu0 %v4081
      %4148 = vmatpush1.msra.mxu0 %v4080
      %4149 = vmatprep.subr.mxu0 0.0
      %4150 = vmatpush2.msra.mxu0 0.0
      %4151 = vmatprep.subr.mxu0 0.0
      %4152 = vmatpush2.msra.mxu0 0.0
      %4153 = vmatprep.subr.mxu0 0.0
      %4154 = vmatpush2.msra.mxu0 0.0
      %4155 = vmatprep.subr.mxu0 0.0
      %4156 = vmatpush2.msra.mxu0 0.0
      %4157 = vmatprep.subr.mxu0 0.0
      %4158 = vmatpush2.msra.mxu0 0.0
      %4159 = vmatprep.subr.mxu0 0.0
      %4160 = vmatpush2.msra.mxu0 0.0
      %4161 = vmatprep.subr.mxu0 0.0
      %4162 = vmatpush2.msra.mxu0 0.0
      %4163 = vmatprep.subr.mxu0 0.0
      %4164 = vmatpush2.msra.mxu0 0.0
      %4165 = vmatprep.subr.mxu0 0.0
      %4166 = vmatpush2.msra.mxu0 0.0
      %4167 = vmatprep.subr.mxu0 0.0
      %4168 = vmatpush2.msra.mxu0 0.0
      %4169 = vmatprep.subr.mxu0 0.0
      %4170 = vmatpush2.msra.mxu0 0.0
      %4171 = vmatprep.subr.mxu0 0.0
      %4172 = vmatpush2.msra.mxu0 0.0
      %4173 = vmatprep.subr.mxu0 0.0
      %4174 = vmatpush2.msra.mxu0 0.0
      %4175 = vmatprep.subr.mxu0 0.0
      %4176 = vmatpush2.msra.mxu0 0.0
      %4177 = vmatprep.subr.mxu0 0.0
      %4178 = vmatpush2.msra.mxu0 0.0
      %4179 = vmatprep.subr.mxu0 0.0
      %4180 = vmatpush2.msra.mxu0 0.0
      %4181 = vmatprep.mubr.f32.mxu0 0.0
      %4182 = vmatmul.mubr.f32.gmra.mxu0 %v4097
      %v4183 = vpop.f32.mrf.mxu0
      %v4184 = vadd.f32 0.0, %v4183
      %v4185 = vpop.f32.mrf.mxu0
      %v4186 = vadd.f32 0.0, %v4185
      %4187 = vmatprep.mubr.f32.mxu0 0.0
      %4188 = vmatmul.mubr.f32.gmra.mxu0 %v4100
      %v4189 = vpop.f32.mrf.mxu0
      %v4190 = vadd.f32 0.0, %v4189
      %v4191 = vpop.f32.mrf.mxu0
      %v4192 = vadd.f32 0.0, %v4191
      %4193 = vmatprep.mubr.f32.mxu0 0.0
      %4194 = vmatmul.mubr.f32.gmra.mxu0 %v4103
      %v4195 = vpop.f32.mrf.mxu0
      %v4196 = vadd.f32 0.0, %v4195
      %v4197 = vpop.f32.mrf.mxu0
      %v4198 = vadd.f32 0.0, %v4197
      %4199 = vmatprep.mubr.f32.mxu0 0.0
      %4200 = vmatmul.mubr.f32.gmra.mxu0 %v4106
      %v4201 = vpop.f32.mrf.mxu0
      %v4202 = vadd.f32 0.0, %v4201
      %v4203 = vpop.f32.mrf.mxu0
      %v4204 = vadd.f32 0.0, %v4203
      %4205 = vmatprep.mubr.f32.mxu0 0.0
      %4206 = vmatmul.mubr.f32.gmra.mxu0 %v4109
      %v4207 = vpop.f32.mrf.mxu0
      %v4208 = vadd.f32 0.0, %v4207
      %v4209 = vpop.f32.mrf.mxu0
      %v4210 = vadd.f32 0.0, %v4209
      %4211 = vmatprep.mubr.f32.mxu0 0.0
      %4212 = vmatmul.mubr.f32.gmra.mxu0 %v4112
      %v4213 = vpop.f32.mrf.mxu0
      %v4214 = vadd.f32 0.0, %v4213
      %v4215 = vpop.f32.mrf.mxu0
      %v4216 = vadd.f32 0.0, %v4215
      %4217 = vmatprep.mubr.f32.mxu0 0.0
      %4218 = vmatmul.mubr.f32.gmra.mxu0 %v4115
      %v4219 = vpop.f32.mrf.mxu0
      %v4220 = vadd.f32 0.0, %v4219
      %v4221 = vpop.f32.mrf.mxu0
      %v4222 = vadd.f32 0.0, %v4221
      %4223 = vdwg.mxu0
      %v4224 = vadd.f32 %v4059, %v4184
      %v4225 = vadd.f32 %v4060, %v4186
      %v4226 = vadd.f32 %v4061, %v4190
      %v4227 = vadd.f32 %v4062, %v4192
      %v4228 = vadd.f32 %v4063, %v4196
      %v4229 = vadd.f32 %v4064, %v4198
      %v4230 = vadd.f32 %v4065, %v4202
      %v4231 = vadd.f32 %v4066, %v4204
      %v4232 = vadd.f32 %v4067, %v4208
      %v4233 = vadd.f32 %v4068, %v4210
      %v4234 = vadd.f32 %v4069, %v4214
      %v4235 = vadd.f32 %v4070, %v4216
      %v4236 = vadd.f32 %v4071, %v4220
      %v4237 = vadd.f32 %v4072, %v4222
      %v4238 = vld [vmem:[#allocation7 + $0xc] sm:$0xff]
      %v4239 = vld [vmem:[#allocation7 + $0x14] sm:$0xff]
      %v4240 = vld [vmem:[#allocation7 + $0x1c] sm:$0xff]
      %v4241 = vld [vmem:[#allocation7 + $0x24] sm:$0xff]
      %v4242 = vld [vmem:[#allocation7 + $0x2c] sm:$0xff]
      %v4243 = vld [vmem:[#allocation7 + $0x34] sm:$0xff]
      %v4244 = vld [vmem:[#allocation7 + $0x3c] sm:$0x3]
      %v4245 = vld [vmem:[%s5 + $0x300] sm:$0xff]
      %v4246 = vld [vmem:[%s5 + $0x308] sm:$0xff]
      %v4247 = vld [vmem:[%s5 + $0x310] sm:$0xff]
      %v4248 = vld [vmem:[%s5 + $0x318] sm:$0xff]
      %v4249 = vld [vmem:[%s5 + $0x320] sm:$0xff]
      %v4250 = vld [vmem:[%s5 + $0x328] sm:$0xff]
      %v4251 = vld [vmem:[%s5 + $0x330] sm:$0xff]
      %v4252 = vld [vmem:[%s5 + $0x338] sm:$0xff]
      %v4253 = vld [vmem:[%s5 + $0x340] sm:$0xff]
      %v4254 = vld [vmem:[%s5 + $0x348] sm:$0xff]
      %v4255 = vld [vmem:[%s5 + $0x350] sm:$0xff]
      %v4256 = vld [vmem:[%s5 + $0x358] sm:$0xff]
      %v4257 = vld [vmem:[%s5 + $0x360] sm:$0xff]
      %v4258 = vld [vmem:[%s5 + $0x368] sm:$0xff]
      %v4259 = vld [vmem:[%s5 + $0x370] sm:$0xff]
      %v4260 = vld [vmem:[%s5 + $0x378] sm:$0xff]
      %v4262 = vsel %vm3124, %v4238, 0
      %v4265 = vsel %vm3124, %v4239, 0
      %v4268 = vsel %vm3124, %v4240, 0
      %v4271 = vsel %vm3124, %v4241, 0
      %v4274 = vsel %vm3124, %v4242, 0
      %v4277 = vsel %vm3124, %v4243, 0
      %v4280 = vsel %vm3124, %v4244, 0
      %4282 = vmatprep.subr.mxu0 0.0
      %4283 = vmatpush1.msra.mxu0 0.0
      %4284 = vmatprep.subr.mxu0 0.0
      %4285 = vmatpush1.msra.mxu0 0.0
      %4286 = vmatprep.subr.mxu0 0.0
      %4287 = vmatpush1.msra.mxu0 0.0
      %4288 = vmatprep.subr.mxu0 0.0
      %4289 = vmatpush1.msra.mxu0 0.0
      %4290 = vmatprep.subr.mxu0 0.0
      %4291 = vmatpush1.msra.mxu0 0.0
      %4292 = vmatprep.subr.mxu0 0.0
      %4293 = vmatpush1.msra.mxu0 0.0
      %4294 = vmatprep.subr.mxu0 0.0
      %4295 = vmatpush1.msra.mxu0 0.0
      %4296 = vmatprep.subr.mxu0 0.0
      %4297 = vmatpush1.msra.mxu0 0.0
      %4298 = vmatprep.subr.mxu0 %v4260
      %4299 = vmatpush1.msra.mxu0 %v4259
      %4300 = vmatprep.subr.mxu0 %v4258
      %4301 = vmatpush1.msra.mxu0 %v4257
      %4302 = vmatprep.subr.mxu0 %v4256
      %4303 = vmatpush1.msra.mxu0 %v4255
      %4304 = vmatprep.subr.mxu0 %v4254
      %4305 = vmatpush1.msra.mxu0 %v4253
      %4306 = vmatprep.subr.mxu0 %v4252
      %4307 = vmatpush1.msra.mxu0 %v4251
      %4308 = vmatprep.subr.mxu0 %v4250
      %4309 = vmatpush1.msra.mxu0 %v4249
      %4310 = vmatprep.subr.mxu0 %v4248
      %4311 = vmatpush1.msra.mxu0 %v4247
      %4312 = vmatprep.subr.mxu0 %v4246
      %4313 = vmatpush1.msra.mxu0 %v4245
      %4314 = vmatprep.subr.mxu0 0.0
      %4315 = vmatpush2.msra.mxu0 0.0
      %4316 = vmatprep.subr.mxu0 0.0
      %4317 = vmatpush2.msra.mxu0 0.0
      %4318 = vmatprep.subr.mxu0 0.0
      %4319 = vmatpush2.msra.mxu0 0.0
      %4320 = vmatprep.subr.mxu0 0.0
      %4321 = vmatpush2.msra.mxu0 0.0
      %4322 = vmatprep.subr.mxu0 0.0
      %4323 = vmatpush2.msra.mxu0 0.0
      %4324 = vmatprep.subr.mxu0 0.0
      %4325 = vmatpush2.msra.mxu0 0.0
      %4326 = vmatprep.subr.mxu0 0.0
      %4327 = vmatpush2.msra.mxu0 0.0
      %4328 = vmatprep.subr.mxu0 0.0
      %4329 = vmatpush2.msra.mxu0 0.0
      %4330 = vmatprep.subr.mxu0 0.0
      %4331 = vmatpush2.msra.mxu0 0.0
      %4332 = vmatprep.subr.mxu0 0.0
      %4333 = vmatpush2.msra.mxu0 0.0
      %4334 = vmatprep.subr.mxu0 0.0
      %4335 = vmatpush2.msra.mxu0 0.0
      %4336 = vmatprep.subr.mxu0 0.0
      %4337 = vmatpush2.msra.mxu0 0.0
      %4338 = vmatprep.subr.mxu0 0.0
      %4339 = vmatpush2.msra.mxu0 0.0
      %4340 = vmatprep.subr.mxu0 0.0
      %4341 = vmatpush2.msra.mxu0 0.0
      %4342 = vmatprep.subr.mxu0 0.0
      %4343 = vmatpush2.msra.mxu0 0.0
      %4344 = vmatprep.subr.mxu0 0.0
      %4345 = vmatpush2.msra.mxu0 0.0
      %4346 = vmatprep.mubr.f32.mxu0 0.0
      %4347 = vmatmul.mubr.f32.gmra.mxu0 %v4262
      %v4348 = vpop.f32.mrf.mxu0
      %v4349 = vadd.f32 0.0, %v4348
      %v4350 = vpop.f32.mrf.mxu0
      %v4351 = vadd.f32 0.0, %v4350
      %4352 = vmatprep.mubr.f32.mxu0 0.0
      %4353 = vmatmul.mubr.f32.gmra.mxu0 %v4265
      %v4354 = vpop.f32.mrf.mxu0
      %v4355 = vadd.f32 0.0, %v4354
      %v4356 = vpop.f32.mrf.mxu0
      %v4357 = vadd.f32 0.0, %v4356
      %4358 = vmatprep.mubr.f32.mxu0 0.0
      %4359 = vmatmul.mubr.f32.gmra.mxu0 %v4268
      %v4360 = vpop.f32.mrf.mxu0
      %v4361 = vadd.f32 0.0, %v4360
      %v4362 = vpop.f32.mrf.mxu0
      %v4363 = vadd.f32 0.0, %v4362
      %4364 = vmatprep.mubr.f32.mxu0 0.0
      %4365 = vmatmul.mubr.f32.gmra.mxu0 %v4271
      %v4366 = vpop.f32.mrf.mxu0
      %v4367 = vadd.f32 0.0, %v4366
      %v4368 = vpop.f32.mrf.mxu0
      %v4369 = vadd.f32 0.0, %v4368
      %4370 = vmatprep.mubr.f32.mxu0 0.0
      %4371 = vmatmul.mubr.f32.gmra.mxu0 %v4274
      %v4372 = vpop.f32.mrf.mxu0
      %v4373 = vadd.f32 0.0, %v4372
      %v4374 = vpop.f32.mrf.mxu0
      %v4375 = vadd.f32 0.0, %v4374
      %4376 = vmatprep.mubr.f32.mxu0 0.0
      %4377 = vmatmul.mubr.f32.gmra.mxu0 %v4277
      %v4378 = vpop.f32.mrf.mxu0
      %v4379 = vadd.f32 0.0, %v4378
      %v4380 = vpop.f32.mrf.mxu0
      %v4381 = vadd.f32 0.0, %v4380
      %4382 = vmatprep.mubr.f32.mxu0 0.0
      %4383 = vmatmul.mubr.f32.gmra.mxu0 %v4280
      %v4384 = vpop.f32.mrf.mxu0
      %v4385 = vadd.f32 0.0, %v4384
      %v4386 = vpop.f32.mrf.mxu0
      %v4387 = vadd.f32 0.0, %v4386
      %4388 = vdwg.mxu0
      %v4389 = vadd.f32 %v4224, %v4349
      %v4390 = vadd.f32 %v4225, %v4351
      %v4391 = vadd.f32 %v4226, %v4355
      %v4392 = vadd.f32 %v4227, %v4357
      %v4393 = vadd.f32 %v4228, %v4361
      %v4394 = vadd.f32 %v4229, %v4363
      %v4395 = vadd.f32 %v4230, %v4367
      %v4396 = vadd.f32 %v4231, %v4369
      %v4397 = vadd.f32 %v4232, %v4373
      %v4398 = vadd.f32 %v4233, %v4375
      %v4399 = vadd.f32 %v4234, %v4379
      %v4400 = vadd.f32 %v4235, %v4381
      %v4401 = vadd.f32 %v4236, %v4385
      %v4402 = vadd.f32 %v4237, %v4387
      %v4403 = vld [vmem:[#allocation7 + $0xd] sm:$0xff]
      %v4404 = vld [vmem:[#allocation7 + $0x15] sm:$0xff]
      %v4405 = vld [vmem:[#allocation7 + $0x1d] sm:$0xff]
      %v4406 = vld [vmem:[#allocation7 + $0x25] sm:$0xff]
      %v4407 = vld [vmem:[#allocation7 + $0x2d] sm:$0xff]
      %v4408 = vld [vmem:[#allocation7 + $0x35] sm:$0xff]
      %v4409 = vld [vmem:[#allocation7 + $0x3d] sm:$0x3]
      %v4410 = vld [vmem:[%s5 + $0x380] sm:$0xff]
      %v4411 = vld [vmem:[%s5 + $0x388] sm:$0xff]
      %v4412 = vld [vmem:[%s5 + $0x390] sm:$0xff]
      %v4413 = vld [vmem:[%s5 + $0x398] sm:$0xff]
      %v4414 = vld [vmem:[%s5 + $0x3a0] sm:$0xff]
      %v4415 = vld [vmem:[%s5 + $0x3a8] sm:$0xff]
      %v4416 = vld [vmem:[%s5 + $0x3b0] sm:$0xff]
      %v4417 = vld [vmem:[%s5 + $0x3b8] sm:$0xff]
      %v4418 = vld [vmem:[%s5 + $0x3c0] sm:$0xff]
      %v4419 = vld [vmem:[%s5 + $0x3c8] sm:$0xff]
      %v4420 = vld [vmem:[%s5 + $0x3d0] sm:$0xff]
      %v4421 = vld [vmem:[%s5 + $0x3d8] sm:$0xff]
      %v4422 = vld [vmem:[%s5 + $0x3e0] sm:$0xff]
      %v4423 = vld [vmem:[%s5 + $0x3e8] sm:$0xff]
      %v4424 = vld [vmem:[%s5 + $0x3f0] sm:$0xff]
      %v4425 = vld [vmem:[%s5 + $0x3f8] sm:$0xff]
      %v4427 = vsel %vm3124, %v4403, 0
      %v4430 = vsel %vm3124, %v4404, 0
      %v4433 = vsel %vm3124, %v4405, 0
      %v4436 = vsel %vm3124, %v4406, 0
      %v4439 = vsel %vm3124, %v4407, 0
      %v4442 = vsel %vm3124, %v4408, 0
      %v4445 = vsel %vm3124, %v4409, 0
      %4447 = vmatprep.subr.mxu0 0.0
      %4448 = vmatpush1.msra.mxu0 0.0
      %4449 = vmatprep.subr.mxu0 0.0
      %4450 = vmatpush1.msra.mxu0 0.0
      %4451 = vmatprep.subr.mxu0 0.0
      %4452 = vmatpush1.msra.mxu0 0.0
      %4453 = vmatprep.subr.mxu0 0.0
      %4454 = vmatpush1.msra.mxu0 0.0
      %4455 = vmatprep.subr.mxu0 0.0
      %4456 = vmatpush1.msra.mxu0 0.0
      %4457 = vmatprep.subr.mxu0 0.0
      %4458 = vmatpush1.msra.mxu0 0.0
      %4459 = vmatprep.subr.mxu0 0.0
      %4460 = vmatpush1.msra.mxu0 0.0
      %4461 = vmatprep.subr.mxu0 0.0
      %4462 = vmatpush1.msra.mxu0 0.0
      %4463 = vmatprep.subr.mxu0 %v4425
      %4464 = vmatpush1.msra.mxu0 %v4424
      %4465 = vmatprep.subr.mxu0 %v4423
      %4466 = vmatpush1.msra.mxu0 %v4422
      %4467 = vmatprep.subr.mxu0 %v4421
      %4468 = vmatpush1.msra.mxu0 %v4420
      %4469 = vmatprep.subr.mxu0 %v4419
      %4470 = vmatpush1.msra.mxu0 %v4418
      %4471 = vmatprep.subr.mxu0 %v4417
      %4472 = vmatpush1.msra.mxu0 %v4416
      %4473 = vmatprep.subr.mxu0 %v4415
      %4474 = vmatpush1.msra.mxu0 %v4414
      %4475 = vmatprep.subr.mxu0 %v4413
      %4476 = vmatpush1.msra.mxu0 %v4412
      %4477 = vmatprep.subr.mxu0 %v4411
      %4478 = vmatpush1.msra.mxu0 %v4410
      %4479 = vmatprep.subr.mxu0 0.0
      %4480 = vmatpush2.msra.mxu0 0.0
      %4481 = vmatprep.subr.mxu0 0.0
      %4482 = vmatpush2.msra.mxu0 0.0
      %4483 = vmatprep.subr.mxu0 0.0
      %4484 = vmatpush2.msra.mxu0 0.0
      %4485 = vmatprep.subr.mxu0 0.0
      %4486 = vmatpush2.msra.mxu0 0.0
      %4487 = vmatprep.subr.mxu0 0.0
      %4488 = vmatpush2.msra.mxu0 0.0
      %4489 = vmatprep.subr.mxu0 0.0
      %4490 = vmatpush2.msra.mxu0 0.0
      %4491 = vmatprep.subr.mxu0 0.0
      %4492 = vmatpush2.msra.mxu0 0.0
      %4493 = vmatprep.subr.mxu0 0.0
      %4494 = vmatpush2.msra.mxu0 0.0
      %4495 = vmatprep.subr.mxu0 0.0
      %4496 = vmatpush2.msra.mxu0 0.0
      %4497 = vmatprep.subr.mxu0 0.0
      %4498 = vmatpush2.msra.mxu0 0.0
      %4499 = vmatprep.subr.mxu0 0.0
      %4500 = vmatpush2.msra.mxu0 0.0
      %4501 = vmatprep.subr.mxu0 0.0
      %4502 = vmatpush2.msra.mxu0 0.0
      %4503 = vmatprep.subr.mxu0 0.0
      %4504 = vmatpush2.msra.mxu0 0.0
      %4505 = vmatprep.subr.mxu0 0.0
      %4506 = vmatpush2.msra.mxu0 0.0
      %4507 = vmatprep.subr.mxu0 0.0
      %4508 = vmatpush2.msra.mxu0 0.0
      %4509 = vmatprep.subr.mxu0 0.0
      %4510 = vmatpush2.msra.mxu0 0.0
      %4511 = vmatprep.mubr.f32.mxu0 0.0
      %4512 = vmatmul.mubr.f32.gmra.mxu0 %v4427
      %v4513 = vpop.f32.mrf.mxu0
      %v4514 = vadd.f32 0.0, %v4513
      %v4515 = vpop.f32.mrf.mxu0
      %v4516 = vadd.f32 0.0, %v4515
      %4517 = vmatprep.mubr.f32.mxu0 0.0
      %4518 = vmatmul.mubr.f32.gmra.mxu0 %v4430
      %v4519 = vpop.f32.mrf.mxu0
      %v4520 = vadd.f32 0.0, %v4519
      %v4521 = vpop.f32.mrf.mxu0
      %v4522 = vadd.f32 0.0, %v4521
      %4523 = vmatprep.mubr.f32.mxu0 0.0
      %4524 = vmatmul.mubr.f32.gmra.mxu0 %v4433
      %v4525 = vpop.f32.mrf.mxu0
      %v4526 = vadd.f32 0.0, %v4525
      %v4527 = vpop.f32.mrf.mxu0
      %v4528 = vadd.f32 0.0, %v4527
      %4529 = vmatprep.mubr.f32.mxu0 0.0
      %4530 = vmatmul.mubr.f32.gmra.mxu0 %v4436
      %v4531 = vpop.f32.mrf.mxu0
      %v4532 = vadd.f32 0.0, %v4531
      %v4533 = vpop.f32.mrf.mxu0
      %v4534 = vadd.f32 0.0, %v4533
      %4535 = vmatprep.mubr.f32.mxu0 0.0
      %4536 = vmatmul.mubr.f32.gmra.mxu0 %v4439
      %v4537 = vpop.f32.mrf.mxu0
      %v4538 = vadd.f32 0.0, %v4537
      %v4539 = vpop.f32.mrf.mxu0
      %v4540 = vadd.f32 0.0, %v4539
      %4541 = vmatprep.mubr.f32.mxu0 0.0
      %4542 = vmatmul.mubr.f32.gmra.mxu0 %v4442
      %v4543 = vpop.f32.mrf.mxu0
      %v4544 = vadd.f32 0.0, %v4543
      %v4545 = vpop.f32.mrf.mxu0
      %v4546 = vadd.f32 0.0, %v4545
      %4547 = vmatprep.mubr.f32.mxu0 0.0
      %4548 = vmatmul.mubr.f32.gmra.mxu0 %v4445
      %v4549 = vpop.f32.mrf.mxu0
      %v4550 = vadd.f32 0.0, %v4549
      %v4551 = vpop.f32.mrf.mxu0
      %v4552 = vadd.f32 0.0, %v4551
      %4553 = vdwg.mxu0
      %v4554 = vadd.f32 %v4389, %v4514
      %v4555 = vadd.f32 %v4390, %v4516
      %v4556 = vadd.f32 %v4391, %v4520
      %v4557 = vadd.f32 %v4392, %v4522
      %v4558 = vadd.f32 %v4393, %v4526
      %v4559 = vadd.f32 %v4394, %v4528
      %v4560 = vadd.f32 %v4395, %v4532
      %v4561 = vadd.f32 %v4396, %v4534
      %v4562 = vadd.f32 %v4397, %v4538
      %v4563 = vadd.f32 %v4398, %v4540
      %v4564 = vadd.f32 %v4399, %v4544
      %v4565 = vadd.f32 %v4400, %v4546
      %v4566 = vadd.f32 %v4401, %v4550
      %v4567 = vadd.f32 %v4402, %v4552
      %v4568 = vld [vmem:[#allocation7 + $0xe] sm:$0xff]
      %v4569 = vld [vmem:[#allocation7 + $0x16] sm:$0xff]
      %v4570 = vld [vmem:[#allocation7 + $0x1e] sm:$0xff]
      %v4571 = vld [vmem:[#allocation7 + $0x26] sm:$0xff]
      %v4572 = vld [vmem:[#allocation7 + $0x2e] sm:$0xff]
      %v4573 = vld [vmem:[#allocation7 + $0x36] sm:$0xff]
      %v4574 = vld [vmem:[#allocation7 + $0x3e] sm:$0x3]
      %v4575 = vld [vmem:[%s5 + $0x400] sm:$0xff]
      %v4576 = vld [vmem:[%s5 + $0x408] sm:$0xff]
      %v4577 = vld [vmem:[%s5 + $0x410] sm:$0xff]
      %v4578 = vld [vmem:[%s5 + $0x418] sm:$0xff]
      %v4579 = vld [vmem:[%s5 + $0x420] sm:$0xff]
      %v4580 = vld [vmem:[%s5 + $0x428] sm:$0xff]
      %v4581 = vld [vmem:[%s5 + $0x430] sm:$0xff]
      %v4582 = vld [vmem:[%s5 + $0x438] sm:$0xff]
      %v4583 = vld [vmem:[%s5 + $0x440] sm:$0xff]
      %v4584 = vld [vmem:[%s5 + $0x448] sm:$0xff]
      %v4585 = vld [vmem:[%s5 + $0x450] sm:$0xff]
      %v4586 = vld [vmem:[%s5 + $0x458] sm:$0xff]
      %v4587 = vld [vmem:[%s5 + $0x460] sm:$0xff]
      %v4588 = vld [vmem:[%s5 + $0x468] sm:$0xff]
      %v4589 = vld [vmem:[%s5 + $0x470] sm:$0xff]
      %v4590 = vld [vmem:[%s5 + $0x478] sm:$0xff]
      %v4592 = vsel %vm3124, %v4568, 0
      %v4595 = vsel %vm3124, %v4569, 0
      %v4598 = vsel %vm3124, %v4570, 0
      %v4601 = vsel %vm3124, %v4571, 0
      %v4604 = vsel %vm3124, %v4572, 0
      %v4607 = vsel %vm3124, %v4573, 0
      %v4610 = vsel %vm3124, %v4574, 0
      %4612 = vmatprep.subr.mxu0 0.0
      %4613 = vmatpush1.msra.mxu0 0.0
      %4614 = vmatprep.subr.mxu0 0.0
      %4615 = vmatpush1.msra.mxu0 0.0
      %4616 = vmatprep.subr.mxu0 0.0
      %4617 = vmatpush1.msra.mxu0 0.0
      %4618 = vmatprep.subr.mxu0 0.0
      %4619 = vmatpush1.msra.mxu0 0.0
      %4620 = vmatprep.subr.mxu0 0.0
      %4621 = vmatpush1.msra.mxu0 0.0
      %4622 = vmatprep.subr.mxu0 0.0
      %4623 = vmatpush1.msra.mxu0 0.0
      %4624 = vmatprep.subr.mxu0 0.0
      %4625 = vmatpush1.msra.mxu0 0.0
      %4626 = vmatprep.subr.mxu0 0.0
      %4627 = vmatpush1.msra.mxu0 0.0
      %4628 = vmatprep.subr.mxu0 %v4590
      %4629 = vmatpush1.msra.mxu0 %v4589
      %4630 = vmatprep.subr.mxu0 %v4588
      %4631 = vmatpush1.msra.mxu0 %v4587
      %4632 = vmatprep.subr.mxu0 %v4586
      %4633 = vmatpush1.msra.mxu0 %v4585
      %4634 = vmatprep.subr.mxu0 %v4584
      %4635 = vmatpush1.msra.mxu0 %v4583
      %4636 = vmatprep.subr.mxu0 %v4582
      %4637 = vmatpush1.msra.mxu0 %v4581
      %4638 = vmatprep.subr.mxu0 %v4580
      %4639 = vmatpush1.msra.mxu0 %v4579
      %4640 = vmatprep.subr.mxu0 %v4578
      %4641 = vmatpush1.msra.mxu0 %v4577
      %4642 = vmatprep.subr.mxu0 %v4576
      %4643 = vmatpush1.msra.mxu0 %v4575
      %4644 = vmatprep.subr.mxu0 0.0
      %4645 = vmatpush2.msra.mxu0 0.0
      %4646 = vmatprep.subr.mxu0 0.0
      %4647 = vmatpush2.msra.mxu0 0.0
      %4648 = vmatprep.subr.mxu0 0.0
      %4649 = vmatpush2.msra.mxu0 0.0
      %4650 = vmatprep.subr.mxu0 0.0
      %4651 = vmatpush2.msra.mxu0 0.0
      %4652 = vmatprep.subr.mxu0 0.0
      %4653 = vmatpush2.msra.mxu0 0.0
      %4654 = vmatprep.subr.mxu0 0.0
      %4655 = vmatpush2.msra.mxu0 0.0
      %4656 = vmatprep.subr.mxu0 0.0
      %4657 = vmatpush2.msra.mxu0 0.0
      %4658 = vmatprep.subr.mxu0 0.0
      %4659 = vmatpush2.msra.mxu0 0.0
      %4660 = vmatprep.subr.mxu0 0.0
      %4661 = vmatpush2.msra.mxu0 0.0
      %4662 = vmatprep.subr.mxu0 0.0
      %4663 = vmatpush2.msra.mxu0 0.0
      %4664 = vmatprep.subr.mxu0 0.0
      %4665 = vmatpush2.msra.mxu0 0.0
      %4666 = vmatprep.subr.mxu0 0.0
      %4667 = vmatpush2.msra.mxu0 0.0
      %4668 = vmatprep.subr.mxu0 0.0
      %4669 = vmatpush2.msra.mxu0 0.0
      %4670 = vmatprep.subr.mxu0 0.0
      %4671 = vmatpush2.msra.mxu0 0.0
      %4672 = vmatprep.subr.mxu0 0.0
      %4673 = vmatpush2.msra.mxu0 0.0
      %4674 = vmatprep.subr.mxu0 0.0
      %4675 = vmatpush2.msra.mxu0 0.0
      %4676 = vmatprep.mubr.f32.mxu0 0.0
      %4677 = vmatmul.mubr.f32.gmra.mxu0 %v4592
      %v4678 = vpop.f32.mrf.mxu0
      %v4679 = vadd.f32 0.0, %v4678
      %v4680 = vpop.f32.mrf.mxu0
      %v4681 = vadd.f32 0.0, %v4680
      %4682 = vmatprep.mubr.f32.mxu0 0.0
      %4683 = vmatmul.mubr.f32.gmra.mxu0 %v4595
      %v4684 = vpop.f32.mrf.mxu0
      %v4685 = vadd.f32 0.0, %v4684
      %v4686 = vpop.f32.mrf.mxu0
      %v4687 = vadd.f32 0.0, %v4686
      %4688 = vmatprep.mubr.f32.mxu0 0.0
      %4689 = vmatmul.mubr.f32.gmra.mxu0 %v4598
      %v4690 = vpop.f32.mrf.mxu0
      %v4691 = vadd.f32 0.0, %v4690
      %v4692 = vpop.f32.mrf.mxu0
      %v4693 = vadd.f32 0.0, %v4692
      %4694 = vmatprep.mubr.f32.mxu0 0.0
      %4695 = vmatmul.mubr.f32.gmra.mxu0 %v4601
      %v4696 = vpop.f32.mrf.mxu0
      %v4697 = vadd.f32 0.0, %v4696
      %v4698 = vpop.f32.mrf.mxu0
      %v4699 = vadd.f32 0.0, %v4698
      %4700 = vmatprep.mubr.f32.mxu0 0.0
      %4701 = vmatmul.mubr.f32.gmra.mxu0 %v4604
      %v4702 = vpop.f32.mrf.mxu0
      %v4703 = vadd.f32 0.0, %v4702
      %v4704 = vpop.f32.mrf.mxu0
      %v4705 = vadd.f32 0.0, %v4704
      %4706 = vmatprep.mubr.f32.mxu0 0.0
      %4707 = vmatmul.mubr.f32.gmra.mxu0 %v4607
      %v4708 = vpop.f32.mrf.mxu0
      %v4709 = vadd.f32 0.0, %v4708
      %v4710 = vpop.f32.mrf.mxu0
      %v4711 = vadd.f32 0.0, %v4710
      %4712 = vmatprep.mubr.f32.mxu0 0.0
      %4713 = vmatmul.mubr.f32.gmra.mxu0 %v4610
      %v4714 = vpop.f32.mrf.mxu0
      %v4715 = vadd.f32 0.0, %v4714
      %v4716 = vpop.f32.mrf.mxu0
      %v4717 = vadd.f32 0.0, %v4716
      %4718 = vdwg.mxu0
      %v4719 = vadd.f32 %v4554, %v4679
      %v4720 = vadd.f32 %v4555, %v4681
      %v4721 = vadd.f32 %v4556, %v4685
      %v4722 = vadd.f32 %v4557, %v4687
      %v4723 = vadd.f32 %v4558, %v4691
      %v4724 = vadd.f32 %v4559, %v4693
      %v4725 = vadd.f32 %v4560, %v4697
      %v4726 = vadd.f32 %v4561, %v4699
      %v4727 = vadd.f32 %v4562, %v4703
      %v4728 = vadd.f32 %v4563, %v4705
      %v4729 = vadd.f32 %v4564, %v4709
      %v4730 = vadd.f32 %v4565, %v4711
      %v4731 = vadd.f32 %v4566, %v4715
      %v4732 = vadd.f32 %v4567, %v4717
      %v4733 = vld [vmem:[%s6] sm:$0x3]
      %v4735 = vlaneseq
      %v4736 = vshrl.u32 %v4735, 7
      %v4737 = vsub.s32 0, %v4736
      %v4738 = vrot.slane %v4733, %v4737
      %v4739 = vlaneseq
      %v4740 = vshrl.u32 %v4739, 7
      %v4741 = vsub.s32 1, %v4740
      %v4742 = vrot.slane %v4733, %v4741
      %v4745 = vadd.f32 %v4719, %v4738
      %v4746 = vadd.f32 %v4720, %v4742
      %v4747 = vadd.f32 %v4721, %v4738
      %v4748 = vadd.f32 %v4722, %v4742
      %v4749 = vadd.f32 %v4723, %v4738
      %v4750 = vadd.f32 %v4724, %v4742
      %v4751 = vadd.f32 %v4725, %v4738
      %v4752 = vadd.f32 %v4726, %v4742
      %v4753 = vadd.f32 %v4727, %v4738
      %v4754 = vadd.f32 %v4728, %v4742
      %v4755 = vadd.f32 %v4729, %v4738
      %v4756 = vadd.f32 %v4730, %v4742
      %v4757 = vadd.f32 %v4731, %v4738
      %v4758 = vadd.f32 %v4732, %v4742
      %v4759 = vmax.f32 %v4745, 0.0
      %v4760 = vmax.f32 %v4746, 0.0
      %v4761 = vmax.f32 %v4747, 0.0
      %v4762 = vmax.f32 %v4748, 0.0
      %v4763 = vmax.f32 %v4749, 0.0
      %v4764 = vmax.f32 %v4750, 0.0
      %v4765 = vmax.f32 %v4751, 0.0
      %v4766 = vmax.f32 %v4752, 0.0
      %v4767 = vmax.f32 %v4753, 0.0
      %v4768 = vmax.f32 %v4754, 0.0
      %v4769 = vmax.f32 %v4755, 0.0
      %v4770 = vmax.f32 %v4756, 0.0
      %v4771 = vmax.f32 %v4757, 0.0
      %v4772 = vmax.f32 %v4758, 0.0
      %4773 = vst [vmem:[#allocation8] sm:$0xff] %v4759
      %4774 = vst [vmem:[#allocation8 + $0x8] sm:$0xff] %v4760
      %4775 = vst [vmem:[#allocation8 + $0x10] sm:$0xff] %v4761
      %4776 = vst [vmem:[#allocation8 + $0x18] sm:$0xff] %v4762
      %4777 = vst [vmem:[#allocation8 + $0x20] sm:$0xff] %v4763
      %4778 = vst [vmem:[#allocation8 + $0x28] sm:$0xff] %v4764
      %4779 = vst [vmem:[#allocation8 + $0x30] sm:$0xff] %v4765
      %4780 = vst [vmem:[#allocation8 + $0x38] sm:$0xff] %v4766
      %4781 = vst [vmem:[#allocation8 + $0x40] sm:$0xff] %v4767
      %4782 = vst [vmem:[#allocation8 + $0x48] sm:$0xff] %v4768
      %4783 = vst [vmem:[#allocation8 + $0x50] sm:$0xff] %v4769
      %4784 = vst [vmem:[#allocation8 + $0x58] sm:$0xff] %v4770
      %4785 = vst [vmem:[#allocation8 + $0x60] sm:$0x3] %v4771
      %4786 = vst [vmem:[#allocation8 + $0x68] sm:$0x3] %v4772
      %v4787 = vld [vmem:[#allocation8] sm:$0x80]
      %v4788 = vld [vmem:[#allocation8 + $0x8] sm:$0x80]
      %v4789 = vld [vmem:[#allocation8 + $0x10] sm:$0xff]
      %v4790 = vld [vmem:[#allocation8 + $0x18] sm:$0xff]
      %v4791 = vld [vmem:[#allocation8 + $0x20] sm:$0xff]
      %v4792 = vld [vmem:[#allocation8 + $0x28] sm:$0xff]
      %v4793 = vld [vmem:[#allocation8 + $0x30] sm:$0xff]
      %v4794 = vld [vmem:[#allocation8 + $0x38] sm:$0xff]
      %v4795 = vld [vmem:[#allocation8 + $0x40] sm:$0xff]
      %v4796 = vld [vmem:[#allocation8 + $0x48] sm:$0xff]
      %v4797 = vld [vmem:[#allocation8 + $0x50] sm:$0x7]
      %v4798 = vld [vmem:[#allocation8 + $0x58] sm:$0x7]
      %v4811 = vrot.slane %v4787, 7
      %v4812 = vrot.slane %v4789, 7
      %v4813 = vsel %vm579, %v4811, %v4812
      %v4814 = vrot.slane %v4788, 7
      %v4815 = vrot.slane %v4790, 7
      %v4816 = vsel %vm579, %v4814, %v4815
      %v4817 = vrot.slane %v4791, 7
      %v4818 = vsel %vm579, %v4812, %v4817
      %v4819 = vrot.slane %v4792, 7
      %v4820 = vsel %vm579, %v4815, %v4819
      %v4821 = vrot.slane %v4793, 7
      %v4822 = vsel %vm579, %v4817, %v4821
      %v4823 = vrot.slane %v4794, 7
      %v4824 = vsel %vm579, %v4819, %v4823
      %v4825 = vrot.slane %v4795, 7
      %v4826 = vsel %vm579, %v4821, %v4825
      %v4827 = vrot.slane %v4796, 7
      %v4828 = vsel %vm579, %v4823, %v4827
      %v4829 = vrot.slane %v4797, 7
      %v4830 = vsel %vm579, %v4825, %v4829
      %v4831 = vrot.slane %v4798, 7
      %v4832 = vsel %vm579, %v4827, %v4831
      %4843 = vst [vmem:[#allocation9] sm:$0xff] %v4813
      %4844 = vst [vmem:[#allocation9 + $0x8] sm:$0xff] %v4816
      %4845 = vst [vmem:[#allocation9 + $0x10] sm:$0xff] %v4818
      %4846 = vst [vmem:[#allocation9 + $0x18] sm:$0xff] %v4820
      %4847 = vst [vmem:[#allocation9 + $0x20] sm:$0xff] %v4822
      %4848 = vst [vmem:[#allocation9 + $0x28] sm:$0xff] %v4824
      %4849 = vst [vmem:[#allocation9 + $0x30] sm:$0xff] %v4826
      %4850 = vst [vmem:[#allocation9 + $0x38] sm:$0xff] %v4828
      %4851 = vst [vmem:[#allocation9 + $0x40] sm:$0xf] %v4830
      %4852 = vst [vmem:[#allocation9 + $0x48] sm:$0xf] %v4832
      %v4853 = vld [vmem:[#allocation9] sm:$0xff]
      %v4854 = vld [vmem:[#allocation9 + $0x8] sm:$0xff]
      %v4855 = vld [vmem:[#allocation9 + $0x10] sm:$0xff]
      %v4856 = vld [vmem:[#allocation9 + $0x18] sm:$0xff]
      %v4857 = vld [vmem:[#allocation9 + $0x20] sm:$0xff]
      %v4858 = vld [vmem:[#allocation9 + $0x28] sm:$0xff]
      %v4859 = vld [vmem:[#allocation9 + $0x30] sm:$0xff]
      %v4860 = vld [vmem:[#allocation9 + $0x38] sm:$0xff]
      %v4861 = vld [vmem:[#allocation9 + $0x40] sm:$0xf]
      %v4862 = vld [vmem:[#allocation9 + $0x48] sm:$0xf]
      %v4863 = vld [vmem:[%s7] sm:$0xff]
      %v4864 = vld [vmem:[%s7 + $0x8] sm:$0xff]
      %v4865 = vld [vmem:[%s7 + $0x10] sm:$0xff]
      %v4866 = vld [vmem:[%s7 + $0x18] sm:$0xff]
      %v4867 = vld [vmem:[%s7 + $0x20] sm:$0xff]
      %v4868 = vld [vmem:[%s7 + $0x28] sm:$0xff]
      %v4869 = vld [vmem:[%s7 + $0x30] sm:$0xff]
      %v4870 = vld [vmem:[%s7 + $0x38] sm:$0xff]
      %v4871 = vld [vmem:[%s8] sm:$0xff]
      %v4872 = vld [vmem:[%s8 + $0x8] sm:$0xff]
      %v4873 = vld [vmem:[%s8 + $0x10] sm:$0xff]
      %v4874 = vld [vmem:[%s8 + $0x18] sm:$0xff]
      %v4875 = vld [vmem:[%s8 + $0x20] sm:$0xff]
      %v4876 = vld [vmem:[%s8 + $0x28] sm:$0xff]
      %v4877 = vld [vmem:[%s8 + $0x30] sm:$0xff]
      %v4878 = vld [vmem:[%s8 + $0x38] sm:$0xff]
      %4880 = vset.pattern.permute.xlu0 0
      %4881 = vperm.xlu0 %4880, %v4871
      %v4882 = vpop.permute.xlu0 %4881
      %4885 = vset.pattern.permute.xlu0 0
      %4886 = vperm.xlu0 %4885, %v4872
      %v4887 = vpop.permute.xlu0 %4886
      %4890 = vset.pattern.permute.xlu0 0
      %4891 = vperm.xlu0 %4890, %v4873
      %v4892 = vpop.permute.xlu0 %4891
      %4895 = vset.pattern.permute.xlu0 0
      %4896 = vperm.xlu0 %4895, %v4874
      %v4897 = vpop.permute.xlu0 %4896
      %4900 = vset.pattern.permute.xlu0 0
      %4901 = vperm.xlu0 %4900, %v4875
      %v4902 = vpop.permute.xlu0 %4901
      %4905 = vset.pattern.permute.xlu0 0
      %4906 = vperm.xlu0 %4905, %v4876
      %v4907 = vpop.permute.xlu0 %4906
      %4910 = vset.pattern.permute.xlu0 0
      %4911 = vperm.xlu0 %4910, %v4877
      %v4912 = vpop.permute.xlu0 %4911
      %4915 = vset.pattern.permute.xlu0 0
      %4916 = vperm.xlu0 %4915, %v4878
      %v4917 = vpop.permute.xlu0 %4916
      %vm4919 = vcmask 293888
      %v4921 = vsel %vm4919, %v4863, 0
      %v4924 = vsel %vm4919, %v4864, 0
      %v4927 = vsel %vm4919, %v4865, 0
      %v4930 = vsel %vm4919, %v4866, 0
      %v4933 = vsel %vm4919, %v4867, 0
      %v4936 = vsel %vm4919, %v4868, 0
      %v4939 = vsel %vm4919, %v4869, 0
      %v4942 = vsel %vm4919, %v4870, 0
      %vm4944 = vcmask 1043456
      %v4946 = vsel %vm4944, %v4861, 0
      %v4949 = vsel %vm4944, %v4862, 0
      %4951 = vmatprep.subr.mxu0 0.0
      %4952 = vmatpush1.msra.mxu0 0.0
      %4953 = vmatprep.subr.mxu0 0.0
      %4954 = vmatpush1.msra.mxu0 0.0
      %4955 = vmatprep.subr.mxu0 0.0
      %4956 = vmatpush1.msra.mxu0 0.0
      %4957 = vmatprep.subr.mxu0 0.0
      %4958 = vmatpush1.msra.mxu0 0.0
      %4959 = vmatprep.subr.mxu0 0.0
      %4960 = vmatpush1.msra.mxu0 0.0
      %4961 = vmatprep.subr.mxu0 0.0
      %4962 = vmatpush1.msra.mxu0 0.0
      %4963 = vmatprep.subr.mxu0 0.0
      %4964 = vmatpush1.msra.mxu0 0.0
      %4965 = vmatprep.subr.mxu0 0.0
      %4966 = vmatpush1.msra.mxu0 0.0
      %4967 = vmatprep.subr.mxu0 0.0
      %4968 = vmatpush1.msra.mxu0 0.0
      %4969 = vmatprep.subr.mxu0 0.0
      %4970 = vmatpush1.msra.mxu0 0.0
      %4971 = vmatprep.subr.mxu0 0.0
      %4972 = vmatpush1.msra.mxu0 0.0
      %4973 = vmatprep.subr.mxu0 %v4949
      %4974 = vmatpush1.msra.mxu0 %v4946
      %4975 = vmatprep.subr.mxu0 %v4860
      %4976 = vmatpush1.msra.mxu0 %v4859
      %4977 = vmatprep.subr.mxu0 %v4858
      %4978 = vmatpush1.msra.mxu0 %v4857
      %4979 = vmatprep.subr.mxu0 %v4856
      %4980 = vmatpush1.msra.mxu0 %v4855
      %4981 = vmatprep.subr.mxu0 %v4854
      %4982 = vmatpush1.msra.mxu0 %v4853
      %4983 = vmatprep.subr.mxu0 0.0
      %4984 = vmatpush2.msra.mxu0 0.0
      %4985 = vmatprep.subr.mxu0 0.0
      %4986 = vmatpush2.msra.mxu0 0.0
      %4987 = vmatprep.subr.mxu0 0.0
      %4988 = vmatpush2.msra.mxu0 0.0
      %4989 = vmatprep.subr.mxu0 0.0
      %4990 = vmatpush2.msra.mxu0 0.0
      %4991 = vmatprep.subr.mxu0 0.0
      %4992 = vmatpush2.msra.mxu0 0.0
      %4993 = vmatprep.subr.mxu0 0.0
      %4994 = vmatpush2.msra.mxu0 0.0
      %4995 = vmatprep.subr.mxu0 0.0
      %4996 = vmatpush2.msra.mxu0 0.0
      %4997 = vmatprep.subr.mxu0 0.0
      %4998 = vmatpush2.msra.mxu0 0.0
      %4999 = vmatprep.subr.mxu0 0.0
      %5000 = vmatpush2.msra.mxu0 0.0
      %5001 = vmatprep.subr.mxu0 0.0
      %5002 = vmatpush2.msra.mxu0 0.0
      %5003 = vmatprep.subr.mxu0 0.0
      %5004 = vmatpush2.msra.mxu0 0.0
      %5005 = vmatprep.subr.mxu0 0.0
      %5006 = vmatpush2.msra.mxu0 0.0
      %5007 = vmatprep.subr.mxu0 0.0
      %5008 = vmatpush2.msra.mxu0 0.0
      %5009 = vmatprep.subr.mxu0 0.0
      %5010 = vmatpush2.msra.mxu0 0.0
      %5011 = vmatprep.subr.mxu0 0.0
      %5012 = vmatpush2.msra.mxu0 0.0
      %5013 = vmatprep.subr.mxu0 0.0
      %5014 = vmatpush2.msra.mxu0 0.0
      %5015 = vmatprep.mubr.f32.mxu0 0.0
      %5016 = vmatmul.mubr.f32.gmra.mxu0 %v4921
      %v5017 = vpop.f32.mrf.mxu0
      %v5018 = vadd.f32 %v4882, %v5017
      %v5019 = vpop.f32.mrf.mxu0
      %v5020 = vadd.f32 %v4882, %v5019
      %5021 = vmatprep.mubr.f32.mxu0 0.0
      %5022 = vmatmul.mubr.f32.gmra.mxu0 %v4924
      %v5023 = vpop.f32.mrf.mxu0
      %v5024 = vadd.f32 %v4887, %v5023
      %v5025 = vpop.f32.mrf.mxu0
      %v5026 = vadd.f32 %v4887, %v5025
      %5027 = vmatprep.mubr.f32.mxu0 0.0
      %5028 = vmatmul.mubr.f32.gmra.mxu0 %v4927
      %v5029 = vpop.f32.mrf.mxu0
      %v5030 = vadd.f32 %v4892, %v5029
      %v5031 = vpop.f32.mrf.mxu0
      %v5032 = vadd.f32 %v4892, %v5031
      %5033 = vmatprep.mubr.f32.mxu0 0.0
      %5034 = vmatmul.mubr.f32.gmra.mxu0 %v4930
      %v5035 = vpop.f32.mrf.mxu0
      %v5036 = vadd.f32 %v4897, %v5035
      %v5037 = vpop.f32.mrf.mxu0
      %v5038 = vadd.f32 %v4897, %v5037
      %5039 = vmatprep.mubr.f32.mxu0 0.0
      %5040 = vmatmul.mubr.f32.gmra.mxu0 %v4933
      %v5041 = vpop.f32.mrf.mxu0
      %v5042 = vadd.f32 %v4902, %v5041
      %v5043 = vpop.f32.mrf.mxu0
      %v5044 = vadd.f32 %v4902, %v5043
      %5045 = vmatprep.mubr.f32.mxu0 0.0
      %5046 = vmatmul.mubr.f32.gmra.mxu0 %v4936
      %v5047 = vpop.f32.mrf.mxu0
      %v5048 = vadd.f32 %v4907, %v5047
      %v5049 = vpop.f32.mrf.mxu0
      %v5050 = vadd.f32 %v4907, %v5049
      %5051 = vmatprep.mubr.f32.mxu0 0.0
      %5052 = vmatmul.mubr.f32.gmra.mxu0 %v4939
      %v5053 = vpop.f32.mrf.mxu0
      %v5054 = vadd.f32 %v4912, %v5053
      %v5055 = vpop.f32.mrf.mxu0
      %v5056 = vadd.f32 %v4912, %v5055
      %5057 = vmatprep.mubr.f32.mxu0 0.0
      %5058 = vmatmul.mubr.f32.gmra.mxu0 %v4942
      %v5059 = vpop.f32.mrf.mxu0
      %v5060 = vadd.f32 %v4917, %v5059
      %v5061 = vpop.f32.mrf.mxu0
      %v5062 = vadd.f32 %v4917, %v5061
      %5063 = vdwg.mxu0
      %v5064 = vmax.f32 %v5018, 0.0
      %v5065 = vmax.f32 %v5020, 0.0
      %v5066 = vmax.f32 %v5024, 0.0
      %v5067 = vmax.f32 %v5026, 0.0
      %v5068 = vmax.f32 %v5030, 0.0
      %v5069 = vmax.f32 %v5032, 0.0
      %v5070 = vmax.f32 %v5036, 0.0
      %v5071 = vmax.f32 %v5038, 0.0
      %v5072 = vmax.f32 %v5042, 0.0
      %v5073 = vmax.f32 %v5044, 0.0
      %v5074 = vmax.f32 %v5048, 0.0
      %v5075 = vmax.f32 %v5050, 0.0
      %v5076 = vmax.f32 %v5054, 0.0
      %v5077 = vmax.f32 %v5056, 0.0
      %v5078 = vmax.f32 %v5060, 0.0
      %v5079 = vmax.f32 %v5062, 0.0
      %v5080 = vld [vmem:[%s9] sm:$0xff]
      %v5081 = vld [vmem:[%s9 + $0x8] sm:$0xff]
      %v5082 = vld [vmem:[%s9 + $0x10] sm:$0xff]
      %v5083 = vld [vmem:[%s9 + $0x18] sm:$0xff]
      %v5084 = vld [vmem:[%s9 + $0x20] sm:$0xff]
      %v5085 = vld [vmem:[%s9 + $0x28] sm:$0xff]
      %v5086 = vld [vmem:[%s9 + $0x30] sm:$0xff]
      %v5087 = vld [vmem:[%s9 + $0x38] sm:$0xff]
      %v5088 = vld [vmem:[%s9 + $0x40] sm:$0xff]
      %v5089 = vld [vmem:[%s9 + $0x48] sm:$0xff]
      %v5090 = vld [vmem:[%s9 + $0x50] sm:$0xff]
      %v5091 = vld [vmem:[%s9 + $0x58] sm:$0xff]
      %v5092 = vld [vmem:[%s9 + $0x60] sm:$0xff]
      %v5093 = vld [vmem:[%s9 + $0x68] sm:$0xff]
      %v5094 = vld [vmem:[%s9 + $0x70] sm:$0xff]
      %v5095 = vld [vmem:[%s9 + $0x78] sm:$0xff]
      %v5096 = vld [vmem:[%s9 + $0x80] sm:$0xff]
      %v5097 = vld [vmem:[%s9 + $0x88] sm:$0xff]
      %v5098 = vld [vmem:[%s9 + $0x90] sm:$0xff]
      %v5099 = vld [vmem:[%s9 + $0x98] sm:$0xff]
      %v5100 = vld [vmem:[%s9 + $0xa0] sm:$0xff]
      %v5101 = vld [vmem:[%s9 + $0xa8] sm:$0xff]
      %v5102 = vld [vmem:[%s9 + $0xb0] sm:$0xff]
      %v5103 = vld [vmem:[%s9 + $0xb8] sm:$0xff]
      %v5104 = vld [vmem:[%s9 + $0xc0] sm:$0xff]
      %v5105 = vld [vmem:[%s9 + $0xc8] sm:$0xff]
      %v5106 = vld [vmem:[%s9 + $0xd0] sm:$0xff]
      %v5107 = vld [vmem:[%s9 + $0xd8] sm:$0xff]
      %v5108 = vld [vmem:[%s9 + $0xe0] sm:$0xff]
      %v5109 = vld [vmem:[%s9 + $0xe8] sm:$0xff]
      %v5110 = vld [vmem:[%s9 + $0xf0] sm:$0xff]
      %v5111 = vld [vmem:[%s9 + $0xf8] sm:$0xff]
      %v5112 = vld [vmem:[%s10] sm:$0xff]
      %v5113 = vld [vmem:[%s10 + $0x8] sm:$0xff]
      %v5114 = vld [vmem:[%s10 + $0x10] sm:$0xff]
      %v5115 = vld [vmem:[%s10 + $0x18] sm:$0xff]
      %v5116 = vld [vmem:[%s10 + $0x20] sm:$0xff]
      %v5117 = vld [vmem:[%s10 + $0x28] sm:$0xff]
      %v5118 = vld [vmem:[%s10 + $0x30] sm:$0xff]
      %v5119 = vld [vmem:[%s10 + $0x38] sm:$0xff]
      %v5120 = vld [vmem:[%s10 + $0x40] sm:$0xff]
      %v5121 = vld [vmem:[%s10 + $0x48] sm:$0xff]
      %v5122 = vld [vmem:[%s10 + $0x50] sm:$0xff]
      %v5123 = vld [vmem:[%s10 + $0x58] sm:$0xff]
      %v5124 = vld [vmem:[%s10 + $0x60] sm:$0xff]
      %v5125 = vld [vmem:[%s10 + $0x68] sm:$0xff]
      %v5126 = vld [vmem:[%s10 + $0x70] sm:$0xff]
      %v5127 = vld [vmem:[%s10 + $0x78] sm:$0xff]
      %v5128 = vld [vmem:[%s10 + $0x80] sm:$0xff]
      %v5129 = vld [vmem:[%s10 + $0x88] sm:$0xff]
      %v5130 = vld [vmem:[%s10 + $0x90] sm:$0xff]
      %v5131 = vld [vmem:[%s10 + $0x98] sm:$0xff]
      %v5132 = vld [vmem:[%s10 + $0xa0] sm:$0xff]
      %v5133 = vld [vmem:[%s10 + $0xa8] sm:$0xff]
      %v5134 = vld [vmem:[%s10 + $0xb0] sm:$0xff]
      %v5135 = vld [vmem:[%s10 + $0xb8] sm:$0xff]
      %v5136 = vld [vmem:[%s10 + $0xc0] sm:$0xff]
      %v5137 = vld [vmem:[%s10 + $0xc8] sm:$0xff]
      %v5138 = vld [vmem:[%s10 + $0xd0] sm:$0xff]
      %v5139 = vld [vmem:[%s10 + $0xd8] sm:$0xff]
      %v5140 = vld [vmem:[%s10 + $0xe0] sm:$0xff]
      %v5141 = vld [vmem:[%s10 + $0xe8] sm:$0xff]
      %v5142 = vld [vmem:[%s10 + $0xf0] sm:$0xff]
      %v5143 = vld [vmem:[%s10 + $0xf8] sm:$0xff]
      %5145 = vset.pattern.permute.xlu0 0
      %5146 = vperm.xlu0 %5145, %v5112
      %v5147 = vpop.permute.xlu0 %5146
      %5150 = vset.pattern.permute.xlu0 0
      %5151 = vperm.xlu0 %5150, %v5113
      %v5152 = vpop.permute.xlu0 %5151
      %5155 = vset.pattern.permute.xlu0 0
      %5156 = vperm.xlu0 %5155, %v5114
      %v5157 = vpop.permute.xlu0 %5156
      %5160 = vset.pattern.permute.xlu0 0
      %5161 = vperm.xlu0 %5160, %v5115
      %v5162 = vpop.permute.xlu0 %5161
      %5165 = vset.pattern.permute.xlu0 0
      %5166 = vperm.xlu0 %5165, %v5116
      %v5167 = vpop.permute.xlu0 %5166
      %5170 = vset.pattern.permute.xlu0 0
      %5171 = vperm.xlu0 %5170, %v5117
      %v5172 = vpop.permute.xlu0 %5171
      %5175 = vset.pattern.permute.xlu0 0
      %5176 = vperm.xlu0 %5175, %v5118
      %v5177 = vpop.permute.xlu0 %5176
      %5180 = vset.pattern.permute.xlu0 0
      %5181 = vperm.xlu0 %5180, %v5119
      %v5182 = vpop.permute.xlu0 %5181
      %5185 = vset.pattern.permute.xlu0 0
      %5186 = vperm.xlu0 %5185, %v5120
      %v5187 = vpop.permute.xlu0 %5186
      %5190 = vset.pattern.permute.xlu0 0
      %5191 = vperm.xlu0 %5190, %v5121
      %v5192 = vpop.permute.xlu0 %5191
      %5195 = vset.pattern.permute.xlu0 0
      %5196 = vperm.xlu0 %5195, %v5122
      %v5197 = vpop.permute.xlu0 %5196
      %5200 = vset.pattern.permute.xlu0 0
      %5201 = vperm.xlu0 %5200, %v5123
      %v5202 = vpop.permute.xlu0 %5201
      %5205 = vset.pattern.permute.xlu0 0
      %5206 = vperm.xlu0 %5205, %v5124
      %v5207 = vpop.permute.xlu0 %5206
      %5210 = vset.pattern.permute.xlu0 0
      %5211 = vperm.xlu0 %5210, %v5125
      %v5212 = vpop.permute.xlu0 %5211
      %5215 = vset.pattern.permute.xlu0 0
      %5216 = vperm.xlu0 %5215, %v5126
      %v5217 = vpop.permute.xlu0 %5216
      %5220 = vset.pattern.permute.xlu0 0
      %5221 = vperm.xlu0 %5220, %v5127
      %v5222 = vpop.permute.xlu0 %5221
      %5225 = vset.pattern.permute.xlu0 0
      %5226 = vperm.xlu0 %5225, %v5128
      %v5227 = vpop.permute.xlu0 %5226
      %5230 = vset.pattern.permute.xlu0 0
      %5231 = vperm.xlu0 %5230, %v5129
      %v5232 = vpop.permute.xlu0 %5231
      %5235 = vset.pattern.permute.xlu0 0
      %5236 = vperm.xlu0 %5235, %v5130
      %v5237 = vpop.permute.xlu0 %5236
      %5240 = vset.pattern.permute.xlu0 0
      %5241 = vperm.xlu0 %5240, %v5131
      %v5242 = vpop.permute.xlu0 %5241
      %5245 = vset.pattern.permute.xlu0 0
      %5246 = vperm.xlu0 %5245, %v5132
      %v5247 = vpop.permute.xlu0 %5246
      %5250 = vset.pattern.permute.xlu0 0
      %5251 = vperm.xlu0 %5250, %v5133
      %v5252 = vpop.permute.xlu0 %5251
      %5255 = vset.pattern.permute.xlu0 0
      %5256 = vperm.xlu0 %5255, %v5134
      %v5257 = vpop.permute.xlu0 %5256
      %5260 = vset.pattern.permute.xlu0 0
      %5261 = vperm.xlu0 %5260, %v5135
      %v5262 = vpop.permute.xlu0 %5261
      %5265 = vset.pattern.permute.xlu0 0
      %5266 = vperm.xlu0 %5265, %v5136
      %v5267 = vpop.permute.xlu0 %5266
      %5270 = vset.pattern.permute.xlu0 0
      %5271 = vperm.xlu0 %5270, %v5137
      %v5272 = vpop.permute.xlu0 %5271
      %5275 = vset.pattern.permute.xlu0 0
      %5276 = vperm.xlu0 %5275, %v5138
      %v5277 = vpop.permute.xlu0 %5276
      %5280 = vset.pattern.permute.xlu0 0
      %5281 = vperm.xlu0 %5280, %v5139
      %v5282 = vpop.permute.xlu0 %5281
      %5285 = vset.pattern.permute.xlu0 0
      %5286 = vperm.xlu0 %5285, %v5140
      %v5287 = vpop.permute.xlu0 %5286
      %5290 = vset.pattern.permute.xlu0 0
      %5291 = vperm.xlu0 %5290, %v5141
      %v5292 = vpop.permute.xlu0 %5291
      %5295 = vset.pattern.permute.xlu0 0
      %5296 = vperm.xlu0 %5295, %v5142
      %v5297 = vpop.permute.xlu0 %5296
      %5300 = vset.pattern.permute.xlu0 0
      %5301 = vperm.xlu0 %5300, %v5143
      %v5302 = vpop.permute.xlu0 %5301
      %v5305 = vsel %vm3124, %v5080, 0
      %v5308 = vsel %vm3124, %v5081, 0
      %v5311 = vsel %vm3124, %v5082, 0
      %v5314 = vsel %vm3124, %v5083, 0
      %v5317 = vsel %vm3124, %v5084, 0
      %v5320 = vsel %vm3124, %v5085, 0
      %v5323 = vsel %vm3124, %v5086, 0
      %v5326 = vsel %vm3124, %v5087, 0
      %v5329 = vsel %vm3124, %v5088, 0
      %v5332 = vsel %vm3124, %v5089, 0
      %v5335 = vsel %vm3124, %v5090, 0
      %v5338 = vsel %vm3124, %v5091, 0
      %v5341 = vsel %vm3124, %v5092, 0
      %v5344 = vsel %vm3124, %v5093, 0
      %v5347 = vsel %vm3124, %v5094, 0
      %v5350 = vsel %vm3124, %v5095, 0
      %v5353 = vsel %vm3124, %v5096, 0
      %v5356 = vsel %vm3124, %v5097, 0
      %v5359 = vsel %vm3124, %v5098, 0
      %v5362 = vsel %vm3124, %v5099, 0
      %v5365 = vsel %vm3124, %v5100, 0
      %v5368 = vsel %vm3124, %v5101, 0
      %v5371 = vsel %vm3124, %v5102, 0
      %v5374 = vsel %vm3124, %v5103, 0
      %v5377 = vsel %vm3124, %v5104, 0
      %v5380 = vsel %vm3124, %v5105, 0
      %v5383 = vsel %vm3124, %v5106, 0
      %v5386 = vsel %vm3124, %v5107, 0
      %v5389 = vsel %vm3124, %v5108, 0
      %v5392 = vsel %vm3124, %v5109, 0
      %v5395 = vsel %vm3124, %v5110, 0
      %v5398 = vsel %vm3124, %v5111, 0
      %5400 = vmatprep.subr.mxu0 0.0
      %5401 = vmatpush1.msra.mxu0 0.0
      %5402 = vmatprep.subr.mxu0 0.0
      %5403 = vmatpush1.msra.mxu0 0.0
      %5404 = vmatprep.subr.mxu0 0.0
      %5405 = vmatpush1.msra.mxu0 0.0
      %5406 = vmatprep.subr.mxu0 0.0
      %5407 = vmatpush1.msra.mxu0 0.0
      %5408 = vmatprep.subr.mxu0 0.0
      %5409 = vmatpush1.msra.mxu0 0.0
      %5410 = vmatprep.subr.mxu0 0.0
      %5411 = vmatpush1.msra.mxu0 0.0
      %5412 = vmatprep.subr.mxu0 0.0
      %5413 = vmatpush1.msra.mxu0 0.0
      %5414 = vmatprep.subr.mxu0 0.0
      %5415 = vmatpush1.msra.mxu0 0.0
      %5416 = vmatprep.subr.mxu0 %v5079
      %5417 = vmatpush1.msra.mxu0 %v5078
      %5418 = vmatprep.subr.mxu0 %v5077
      %5419 = vmatpush1.msra.mxu0 %v5076
      %5420 = vmatprep.subr.mxu0 %v5075
      %5421 = vmatpush1.msra.mxu0 %v5074
      %5422 = vmatprep.subr.mxu0 %v5073
      %5423 = vmatpush1.msra.mxu0 %v5072
      %5424 = vmatprep.subr.mxu0 %v5071
      %5425 = vmatpush1.msra.mxu0 %v5070
      %5426 = vmatprep.subr.mxu0 %v5069
      %5427 = vmatpush1.msra.mxu0 %v5068
      %5428 = vmatprep.subr.mxu0 %v5067
      %5429 = vmatpush1.msra.mxu0 %v5066
      %5430 = vmatprep.subr.mxu0 %v5065
      %5431 = vmatpush1.msra.mxu0 %v5064
      %5432 = vmatprep.subr.mxu0 0.0
      %5433 = vmatpush2.msra.mxu0 0.0
      %5434 = vmatprep.subr.mxu0 0.0
      %5435 = vmatpush2.msra.mxu0 0.0
      %5436 = vmatprep.subr.mxu0 0.0
      %5437 = vmatpush2.msra.mxu0 0.0
      %5438 = vmatprep.subr.mxu0 0.0
      %5439 = vmatpush2.msra.mxu0 0.0
      %5440 = vmatprep.subr.mxu0 0.0
      %5441 = vmatpush2.msra.mxu0 0.0
      %5442 = vmatprep.subr.mxu0 0.0
      %5443 = vmatpush2.msra.mxu0 0.0
      %5444 = vmatprep.subr.mxu0 0.0
      %5445 = vmatpush2.msra.mxu0 0.0
      %5446 = vmatprep.subr.mxu0 0.0
      %5447 = vmatpush2.msra.mxu0 0.0
      %5448 = vmatprep.subr.mxu0 0.0
      %5449 = vmatpush2.msra.mxu0 0.0
      %5450 = vmatprep.subr.mxu0 0.0
      %5451 = vmatpush2.msra.mxu0 0.0
      %5452 = vmatprep.subr.mxu0 0.0
      %5453 = vmatpush2.msra.mxu0 0.0
      %5454 = vmatprep.subr.mxu0 0.0
      %5455 = vmatpush2.msra.mxu0 0.0
      %5456 = vmatprep.subr.mxu0 0.0
      %5457 = vmatpush2.msra.mxu0 0.0
      %5458 = vmatprep.subr.mxu0 0.0
      %5459 = vmatpush2.msra.mxu0 0.0
      %5460 = vmatprep.subr.mxu0 0.0
      %5461 = vmatpush2.msra.mxu0 0.0
      %5462 = vmatprep.subr.mxu0 0.0
      %5463 = vmatpush2.msra.mxu0 0.0
      %5464 = vmatprep.mubr.f32.mxu0 0.0
      %5465 = vmatmul.mubr.f32.gmra.mxu0 %v5305
      %v5466 = vpop.f32.mrf.mxu0
      %v5467 = vadd.f32 %v5147, %v5466
      %v5468 = vpop.f32.mrf.mxu0
      %v5469 = vadd.f32 %v5147, %v5468
      %5470 = vmatprep.mubr.f32.mxu0 0.0
      %5471 = vmatmul.mubr.f32.gmra.mxu0 %v5308
      %v5472 = vpop.f32.mrf.mxu0
      %v5473 = vadd.f32 %v5152, %v5472
      %v5474 = vpop.f32.mrf.mxu0
      %v5475 = vadd.f32 %v5152, %v5474
      %5476 = vmatprep.mubr.f32.mxu0 0.0
      %5477 = vmatmul.mubr.f32.gmra.mxu0 %v5311
      %v5478 = vpop.f32.mrf.mxu0
      %v5479 = vadd.f32 %v5157, %v5478
      %v5480 = vpop.f32.mrf.mxu0
      %v5481 = vadd.f32 %v5157, %v5480
      %5482 = vmatprep.mubr.f32.mxu0 0.0
      %5483 = vmatmul.mubr.f32.gmra.mxu0 %v5314
      %v5484 = vpop.f32.mrf.mxu0
      %v5485 = vadd.f32 %v5162, %v5484
      %v5486 = vpop.f32.mrf.mxu0
      %v5487 = vadd.f32 %v5162, %v5486
      %5488 = vmatprep.mubr.f32.mxu0 0.0
      %5489 = vmatmul.mubr.f32.gmra.mxu0 %v5317
      %v5490 = vpop.f32.mrf.mxu0
      %v5491 = vadd.f32 %v5167, %v5490
      %v5492 = vpop.f32.mrf.mxu0
      %v5493 = vadd.f32 %v5167, %v5492
      %5494 = vmatprep.mubr.f32.mxu0 0.0
      %5495 = vmatmul.mubr.f32.gmra.mxu0 %v5320
      %v5496 = vpop.f32.mrf.mxu0
      %v5497 = vadd.f32 %v5172, %v5496
      %v5498 = vpop.f32.mrf.mxu0
      %v5499 = vadd.f32 %v5172, %v5498
      %5500 = vmatprep.mubr.f32.mxu0 0.0
      %5501 = vmatmul.mubr.f32.gmra.mxu0 %v5323
      %v5502 = vpop.f32.mrf.mxu0
      %v5503 = vadd.f32 %v5177, %v5502
      %v5504 = vpop.f32.mrf.mxu0
      %v5505 = vadd.f32 %v5177, %v5504
      %5506 = vmatprep.mubr.f32.mxu0 0.0
      %5507 = vmatmul.mubr.f32.gmra.mxu0 %v5326
      %v5508 = vpop.f32.mrf.mxu0
      %v5509 = vadd.f32 %v5182, %v5508
      %v5510 = vpop.f32.mrf.mxu0
      %v5511 = vadd.f32 %v5182, %v5510
      %5512 = vmatprep.mubr.f32.mxu0 0.0
      %5513 = vmatmul.mubr.f32.gmra.mxu0 %v5329
      %v5514 = vpop.f32.mrf.mxu0
      %v5515 = vadd.f32 %v5187, %v5514
      %v5516 = vpop.f32.mrf.mxu0
      %v5517 = vadd.f32 %v5187, %v5516
      %5518 = vmatprep.mubr.f32.mxu0 0.0
      %5519 = vmatmul.mubr.f32.gmra.mxu0 %v5332
      %v5520 = vpop.f32.mrf.mxu0
      %v5521 = vadd.f32 %v5192, %v5520
      %v5522 = vpop.f32.mrf.mxu0
      %v5523 = vadd.f32 %v5192, %v5522
      %5524 = vmatprep.mubr.f32.mxu0 0.0
      %5525 = vmatmul.mubr.f32.gmra.mxu0 %v5335
      %v5526 = vpop.f32.mrf.mxu0
      %v5527 = vadd.f32 %v5197, %v5526
      %v5528 = vpop.f32.mrf.mxu0
      %v5529 = vadd.f32 %v5197, %v5528
      %5530 = vmatprep.mubr.f32.mxu0 0.0
      %5531 = vmatmul.mubr.f32.gmra.mxu0 %v5338
      %v5532 = vpop.f32.mrf.mxu0
      %v5533 = vadd.f32 %v5202, %v5532
      %v5534 = vpop.f32.mrf.mxu0
      %v5535 = vadd.f32 %v5202, %v5534
      %5536 = vmatprep.mubr.f32.mxu0 0.0
      %5537 = vmatmul.mubr.f32.gmra.mxu0 %v5341
      %v5538 = vpop.f32.mrf.mxu0
      %v5539 = vadd.f32 %v5207, %v5538
      %v5540 = vpop.f32.mrf.mxu0
      %v5541 = vadd.f32 %v5207, %v5540
      %5542 = vmatprep.mubr.f32.mxu0 0.0
      %5543 = vmatmul.mubr.f32.gmra.mxu0 %v5344
      %v5544 = vpop.f32.mrf.mxu0
      %v5545 = vadd.f32 %v5212, %v5544
      %v5546 = vpop.f32.mrf.mxu0
      %v5547 = vadd.f32 %v5212, %v5546
      %5548 = vmatprep.mubr.f32.mxu0 0.0
      %5549 = vmatmul.mubr.f32.gmra.mxu0 %v5347
      %v5550 = vpop.f32.mrf.mxu0
      %v5551 = vadd.f32 %v5217, %v5550
      %v5552 = vpop.f32.mrf.mxu0
      %v5553 = vadd.f32 %v5217, %v5552
      %5554 = vmatprep.mubr.f32.mxu0 0.0
      %5555 = vmatmul.mubr.f32.gmra.mxu0 %v5350
      %v5556 = vpop.f32.mrf.mxu0
      %v5557 = vadd.f32 %v5222, %v5556
      %v5558 = vpop.f32.mrf.mxu0
      %v5559 = vadd.f32 %v5222, %v5558
      %5560 = vmatprep.mubr.f32.mxu0 0.0
      %5561 = vmatmul.mubr.f32.gmra.mxu0 %v5353
      %v5562 = vpop.f32.mrf.mxu0
      %v5563 = vadd.f32 %v5227, %v5562
      %v5564 = vpop.f32.mrf.mxu0
      %v5565 = vadd.f32 %v5227, %v5564
      %5566 = vmatprep.mubr.f32.mxu0 0.0
      %5567 = vmatmul.mubr.f32.gmra.mxu0 %v5356
      %v5568 = vpop.f32.mrf.mxu0
      %v5569 = vadd.f32 %v5232, %v5568
      %v5570 = vpop.f32.mrf.mxu0
      %v5571 = vadd.f32 %v5232, %v5570
      %5572 = vmatprep.mubr.f32.mxu0 0.0
      %5573 = vmatmul.mubr.f32.gmra.mxu0 %v5359
      %v5574 = vpop.f32.mrf.mxu0
      %v5575 = vadd.f32 %v5237, %v5574
      %v5576 = vpop.f32.mrf.mxu0
      %v5577 = vadd.f32 %v5237, %v5576
      %5578 = vmatprep.mubr.f32.mxu0 0.0
      %5579 = vmatmul.mubr.f32.gmra.mxu0 %v5362
      %v5580 = vpop.f32.mrf.mxu0
      %v5581 = vadd.f32 %v5242, %v5580
      %v5582 = vpop.f32.mrf.mxu0
      %v5583 = vadd.f32 %v5242, %v5582
      %5584 = vmatprep.mubr.f32.mxu0 0.0
      %5585 = vmatmul.mubr.f32.gmra.mxu0 %v5365
      %v5586 = vpop.f32.mrf.mxu0
      %v5587 = vadd.f32 %v5247, %v5586
      %v5588 = vpop.f32.mrf.mxu0
      %v5589 = vadd.f32 %v5247, %v5588
      %5590 = vmatprep.mubr.f32.mxu0 0.0
      %5591 = vmatmul.mubr.f32.gmra.mxu0 %v5368
      %v5592 = vpop.f32.mrf.mxu0
      %v5593 = vadd.f32 %v5252, %v5592
      %v5594 = vpop.f32.mrf.mxu0
      %v5595 = vadd.f32 %v5252, %v5594
      %5596 = vmatprep.mubr.f32.mxu0 0.0
      %5597 = vmatmul.mubr.f32.gmra.mxu0 %v5371
      %v5598 = vpop.f32.mrf.mxu0
      %v5599 = vadd.f32 %v5257, %v5598
      %v5600 = vpop.f32.mrf.mxu0
      %v5601 = vadd.f32 %v5257, %v5600
      %5602 = vmatprep.mubr.f32.mxu0 0.0
      %5603 = vmatmul.mubr.f32.gmra.mxu0 %v5374
      %v5604 = vpop.f32.mrf.mxu0
      %v5605 = vadd.f32 %v5262, %v5604
      %v5606 = vpop.f32.mrf.mxu0
      %v5607 = vadd.f32 %v5262, %v5606
      %5608 = vmatprep.mubr.f32.mxu0 0.0
      %5609 = vmatmul.mubr.f32.gmra.mxu0 %v5377
      %v5610 = vpop.f32.mrf.mxu0
      %v5611 = vadd.f32 %v5267, %v5610
      %v5612 = vpop.f32.mrf.mxu0
      %v5613 = vadd.f32 %v5267, %v5612
      %5614 = vmatprep.mubr.f32.mxu0 0.0
      %5615 = vmatmul.mubr.f32.gmra.mxu0 %v5380
      %v5616 = vpop.f32.mrf.mxu0
      %v5617 = vadd.f32 %v5272, %v5616
      %v5618 = vpop.f32.mrf.mxu0
      %v5619 = vadd.f32 %v5272, %v5618
      %5620 = vmatprep.mubr.f32.mxu0 0.0
      %5621 = vmatmul.mubr.f32.gmra.mxu0 %v5383
      %v5622 = vpop.f32.mrf.mxu0
      %v5623 = vadd.f32 %v5277, %v5622
      %v5624 = vpop.f32.mrf.mxu0
      %v5625 = vadd.f32 %v5277, %v5624
      %5626 = vmatprep.mubr.f32.mxu0 0.0
      %5627 = vmatmul.mubr.f32.gmra.mxu0 %v5386
      %v5628 = vpop.f32.mrf.mxu0
      %v5629 = vadd.f32 %v5282, %v5628
      %v5630 = vpop.f32.mrf.mxu0
      %v5631 = vadd.f32 %v5282, %v5630
      %5632 = vmatprep.mubr.f32.mxu0 0.0
      %5633 = vmatmul.mubr.f32.gmra.mxu0 %v5389
      %v5634 = vpop.f32.mrf.mxu0
      %v5635 = vadd.f32 %v5287, %v5634
      %v5636 = vpop.f32.mrf.mxu0
      %v5637 = vadd.f32 %v5287, %v5636
      %5638 = vmatprep.mubr.f32.mxu0 0.0
      %5639 = vmatmul.mubr.f32.gmra.mxu0 %v5392
      %v5640 = vpop.f32.mrf.mxu0
      %v5641 = vadd.f32 %v5292, %v5640
      %v5642 = vpop.f32.mrf.mxu0
      %v5643 = vadd.f32 %v5292, %v5642
      %5644 = vmatprep.mubr.f32.mxu0 0.0
      %5645 = vmatmul.mubr.f32.gmra.mxu0 %v5395
      %v5646 = vpop.f32.mrf.mxu0
      %v5647 = vadd.f32 %v5297, %v5646
      %v5648 = vpop.f32.mrf.mxu0
      %v5649 = vadd.f32 %v5297, %v5648
      %5650 = vmatprep.mubr.f32.mxu0 0.0
      %5651 = vmatmul.mubr.f32.gmra.mxu0 %v5398
      %v5652 = vpop.f32.mrf.mxu0
      %v5653 = vadd.f32 %v5302, %v5652
      %v5654 = vpop.f32.mrf.mxu0
      %v5655 = vadd.f32 %v5302, %v5654
      %5656 = vdwg.mxu0
      %v5657 = vmax.f32 %v5467, 0.0
      %v5658 = vmax.f32 %v5469, 0.0
      %v5659 = vmax.f32 %v5473, 0.0
      %v5660 = vmax.f32 %v5475, 0.0
      %v5661 = vmax.f32 %v5479, 0.0
      %v5662 = vmax.f32 %v5481, 0.0
      %v5663 = vmax.f32 %v5485, 0.0
      %v5664 = vmax.f32 %v5487, 0.0
      %v5665 = vmax.f32 %v5491, 0.0
      %v5666 = vmax.f32 %v5493, 0.0
      %v5667 = vmax.f32 %v5497, 0.0
      %v5668 = vmax.f32 %v5499, 0.0
      %v5669 = vmax.f32 %v5503, 0.0
      %v5670 = vmax.f32 %v5505, 0.0
      %v5671 = vmax.f32 %v5509, 0.0
      %v5672 = vmax.f32 %v5511, 0.0
      %v5673 = vmax.f32 %v5515, 0.0
      %v5674 = vmax.f32 %v5517, 0.0
      %v5675 = vmax.f32 %v5521, 0.0
      %v5676 = vmax.f32 %v5523, 0.0
      %v5677 = vmax.f32 %v5527, 0.0
      %v5678 = vmax.f32 %v5529, 0.0
      %v5679 = vmax.f32 %v5533, 0.0
      %v5680 = vmax.f32 %v5535, 0.0
      %v5681 = vmax.f32 %v5539, 0.0
      %v5682 = vmax.f32 %v5541, 0.0
      %v5683 = vmax.f32 %v5545, 0.0
      %v5684 = vmax.f32 %v5547, 0.0
      %v5685 = vmax.f32 %v5551, 0.0
      %v5686 = vmax.f32 %v5553, 0.0
      %v5687 = vmax.f32 %v5557, 0.0
      %v5688 = vmax.f32 %v5559, 0.0
      %v5689 = vmax.f32 %v5563, 0.0
      %v5690 = vmax.f32 %v5565, 0.0
      %v5691 = vmax.f32 %v5569, 0.0
      %v5692 = vmax.f32 %v5571, 0.0
      %v5693 = vmax.f32 %v5575, 0.0
      %v5694 = vmax.f32 %v5577, 0.0
      %v5695 = vmax.f32 %v5581, 0.0
      %v5696 = vmax.f32 %v5583, 0.0
      %v5697 = vmax.f32 %v5587, 0.0
      %v5698 = vmax.f32 %v5589, 0.0
      %v5699 = vmax.f32 %v5593, 0.0
      %v5700 = vmax.f32 %v5595, 0.0
      %v5701 = vmax.f32 %v5599, 0.0
      %v5702 = vmax.f32 %v5601, 0.0
      %v5703 = vmax.f32 %v5605, 0.0
      %v5704 = vmax.f32 %v5607, 0.0
      %v5705 = vmax.f32 %v5611, 0.0
      %v5706 = vmax.f32 %v5613, 0.0
      %v5707 = vmax.f32 %v5617, 0.0
      %v5708 = vmax.f32 %v5619, 0.0
      %v5709 = vmax.f32 %v5623, 0.0
      %v5710 = vmax.f32 %v5625, 0.0
      %v5711 = vmax.f32 %v5629, 0.0
      %v5712 = vmax.f32 %v5631, 0.0
      %v5713 = vmax.f32 %v5635, 0.0
      %v5714 = vmax.f32 %v5637, 0.0
      %v5715 = vmax.f32 %v5641, 0.0
      %v5716 = vmax.f32 %v5643, 0.0
      %v5717 = vmax.f32 %v5647, 0.0
      %v5718 = vmax.f32 %v5649, 0.0
      %v5719 = vmax.f32 %v5653, 0.0
      %v5720 = vmax.f32 %v5655, 0.0
      %v5721 = vld [vmem:[%s11] sm:$0xff]
      %v5722 = vld [vmem:[%s11 + $0x8] sm:$0xff]
      %v5723 = vld [vmem:[%s11 + $0x10] sm:$0xff]
      %v5724 = vld [vmem:[%s11 + $0x18] sm:$0xff]
      %v5725 = vld [vmem:[%s11 + $0x20] sm:$0xff]
      %v5726 = vld [vmem:[%s11 + $0x28] sm:$0xff]
      %v5727 = vld [vmem:[%s11 + $0x30] sm:$0x3]
      %v5728 = vld [vmem:[%s11 + $0x38] sm:$0x3]
      %v5729 = vld [vmem:[%s12] sm:$0xff]
      %v5730 = vld [vmem:[%s12 + $0x8] sm:$0xff]
      %v5731 = vld [vmem:[%s12 + $0x10] sm:$0xff]
      %v5732 = vld [vmem:[%s12 + $0x18] sm:$0x3]
      %5734 = vset.pattern.permute.xlu0 0
      %5735 = vperm.xlu0 %5734, %v5729
      %v5736 = vpop.permute.xlu0 %5735
      %5739 = vset.pattern.permute.xlu0 0
      %5740 = vperm.xlu0 %5739, %v5730
      %v5741 = vpop.permute.xlu0 %5740
      %5744 = vset.pattern.permute.xlu0 0
      %5745 = vperm.xlu0 %5744, %v5731
      %v5746 = vpop.permute.xlu0 %5745
      %5749 = vset.pattern.permute.xlu0 0
      %5750 = vperm.xlu0 %5749, %v5732
      %v5751 = vpop.permute.xlu0 %5750
      %5753 = vmatprep.subr.mxu0 %v5688
      %5754 = vmatpush1.msra.mxu0 %v5687
      %5755 = vmatprep.subr.mxu0 %v5686
      %5756 = vmatpush1.msra.mxu0 %v5685
      %5757 = vmatprep.subr.mxu0 %v5684
      %5758 = vmatpush1.msra.mxu0 %v5683
      %5759 = vmatprep.subr.mxu0 %v5682
      %5760 = vmatpush1.msra.mxu0 %v5681
      %5761 = vmatprep.subr.mxu0 %v5680
      %5762 = vmatpush1.msra.mxu0 %v5679
      %5763 = vmatprep.subr.mxu0 %v5678
      %5764 = vmatpush1.msra.mxu0 %v5677
      %5765 = vmatprep.subr.mxu0 %v5676
      %5766 = vmatpush1.msra.mxu0 %v5675
      %5767 = vmatprep.subr.mxu0 %v5674
      %5768 = vmatpush1.msra.mxu0 %v5673
      %5769 = vmatprep.subr.mxu0 %v5672
      %5770 = vmatpush1.msra.mxu0 %v5671
      %5771 = vmatprep.subr.mxu0 %v5670
      %5772 = vmatpush1.msra.mxu0 %v5669
      %5773 = vmatprep.subr.mxu0 %v5668
      %5774 = vmatpush1.msra.mxu0 %v5667
      %5775 = vmatprep.subr.mxu0 %v5666
      %5776 = vmatpush1.msra.mxu0 %v5665
      %5777 = vmatprep.subr.mxu0 %v5664
      %5778 = vmatpush1.msra.mxu0 %v5663
      %5779 = vmatprep.subr.mxu0 %v5662
      %5780 = vmatpush1.msra.mxu0 %v5661
      %5781 = vmatprep.subr.mxu0 %v5660
      %5782 = vmatpush1.msra.mxu0 %v5659
      %5783 = vmatprep.subr.mxu0 %v5658
      %5784 = vmatpush1.msra.mxu0 %v5657
      %5785 = vmatprep.subr.mxu0 %v5720
      %5786 = vmatpush2.msra.mxu0 %v5719
      %5787 = vmatprep.subr.mxu0 %v5718
      %5788 = vmatpush2.msra.mxu0 %v5717
      %5789 = vmatprep.subr.mxu0 %v5716
      %5790 = vmatpush2.msra.mxu0 %v5715
      %5791 = vmatprep.subr.mxu0 %v5714
      %5792 = vmatpush2.msra.mxu0 %v5713
      %5793 = vmatprep.subr.mxu0 %v5712
      %5794 = vmatpush2.msra.mxu0 %v5711
      %5795 = vmatprep.subr.mxu0 %v5710
      %5796 = vmatpush2.msra.mxu0 %v5709
      %5797 = vmatprep.subr.mxu0 %v5708
      %5798 = vmatpush2.msra.mxu0 %v5707
      %5799 = vmatprep.subr.mxu0 %v5706
      %5800 = vmatpush2.msra.mxu0 %v5705
      %5801 = vmatprep.subr.mxu0 %v5704
      %5802 = vmatpush2.msra.mxu0 %v5703
      %5803 = vmatprep.subr.mxu0 %v5702
      %5804 = vmatpush2.msra.mxu0 %v5701
      %5805 = vmatprep.subr.mxu0 %v5700
      %5806 = vmatpush2.msra.mxu0 %v5699
      %5807 = vmatprep.subr.mxu0 %v5698
      %5808 = vmatpush2.msra.mxu0 %v5697
      %5809 = vmatprep.subr.mxu0 %v5696
      %5810 = vmatpush2.msra.mxu0 %v5695
      %5811 = vmatprep.subr.mxu0 %v5694
      %5812 = vmatpush2.msra.mxu0 %v5693
      %5813 = vmatprep.subr.mxu0 %v5692
      %5814 = vmatpush2.msra.mxu0 %v5691
      %5815 = vmatprep.subr.mxu0 %v5690
      %5816 = vmatpush2.msra.mxu0 %v5689
      %5817 = vmatprep.mubr.f32.mxu0 %v5722
      %5818 = vmatmul.mubr.f32.gmra.mxu0 %v5721
      %v5819 = vpop.f32.mrf.mxu0
      %v5820 = vadd.f32 %v5736, %v5819
      %v5821 = vpop.f32.mrf.mxu0
      %v5822 = vadd.f32 %v5736, %v5821
      %5823 = vmatprep.mubr.f32.mxu0 %v5724
      %5824 = vmatmul.mubr.f32.gmra.mxu0 %v5723
      %v5825 = vpop.f32.mrf.mxu0
      %v5826 = vadd.f32 %v5741, %v5825
      %v5827 = vpop.f32.mrf.mxu0
      %v5828 = vadd.f32 %v5741, %v5827
      %5829 = vmatprep.mubr.f32.mxu0 %v5726
      %5830 = vmatmul.mubr.f32.gmra.mxu0 %v5725
      %v5831 = vpop.f32.mrf.mxu0
      %v5832 = vadd.f32 %v5746, %v5831
      %v5833 = vpop.f32.mrf.mxu0
      %v5834 = vadd.f32 %v5746, %v5833
      %5835 = vmatprep.mubr.f32.mxu0 %v5728
      %5836 = vmatmul.mubr.f32.gmra.mxu0 %v5727
      %v5837 = vpop.f32.mrf.mxu0
      %v5838 = vadd.f32 %v5751, %v5837
      %v5839 = vpop.f32.mrf.mxu0
      %v5840 = vadd.f32 %v5751, %v5839
      %5841 = vdwg.mxu0
      %v5842 = vmax.f32 %v5820, %v5832
      %vm5843 = vcmask 1041408
      %v5844 = vsel %vm5843, %v5838, -inf
      %v5845 = vmax.f32 %v5826, %v5844
      %v5846 = vmax.f32 %v5842, %v5845
      %v5847 = vrot.slane %v5846, 4
      %v5848 = vmax.f32 %v5846, %v5847
      %v5849 = vrot.slane %v5848, 2
      %v5850 = vmax.f32 %v5848, %v5849
      %v5851 = vrot.slane %v5850, 1
      %v5852 = vmax.f32 %v5850, %v5851
      %v5853 = vmax.f32 %v5822, %v5834
      %v5854 = vsel %vm5843, %v5840, -inf
      %v5855 = vmax.f32 %v5828, %v5854
      %v5856 = vmax.f32 %v5853, %v5855
      %v5857 = vrot.slane %v5856, 4
      %v5858 = vmax.f32 %v5856, %v5857
      %v5859 = vrot.slane %v5858, 2
      %v5860 = vmax.f32 %v5858, %v5859
      %v5861 = vrot.slane %v5860, 1
      %v5862 = vmax.f32 %v5860, %v5861
      %v5863 = vsub.f32 %v5820, %v5852
      %v5864 = vsub.f32 %v5822, %v5862
      %v5865 = vsub.f32 %v5826, %v5852
      %v5866 = vsub.f32 %v5828, %v5862
      %v5867 = vsub.f32 %v5832, %v5852
      %v5868 = vsub.f32 %v5834, %v5862
      %v5869 = vsub.f32 %v5838, %v5852
      %v5870 = vsub.f32 %v5840, %v5862
      %v5871 = vmul.f32 %v5863, 1.442695
      %v5872 = vpow.pop %v5871
      %v5873 = vmul.f32 %v5864, 1.442695
      %v5874 = vpow.pop %v5873
      %v5875 = vmul.f32 %v5865, 1.442695
      %v5876 = vpow.pop %v5875
      %v5877 = vmul.f32 %v5866, 1.442695
      %v5878 = vpow.pop %v5877
      %v5879 = vmul.f32 %v5867, 1.442695
      %v5880 = vpow.pop %v5879
      %v5881 = vmul.f32 %v5868, 1.442695
      %v5882 = vpow.pop %v5881
      %v5883 = vmul.f32 %v5869, 1.442695
      %v5884 = vpow.pop %v5883
      %v5885 = vmul.f32 %v5870, 1.442695
      %v5886 = vpow.pop %v5885
      %v5887 = vadd.f32 %v5872, %v5876
      %v5888 = vadd.f32 %v5887, %v5880
      %v5889 = vsel %vm5843, %v5884, 0.0
      %v5890 = vadd.f32 %v5888, %v5889
      %v5891 = vrot.slane %v5890, 4
      %v5892 = vadd.f32 %v5890, %v5891
      %v5893 = vrot.slane %v5892, 2
      %v5894 = vadd.f32 %v5892, %v5893
      %v5895 = vrot.slane %v5894, 1
      %v5896 = vadd.f32 %v5894, %v5895
      %v5897 = vadd.f32 %v5874, %v5878
      %v5898 = vadd.f32 %v5897, %v5882
      %v5899 = vsel %vm5843, %v5886, 0.0
      %v5900 = vadd.f32 %v5898, %v5899
      %v5901 = vrot.slane %v5900, 4
      %v5902 = vadd.f32 %v5900, %v5901
      %v5903 = vrot.slane %v5902, 2
      %v5904 = vadd.f32 %v5902, %v5903
      %v5905 = vrot.slane %v5904, 1
      %v5906 = vadd.f32 %v5904, %v5905
      %v5907 = vrcp.pop %v5896
      %v5908 = vmul.f32 %v5872, %v5907
      %v5909 = vrcp.pop %v5906
      %v5910 = vmul.f32 %v5874, %v5909
      %v5911 = vmul.f32 %v5876, %v5907
      %v5912 = vmul.f32 %v5878, %v5909
      %v5913 = vmul.f32 %v5880, %v5907
      %v5914 = vmul.f32 %v5882, %v5909
      %v5915 = vmul.f32 %v5884, %v5907
      %v5916 = vmul.f32 %v5886, %v5909
      %5917 = vst [vmem:[%s440] sm:$0xff] %v5908
      %5918 = vst [vmem:[%s440 + $0x8] sm:$0xff] %v5910
      %5919 = vst [vmem:[%s440 + $0x10] sm:$0xff] %v5911
      %5920 = vst [vmem:[%s440 + $0x18] sm:$0xff] %v5912
      %5921 = vst [vmem:[%s440 + $0x20] sm:$0xff] %v5913
      %5922 = vst [vmem:[%s440 + $0x28] sm:$0xff] %v5914
      %5923 = vst [vmem:[%s440 + $0x30] sm:$0x3] %v5915
      %5924 = vst [vmem:[%s440 + $0x38] sm:$0x3] %v5916
      %p5925 = scmp.lt.s32.totalorder %s24, 1
      %s5926 = scalar_select %p5925, %s24, 1
      %s5927 = smul.addr %s5926, 8
      %s5928 = smul.addr %s5927, 8
      %s5929 = scalar_lea.vmem %s13, %s5928
      // Predicated region
      $region73: #{cnn_forward.1} parent=71 // pred_check
        %p5930 = pneg %p320
      $region74: #{cnn_forward.1} parent=71 // pred_check_branch
        %5932 = sbr.rel (%p5930) target = $region76
      $region75: #{cnn_forward.1} parent=71 // pred_region
        _
      $region76: #{cnn_forward.1} parent=71 // pred_fallthru
        _
    $region72: #{cnn_forward.1} parent=5 // pred_fallthru
      _
    %p5933 = scmp.le.s32.totalorder 2, %s19
    // Predicated region
    $region77: #{cnn_forward.1} parent=5 // pred_check
      %p5934 = pneg %p5933
    $region78: #{cnn_forward.1} parent=5 // pred_check_branch
      %5936 = sbr.rel (%p5934) target = $region80
    $region79: #{cnn_forward.1} parent=5 // pred_region
      %s5937 = ssub.s32 %s19, 2
      // Predicated region
      $region81: #{cnn_forward.1} parent=79 // pred_check
        %p5938 = pneg %p326
      $region82: #{cnn_forward.1} parent=79 // pred_check_branch
        %5940 = sbr.rel (%p5938) target = $region84
      $region83: #{cnn_forward.1} parent=79 // pred_region
        %p5941 = scmp.lt.s32.totalorder %s25, 1
        %s5942 = scalar_select %p5941, %s25, 1
        %s5943 = smul.addr %s5942, 8
        %s5944 = smul.addr %s5943, 8
        %s5945 = scalar_lea.vmem %s13, %s5944
      $region84: #{cnn_forward.1} parent=79 // pred_fallthru
        _
    $region80: #{cnn_forward.1} parent=5 // pred_fallthru
      _
  $region6: #{cnn_forward.1} parent=0 // loop_footer
    %s23 = sadd.s32 1, %s19
  $region7: #{cnn_forward.1} parent=0 // loop_footer_branch
    %18 = sbr.rel target = $region3
  $region8: #{cnn_forward.1} parent=0 // loop_exit
    _

</llo_original>
